<compile_context>
chip_gen: v7x
topology: tpu7x:2x2x1
jax: 0.10.0
libtpu: 0.0.40
codegen_flags: <defaults>
</compile_context>

<pallas_src>
import jax
import jax.numpy as jnp
from jax.experimental import pallas as pl
from jax.experimental.pallas import tpu as pltpu


def _round_up(x, m):
    return ((x + m - 1) // m) * m


# ---------------------------------------------------------------------------
# Glue: bilinear x2 upsample, align_corners=True (exact per-row/col weights).
# bf16 storage, f32 lerp math.
# TODO(synk): fuse the upsample into the Pallas kernel (per-tile gather of the
# original HxW rows + exact per-row weight table) to cut input HBM traffic ~4x.
# ---------------------------------------------------------------------------
def _interp_axis_2x(x, axis):
    n_in = x.shape[axis]
    n_out = 2 * n_in
    src = jnp.arange(n_out, dtype=jnp.float32) * ((n_in - 1) / (n_out - 1))
    i0 = jnp.clip(jnp.floor(src).astype(jnp.int32), 0, n_in - 1)
    i1 = jnp.minimum(i0 + 1, n_in - 1)
    f = src - i0.astype(jnp.float32)
    shape = [1] * x.ndim
    shape[axis] = n_out
    f = f.reshape(shape)
    x0 = jnp.take(x, i0, axis=axis).astype(jnp.float32)
    x1 = jnp.take(x, i1, axis=axis).astype(jnp.float32)
    return (x0 * (1.0 - f) + x1 * f).astype(x.dtype)


def _upsample2x_align_corners(x_nhwc):
    up = _interp_axis_2x(x_nhwc, axis=1)
    up = _interp_axis_2x(up, axis=2)
    return up


# ---------------------------------------------------------------------------
# Pallas kernel: fused 3x3 conv as ONE K=9*Cin MXU dot + folded BN + ReLU.
# ---------------------------------------------------------------------------
def _make_kernel(tile_h, w2, cin, cout, cout_pad):
    def kernel(x_ref, halo_ref, w_ref, scale_ref, bias_ref, o_ref):
        # x_ref:     (1, TILE_H, W2+2, Cin)  bf16  main rows of padded activation
        # halo_ref:  (1, 2,      W2+2, Cin)  bf16  two rows directly below tile
        # w_ref:     (9*Cin, Cout_pad)       bf16  conv taps, (dy,dx)-major rows
        # scale_ref: (1, Cout_pad)           f32   folded BN scale
        # bias_ref:  (1, Cout_pad)           f32   folded BN bias (incl. conv bias)
        # o_ref:     (1, TILE_H, W2, Cout)         unpadded NHWC output tile
        x = x_ref[0]          # (tile_h, W2+2, Cin)
        hl = halo_ref[0]      # (2,      W2+2, Cin)

        # im2col slab (tile_h*W2, 9*Cin): tap-major (dy, dx), Cin-minor columns.
        # Built directly from the two input blocks (no full-tile VMEM re-stage).
        taps = []
        for dy in range(3):
            for dx in range(3):
                main = x[dy:, dx:dx + w2, :].reshape((tile_h - dy) * w2, cin)
                if dy == 0:
                    taps.append(main)
                else:
                    halo = hl[:dy, dx:dx + w2, :].reshape(dy * w2, cin)
                    taps.append(jnp.concatenate([main, halo], axis=0))
        slab = jnp.concatenate(taps, axis=-1)                      # (M, 9*Cin)

        # Single MXU dot (K = 9*Cin), f32 accumulation.
        acc = jnp.dot(slab, w_ref[...], preferred_element_type=jnp.float32)

        # Folded eval-mode BatchNorm affine + ReLU in f32 (full lane width).
        y = jnp.maximum(acc * scale_ref[...] + bias_ref[...], 0.0)

        # Drop the Cout padding before the store; NHWC, unpadded bytes only.
        o_ref[0] = y[:, :cout].reshape(tile_h, w2, cout).astype(o_ref.dtype)

    return kernel


# ---------------------------------------------------------------------------
# Generation-aware tile selection (lane/sublane-padding-aware VMEM accounting).
# ---------------------------------------------------------------------------
def _vmem_budget():
    try:
        cap = int(pltpu.get_tpu_info().vmem_capacity_bytes)
    except Exception:
        cap = 64 << 20        # conservative fallback: v7x per-TensorCore VMEM
    limit = max(min(cap - (16 << 20), 100 << 20), 24 << 20)
    return limit, int(limit * 0.6)


def _tile_vmem_bytes(tile_h, w2, cin, cout, cout_pad):
    w2p = w2 + 2
    cin_l = _round_up(cin, 128)      # bf16 lane padding of the Cin-minor layout
    w2p_s = _round_up(w2p, 16)       # bf16 sublane padding
    w2_s = _round_up(w2, 8)          # f32 sublane padding
    cout_l = _round_up(cout, 128)
    m = tile_h * w2
    in_blk = 2 * tile_h * w2p_s * cin_l * 2       # double-buffered main input block
    halo_blk = 2 * 2 * w2p_s * cin_l * 2          # double-buffered 2-row halo block
    out_blk = 2 * tile_h * w2_s * cout_l * 4      # double-buffered output block
    w_blk = 2 * _round_up(9 * cin, 16) * cout_pad * 2
    slab = m * _round_up(9 * cin, 128) * 2        # im2col value (vreg/VMEM spill)
    acc = 2 * m * cout_pad * 4                    # f32 accumulator + epilogue temps
    return in_blk + halo_blk + out_blk + w_blk + slab + acc


def _pick_tile_h(h2, w2, cin, cout, cout_pad, budget):
    cands = [t for t in range(2, h2 + 1, 2) if h2 % t == 0] or [h2]
    fits = [t for t in cands
            if _tile_vmem_bytes(t, w2, cin, cout, cout_pad) <= budget]
    if not fits:
        return min(cands)     # best effort for extreme shapes
    # Prefer >= 2 row tiles (pipelining / both TensorCores on v7x).
    multi = [t for t in fits if h2 // t >= 2] or fits
    # Prefer sublane-aligned rows and M panels that are multiples of 256.
    aligned = [t for t in multi if t % 8 == 0 and (t * w2) % 256 == 0]
    if aligned:
        return max(aligned)
    sub8 = [t for t in multi if t % 8 == 0]
    return max(sub8) if sub8 else max(multi)


# ---------------------------------------------------------------------------
# Public wrapper (NCHW in / NCHW out, like the PyTorch module).
# ---------------------------------------------------------------------------
@jax.jit
def upconv_block(x_nchw, w_hwio, conv_b, gamma, beta, run_mean, run_var,
                 eps=1e-5):
    # TODO(synk): training-mode BatchNorm (batch statistics + running-stat
    # update) is a stateful side effect; only eval-mode BN (running stats
    # folded into a per-channel scale/bias) is implemented here.
    # TODO(synk): for tiny Cin (e.g. 4) the channel-minor NHWC layout leaves
    # most lanes idle; production channel counts (>=32) amortize this.
    N, Cin, H, W = x_nchw.shape
    Cout = w_hwio.shape[-1]
    H2, W2 = 2 * H, 2 * W
    W2p = W2 + 2
    Cout_pad = _round_up(Cout, 128)

    # --- glue: bf16 bilinear x2 upsample (exact weights) + spatial zero pad --
    x = jnp.transpose(x_nchw, (0, 2, 3, 1)).astype(jnp.bfloat16)     # NHWC bf16
    up = _upsample2x_align_corners(x)                                # (N,H2,W2,Cin)
    xp = jnp.pad(up, ((0, 0), (1, 1), (1, 1), (0, 0)))               # (N,H2+2,W2p,Cin)

    # --- conv weights as one (9*Cin, Cout_pad) bf16 matrix -------------------
    w_mat = w_hwio.astype(jnp.float32).reshape(9 * Cin, Cout)
    w_mat = jnp.pad(w_mat, ((0, 0), (0, Cout_pad - Cout))).astype(jnp.bfloat16)

    # --- fold eval-mode BN + conv bias into f32 per-channel scale / bias -----
    inv_std = 1.0 / jnp.sqrt(run_var.astype(jnp.float32) + eps)
    scale = gamma.astype(jnp.float32) * inv_std
    bias = beta.astype(jnp.float32) + (conv_b.astype(jnp.float32)
                                       - run_mean.astype(jnp.float32)) * scale
    scale = jnp.pad(scale, (0, Cout_pad - Cout)).reshape(1, Cout_pad)
    bias = jnp.pad(bias, (0, Cout_pad - Cout)).reshape(1, Cout_pad)

    vmem_limit, budget = _vmem_budget()
    tile_h = _pick_tile_h(H2, W2, Cin, Cout, Cout_pad, budget)
    num_tiles = H2 // tile_h

    kernel = _make_kernel(tile_h, W2, Cin, Cout, Cout_pad)

    out_nhwc = pl.pallas_call(
        kernel,
        out_shape=jax.ShapeDtypeStruct((N, H2, W2, Cout), x_nchw.dtype),
        grid=(N, num_tiles),
        in_specs=[
            # main TILE_H rows of the padded, upsampled activation
            pl.BlockSpec((1, tile_h, W2p, Cin), lambda n, t: (n, t, 0, 0)),
            # 2-row bottom halo of the same array (size-2 blocks along padded H)
            pl.BlockSpec((1, 2, W2p, Cin),
                         lambda n, t: (n, (t + 1) * (tile_h // 2), 0, 0)),
            pl.BlockSpec((9 * Cin, Cout_pad), lambda n, t: (0, 0)),
            pl.BlockSpec((1, Cout_pad), lambda n, t: (0, 0)),
            pl.BlockSpec((1, Cout_pad), lambda n, t: (0, 0)),
        ],
        out_specs=pl.BlockSpec((1, tile_h, W2, Cout), lambda n, t: (n, t, 0, 0)),
        compiler_params=pltpu.CompilerParams(
            dimension_semantics=("parallel", "parallel"),
            vmem_limit_bytes=vmem_limit),
    )(xp, xp, w_mat, scale, bias)

    return jnp.transpose(out_nhwc, (0, 3, 1, 2))          # NHWC -> NCHW


# ---------------------------------------------------------------------------
# Plain-JAX f32 reference of the same math for a sanity check.
# ---------------------------------------------------------------------------
def _reference(x_nchw, w_hwio, conv_b, gamma, beta, run_mean, run_var, eps=1e-5):
    x = jnp.transpose(x_nchw, (0, 2, 3, 1)).astype(jnp.float32)
    up = _interp_axis_2x(x, axis=1)
    up = _interp_axis_2x(up, axis=2)
    z = jax.lax.conv_general_dilated(
        up, w_hwio, window_strides=(1, 1), padding='SAME',
        dimension_numbers=('NHWC', 'HWIO', 'NHWC')) + conv_b
    y = gamma * (z - run_mean) / jnp.sqrt(run_var + eps) + beta
    y = jnp.maximum(y, 0.0)
    return jnp.transpose(y, (0, 3, 1, 2))


if __name__ == "__main__":
    N, Cin, H, W = 2, 4, 16, 16
    Cout = 8

    key = jax.random.PRNGKey(0)
    k1, k2, k3, k4, k5, k6, k7 = jax.random.split(key, 7)
    x = jax.random.normal(k1, (N, Cin, H, W), jnp.float32)
    # Conv2d(in_channel=4, out_channel=8, kernel_size=3) weights, HWIO layout.
    w = jax.random.normal(k2, (3, 3, Cin, Cout), jnp.float32) * 0.1
    b = jax.random.normal(k3, (Cout,), jnp.float32) * 0.1
    # BatchNorm2d(out_channel) parameters / running statistics (eval mode).
    gamma = jax.random.uniform(k4, (Cout,), jnp.float32, minval=0.5, maxval=1.5)
    beta = jax.random.normal(k5, (Cout,), jnp.float32) * 0.1
    run_mean = jax.random.normal(k6, (Cout,), jnp.float32) * 0.1
    run_var = jax.random.uniform(k7, (Cout,), jnp.float32, minval=0.5, maxval=1.5)

    out = jax.block_until_ready(
        upconv_block(x, w, b, gamma, beta, run_mean, run_var))
    assert out.shape == (N, Cout, 2 * H, 2 * W), out.shape

    ref = jax.block_until_ready(
        _reference(x, w, b, gamma, beta, run_mean, run_var))
    assert jnp.all(jnp.isfinite(out))
    # Tolerance sized for the intentional bf16 activation/weight precision
    # (the PyTorch module is f32-exact).
    assert jnp.allclose(out, ref, atol=7.5e-2, rtol=7.5e-2), \
        float(jnp.max(jnp.abs(out - ref)))

    print("KERNEL_OK")
</pallas_src>

<mosaic_0001>
module attributes {stable_mosaic.version = 11 : i64} {
  func.func @kernel(%arg0: i32, %arg1: i32, %arg2: memref<1x16x34x4xbf16, #tpu.memory_space<vmem>>, %arg3: memref<1x2x34x4xbf16, #tpu.memory_space<vmem>>, %arg4: memref<36x128xbf16, #tpu.memory_space<vmem>>, %arg5: memref<1x128xf32, #tpu.memory_space<vmem>>, %arg6: memref<1x128xf32, #tpu.memory_space<vmem>>, %arg7: memref<1x16x32x8xf32, #tpu.memory_space<vmem>>) attributes {dimension_semantics = [#tpu.dimension_semantics<parallel>, #tpu.dimension_semantics<parallel>], iteration_bounds = array<i64: 2, 2>, scalar_prefetch = 0 : i64, scratch_operands = 0 : i64, tpu.core_type = #tpu.core_type<tc>, window_params = [{transform_indices = @transform_0, window_bounds = array<i64: 1, 16, 34, 4>}, {transform_indices = @transform_1, window_bounds = array<i64: 1, 2, 34, 4>}, {pipeline_mode = #tpu.pipeline_mode<synchronous>, transform_indices = @transform_2, window_bounds = array<i64: 36, 128>}, {pipeline_mode = #tpu.pipeline_mode<synchronous>, transform_indices = @transform_3, window_bounds = array<i64: 1, 128>}, {pipeline_mode = #tpu.pipeline_mode<synchronous>, transform_indices = @transform_4, window_bounds = array<i64: 1, 128>}, {transform_indices = @transform_5, window_bounds = array<i64: 1, 16, 32, 8>}]} {
    %c0 = arith.constant 0 : index
    %c0_0 = arith.constant 0 : index
    %c0_1 = arith.constant 0 : index
    %c0_2 = arith.constant 0 : index
    %0 = vector.load %arg2[%c0, %c0_0, %c0_1, %c0_2] : memref<1x16x34x4xbf16, #tpu.memory_space<vmem>>, vector<1x16x34x4xbf16>
    %1 = vector.shape_cast %0 : vector<1x16x34x4xbf16> to vector<16x34x4xbf16>
    %c0_3 = arith.constant 0 : index
    %c0_4 = arith.constant 0 : index
    %c0_5 = arith.constant 0 : index
    %c0_6 = arith.constant 0 : index
    %2 = vector.load %arg3[%c0_3, %c0_4, %c0_5, %c0_6] : memref<1x2x34x4xbf16, #tpu.memory_space<vmem>>, vector<1x2x34x4xbf16>
    %3 = vector.shape_cast %2 : vector<1x2x34x4xbf16> to vector<2x34x4xbf16>
    %4 = vector.extract_strided_slice %1 {offsets = [0, 0, 0], sizes = [16, 32, 4], strides = [1, 1, 1]} : vector<16x34x4xbf16> to vector<16x32x4xbf16>
    %5 = vector.shape_cast %4 : vector<16x32x4xbf16> to vector<512x4xbf16>
    %6 = vector.extract_strided_slice %1 {offsets = [0, 1, 0], sizes = [16, 32, 4], strides = [1, 1, 1]} : vector<16x34x4xbf16> to vector<16x32x4xbf16>
    %7 = vector.shape_cast %6 : vector<16x32x4xbf16> to vector<512x4xbf16>
    %8 = vector.extract_strided_slice %1 {offsets = [0, 2, 0], sizes = [16, 32, 4], strides = [1, 1, 1]} : vector<16x34x4xbf16> to vector<16x32x4xbf16>
    %9 = vector.shape_cast %8 : vector<16x32x4xbf16> to vector<512x4xbf16>
    %10 = vector.extract_strided_slice %1 {offsets = [1, 0, 0], sizes = [15, 32, 4], strides = [1, 1, 1]} : vector<16x34x4xbf16> to vector<15x32x4xbf16>
    %11 = vector.shape_cast %10 : vector<15x32x4xbf16> to vector<480x4xbf16>
    %12 = vector.extract_strided_slice %3 {offsets = [0, 0, 0], sizes = [1, 32, 4], strides = [1, 1, 1]} : vector<2x34x4xbf16> to vector<1x32x4xbf16>
    %13 = vector.shape_cast %12 : vector<1x32x4xbf16> to vector<32x4xbf16>
    %14 = tpu.concatenate %11, %13 in 0 : vector<480x4xbf16>, vector<32x4xbf16> -> vector<512x4xbf16>
    %15 = vector.extract_strided_slice %1 {offsets = [1, 1, 0], sizes = [15, 32, 4], strides = [1, 1, 1]} : vector<16x34x4xbf16> to vector<15x32x4xbf16>
    %16 = vector.shape_cast %15 : vector<15x32x4xbf16> to vector<480x4xbf16>
    %17 = vector.extract_strided_slice %3 {offsets = [0, 1, 0], sizes = [1, 32, 4], strides = [1, 1, 1]} : vector<2x34x4xbf16> to vector<1x32x4xbf16>
    %18 = vector.shape_cast %17 : vector<1x32x4xbf16> to vector<32x4xbf16>
    %19 = tpu.concatenate %16, %18 in 0 : vector<480x4xbf16>, vector<32x4xbf16> -> vector<512x4xbf16>
    %20 = vector.extract_strided_slice %1 {offsets = [1, 2, 0], sizes = [15, 32, 4], strides = [1, 1, 1]} : vector<16x34x4xbf16> to vector<15x32x4xbf16>
    %21 = vector.shape_cast %20 : vector<15x32x4xbf16> to vector<480x4xbf16>
    %22 = vector.extract_strided_slice %3 {offsets = [0, 2, 0], sizes = [1, 32, 4], strides = [1, 1, 1]} : vector<2x34x4xbf16> to vector<1x32x4xbf16>
    %23 = vector.shape_cast %22 : vector<1x32x4xbf16> to vector<32x4xbf16>
    %24 = tpu.concatenate %21, %23 in 0 : vector<480x4xbf16>, vector<32x4xbf16> -> vector<512x4xbf16>
    %25 = vector.extract_strided_slice %1 {offsets = [2, 0, 0], sizes = [14, 32, 4], strides = [1, 1, 1]} : vector<16x34x4xbf16> to vector<14x32x4xbf16>
    %26 = vector.shape_cast %25 : vector<14x32x4xbf16> to vector<448x4xbf16>
    %27 = vector.extract_strided_slice %3 {offsets = [0, 0, 0], sizes = [2, 32, 4], strides = [1, 1, 1]} : vector<2x34x4xbf16> to vector<2x32x4xbf16>
    %28 = vector.shape_cast %27 : vector<2x32x4xbf16> to vector<64x4xbf16>
    %29 = tpu.concatenate %26, %28 in 0 : vector<448x4xbf16>, vector<64x4xbf16> -> vector<512x4xbf16>
    %30 = vector.extract_strided_slice %1 {offsets = [2, 1, 0], sizes = [14, 32, 4], strides = [1, 1, 1]} : vector<16x34x4xbf16> to vector<14x32x4xbf16>
    %31 = vector.shape_cast %30 : vector<14x32x4xbf16> to vector<448x4xbf16>
    %32 = vector.extract_strided_slice %3 {offsets = [0, 1, 0], sizes = [2, 32, 4], strides = [1, 1, 1]} : vector<2x34x4xbf16> to vector<2x32x4xbf16>
    %33 = vector.shape_cast %32 : vector<2x32x4xbf16> to vector<64x4xbf16>
    %34 = tpu.concatenate %31, %33 in 0 : vector<448x4xbf16>, vector<64x4xbf16> -> vector<512x4xbf16>
    %35 = vector.extract_strided_slice %1 {offsets = [2, 2, 0], sizes = [14, 32, 4], strides = [1, 1, 1]} : vector<16x34x4xbf16> to vector<14x32x4xbf16>
    %36 = vector.shape_cast %35 : vector<14x32x4xbf16> to vector<448x4xbf16>
    %37 = vector.extract_strided_slice %3 {offsets = [0, 2, 0], sizes = [2, 32, 4], strides = [1, 1, 1]} : vector<2x34x4xbf16> to vector<2x32x4xbf16>
    %38 = vector.shape_cast %37 : vector<2x32x4xbf16> to vector<64x4xbf16>
    %39 = tpu.concatenate %36, %38 in 0 : vector<448x4xbf16>, vector<64x4xbf16> -> vector<512x4xbf16>
    %40 = tpu.concatenate %5, %7, %9, %14, %19, %24, %29, %34, %39 in 1 : vector<512x4xbf16>, vector<512x4xbf16>, vector<512x4xbf16>, vector<512x4xbf16>, vector<512x4xbf16>, vector<512x4xbf16>, vector<512x4xbf16>, vector<512x4xbf16>, vector<512x4xbf16> -> vector<512x36xbf16>
    %c0_7 = arith.constant 0 : index
    %c0_8 = arith.constant 0 : index
    %41 = vector.load %arg4[%c0_7, %c0_8] : memref<36x128xbf16, #tpu.memory_space<vmem>>, vector<36x128xbf16>
    %cst = arith.constant dense<0.000000e+00> : vector<512x128xf32>
    %42 = tpu.matmul %40, %41, %cst {dimension_numbers = #tpu.dot_dimension_numbers<[1], [0], [0], [1], [0, 0, 1, 1], [], []>} : vector<512x36xbf16>, vector<36x128xbf16>, vector<512x128xf32> -> vector<512x128xf32>
    %c0_9 = arith.constant 0 : index
    %c0_10 = arith.constant 0 : index
    %43 = vector.load %arg5[%c0_9, %c0_10] : memref<1x128xf32, #tpu.memory_space<vmem>>, vector<1x128xf32>
    %44 = vector.broadcast %43 : vector<1x128xf32> to vector<512x128xf32>
    %45 = arith.mulf %42, %44 : vector<512x128xf32>
    %c0_11 = arith.constant 0 : index
    %c0_12 = arith.constant 0 : index
    %46 = vector.load %arg6[%c0_11, %c0_12] : memref<1x128xf32, #tpu.memory_space<vmem>>, vector<1x128xf32>
    %47 = vector.broadcast %46 : vector<1x128xf32> to vector<512x128xf32>
    %48 = arith.addf %45, %47 : vector<512x128xf32>
    %cst_13 = arith.constant 0.000000e+00 : f32
    %49 = vector.broadcast %cst_13 : f32 to vector<512x128xf32>
    %50 = arith.maximumf %48, %49 : vector<512x128xf32>
    %51 = vector.extract_strided_slice %50 {offsets = [0, 0], sizes = [512, 8], strides = [1, 1]} : vector<512x128xf32> to vector<512x8xf32>
    %52 = vector.shape_cast %51 : vector<512x8xf32> to vector<16x32x8xf32>
    %c0_14 = arith.constant 0 : index
    %c0_15 = arith.constant 0 : index
    %c0_16 = arith.constant 0 : index
    %c0_17 = arith.constant 0 : index
    %53 = vector.load %arg7[%c0_14, %c0_15, %c0_16, %c0_17] : memref<1x16x32x8xf32, #tpu.memory_space<vmem>>, vector<1x16x32x8xf32>
    %54 = vector.shape_cast %53 : vector<1x16x32x8xf32> to vector<16x32x8xf32>
    %55 = vector.shape_cast %52 : vector<16x32x8xf32> to vector<1x16x32x8xf32>
    tpu.vector_store %arg7[%c0_14, %c0_15, %c0_16, %c0_17], %55 {strides = array<i32>} : memref<1x16x32x8xf32, #tpu.memory_space<vmem>>, vector<1x16x32x8xf32>,
    return
  }
  func.func @transform_0(%arg0: i32, %arg1: i32) -> (i32, i32, i32, i32) {
    %c0_i32 = arith.constant 0 : i32
    %c0_i32_0 = arith.constant 0 : i32
    %c0_i32_1 = arith.constant 0 : i32
    return %arg0, %arg1, %c0_i32, %c0_i32_0 : i32, i32, i32, i32
  }
  func.func @transform_1(%arg0: i32, %arg1: i32) -> (i32, i32, i32, i32) {
    %c1_i32 = arith.constant 1 : i32
    %0 = arith.addi %arg1, %c1_i32 : i32
    %c8_i32 = arith.constant 8 : i32
    %1 = arith.muli %0, %c8_i32 : i32
    %c0_i32 = arith.constant 0 : i32
    %c0_i32_0 = arith.constant 0 : i32
    %c0_i32_1 = arith.constant 0 : i32
    return %arg0, %1, %c0_i32, %c0_i32_0 : i32, i32, i32, i32
  }
  func.func @transform_2(%arg0: i32, %arg1: i32) -> (i32, i32) {
    %c0_i32 = arith.constant 0 : i32
    %c0_i32_0 = arith.constant 0 : i32
    %c0_i32_1 = arith.constant 0 : i32
    return %c0_i32, %c0_i32_0 : i32, i32
  }
  func.func @transform_3(%arg0: i32, %arg1: i32) -> (i32, i32) {
    %c0_i32 = arith.constant 0 : i32
    %c0_i32_0 = arith.constant 0 : i32
    %c0_i32_1 = arith.constant 0 : i32
    return %c0_i32, %c0_i32_0 : i32, i32
  }
  func.func @transform_4(%arg0: i32, %arg1: i32) -> (i32, i32) {
    %c0_i32 = arith.constant 0 : i32
    %c0_i32_0 = arith.constant 0 : i32
    %c0_i32_1 = arith.constant 0 : i32
    return %c0_i32, %c0_i32_0 : i32, i32
  }
  func.func @transform_5(%arg0: i32, %arg1: i32) -> (i32, i32, i32, i32) {
    %c0_i32 = arith.constant 0 : i32
    %c0_i32_0 = arith.constant 0 : i32
    %c0_i32_1 = arith.constant 0 : i32
    return %arg0, %arg1, %c0_i32, %c0_i32_0 : i32, i32, i32, i32
  }
}

</mosaic_0001>

<llo_original>
// kernel: upconv_block.1
$region0: #{upconv_block.1}
  #allocation0 [shape = 'u32[]', space=smem, size = 0x4, offset = 0x4, fixed_abs, tag = 'smem constant byte address 0x4 - core index']
  #allocation1 [shape = 'u32[144,128]{1,0:T(1,128)}', space=vmem, size = 0x12000, scoped, tag = 'internal scratch']
  %s0 = inlined_call_operand.vmem [shape: bf16[2,34,34,4], index: 0, kind: input, shape index: {}, may-alias: {0,1}]
  %s1 = inlined_call_operand.vmem [shape: bf16[2,34,34,4], index: 1, kind: input, shape index: {}, may-alias: {0,1}]
  %s2 = inlined_call_operand.vmem [shape: bf16[36,128], index: 2, kind: input, shape index: {}]
  %s3 = inlined_call_operand.vmem [shape: f32[1,128], index: 3, kind: input, shape index: {}]
  %s4 = inlined_call_operand.vmem [shape: f32[1,128], index: 4, kind: input, shape index: {}]
  %s5 = inlined_call_operand.vmem [shape: f32[2,32,32,8], index: 5, kind: output, shape index: {}]
  %s6 = sld [smem:[#allocation0]]
  $region53: #{upconv_block.1} parent=0
    _
  %s8 = ssub.s32 1, %s6
  %s9 = scalar_select 0, %s8, %s6
  loop: start=0, step=1, limit=6
  $region2: #{upconv_block.1} parent=0 // loop_pre_header
    _
  $region3: #{upconv_block.1} parent=0 // loop_header
    %s11 = sphi 0, %s15
    %p12 = scmp.ge.s32.totalorder %s11, 6
    %s18 = sphi 0, %s30
    %s19 = sphi 0, %s26
    %s20 = sphi 0, %s18
    %s21 = sphi 0, %s19
    %s22 = sphi 0, %s20
    %s23 = sphi 0, %s21
    %s35 = sphi 0, %s37
    %s38 = sphi 0, %s35
    %s39 = sphi 0, %s38
    %s55 = sphi 0, %s39
    %s67 = sphi 0, %s69
    %s70 = sphi 0, %s67
    %s71 = sphi 0, %s70
    %s87 = sphi 0, %s71
    %s91 = sphi 0, %s91
    %s93 = sphi 0, %s91
    %s94 = sphi 0, %s93
    %s108 = sphi 0, %s94
    %s112 = sphi 0, %s112
    %s114 = sphi 0, %s112
    %s115 = sphi 0, %s114
    %s129 = sphi 0, %s115
    %s133 = sphi 0, %s133
    %s135 = sphi 0, %s133
    %s136 = sphi 0, %s135
    %s150 = sphi 0, %s136
    %s158 = sphi 0, %s160
    %s161 = sphi 0, %s158
    %s162 = sphi 0, %s161
    %s178 = sphi 0, %s162
  $region4: #{upconv_block.1} parent=0 // loop_header_branch
    %14 = sbr.rel (%p12) target = $region8
  $region5: #{upconv_block.1} parent=0 // loop_body
    %s16 = ssub.s32 %s11, 1
    %s17 = ssub.s32 %s11, 2
    %s24 = sadd.s32 1, %s19
    %p25 = scmp.ge.s32.totalorder %s24, 2
    %s26 = scalar_select %p25, 0, %s24
    %s27 = sadd.s32 1, %s18
    %s28 = scalar_select %p25, %s27, %s18
    %p29 = scmp.ge.s32.totalorder %s28, 2
    %s30 = scalar_select %p29, 0, %s28
    %s31 = ssub.s32 %s18, %s30
    %s32 = ssub.s32 %s19, %s26
    %s33 = sor.u32 %s31, %s32
    %p34 = scmp.eq.s32.totalorder %s33, 0
    %s36 = sadd.s32 %s35, 1
    %s37 = scalar_select %p34, %s35, %s36
    %p40 = pneg %p34
    %p41 = scmp.eq.s32.totalorder %s11, 3
    %p42 = por %p40, %p41
    %p43 = scmp.ne.s32.totalorder %s35, %s38
    %p44 = scmp.eq.s32.totalorder %s11, 0
    %p45 = por %p43, %p44
    %p46 = scmp.ne.s32.totalorder %s35, %s38
    %p47 = scmp.eq.s32.totalorder %s16, 3
    %p48 = por %p46, %p47
    %p49 = scmp.ne.s32.totalorder %s38, %s39
    %p50 = scmp.eq.s32.totalorder %s16, 0
    %p51 = por %p49, %p50
    %p52 = scmp.ne.s32.totalorder %s38, %s39
    %p53 = scmp.eq.s32.totalorder %s17, 3
    %p54 = por %p52, %p53
    %p56 = scmp.ne.s32.totalorder %s39, %s55
    %p57 = scmp.eq.s32.totalorder %s17, 0
    %p58 = por %p56, %p57
    %s59 = sadd.s32 %s19, 1
    %s60 = smul.u32 %s59, 8
    %s61 = sadd.s32 %s26, 1
    %s62 = smul.u32 %s61, 8
    %s63 = ssub.s32 %s18, %s30
    %s64 = ssub.s32 %s60, %s62
    %s65 = sor.u32 %s63, %s64
    %p66 = scmp.eq.s32.totalorder %s65, 0
    %s68 = sadd.s32 %s67, 1
    %s69 = scalar_select %p66, %s67, %s68
    %p72 = pneg %p66
    %p73 = scmp.eq.s32.totalorder %s11, 3
    %p74 = por %p72, %p73
    %p75 = scmp.ne.s32.totalorder %s67, %s70
    %p76 = scmp.eq.s32.totalorder %s11, 0
    %p77 = por %p75, %p76
    %p78 = scmp.ne.s32.totalorder %s67, %s70
    %p79 = scmp.eq.s32.totalorder %s16, 3
    %p80 = por %p78, %p79
    %p81 = scmp.ne.s32.totalorder %s70, %s71
    %p82 = scmp.eq.s32.totalorder %s16, 0
    %p83 = por %p81, %p82
    %p84 = scmp.ne.s32.totalorder %s70, %s71
    %p85 = scmp.eq.s32.totalorder %s17, 3
    %p86 = por %p84, %p85
    %p88 = scmp.ne.s32.totalorder %s71, %s87
    %p89 = scmp.eq.s32.totalorder %s17, 0
    %p90 = por %p88, %p89
    %s92 = sadd.s32 %s91, 1
    %p95 = scmp.eq.s32.totalorder %s11, 3
    %p96 = scmp.ne.s32.totalorder %s91, %s93
    %p97 = scmp.eq.s32.totalorder %s11, 0
    %p98 = por %p96, %p97
    %p99 = scmp.ne.s32.totalorder %s91, %s93
    %p100 = scmp.eq.s32.totalorder %s16, 3
    %p101 = por %p99, %p100
    %p102 = scmp.ne.s32.totalorder %s93, %s94
    %p103 = scmp.eq.s32.totalorder %s16, 0
    %p104 = por %p102, %p103
    %p105 = scmp.ne.s32.totalorder %s93, %s94
    %p106 = scmp.eq.s32.totalorder %s17, 3
    %p107 = por %p105, %p106
    %p109 = scmp.ne.s32.totalorder %s94, %s108
    %p110 = scmp.eq.s32.totalorder %s17, 0
    %p111 = por %p109, %p110
    %s113 = sadd.s32 %s112, 1
    %p116 = scmp.eq.s32.totalorder %s11, 3
    %p117 = scmp.ne.s32.totalorder %s112, %s114
    %p118 = scmp.eq.s32.totalorder %s11, 0
    %p119 = por %p117, %p118
    %p120 = scmp.ne.s32.totalorder %s112, %s114
    %p121 = scmp.eq.s32.totalorder %s16, 3
    %p122 = por %p120, %p121
    %p123 = scmp.ne.s32.totalorder %s114, %s115
    %p124 = scmp.eq.s32.totalorder %s16, 0
    %p125 = por %p123, %p124
    %p126 = scmp.ne.s32.totalorder %s114, %s115
    %p127 = scmp.eq.s32.totalorder %s17, 3
    %p128 = por %p126, %p127
    %p130 = scmp.ne.s32.totalorder %s115, %s129
    %p131 = scmp.eq.s32.totalorder %s17, 0
    %p132 = por %p130, %p131
    %s134 = sadd.s32 %s133, 1
    %p137 = scmp.eq.s32.totalorder %s11, 3
    %p138 = scmp.ne.s32.totalorder %s133, %s135
    %p139 = scmp.eq.s32.totalorder %s11, 0
    %p140 = por %p138, %p139
    %p141 = scmp.ne.s32.totalorder %s133, %s135
    %p142 = scmp.eq.s32.totalorder %s16, 3
    %p143 = por %p141, %p142
    %p144 = scmp.ne.s32.totalorder %s135, %s136
    %p145 = scmp.eq.s32.totalorder %s16, 0
    %p146 = por %p144, %p145
    %p147 = scmp.ne.s32.totalorder %s135, %s136
    %p148 = scmp.eq.s32.totalorder %s17, 3
    %p149 = por %p147, %p148
    %p151 = scmp.ne.s32.totalorder %s136, %s150
    %p152 = scmp.eq.s32.totalorder %s17, 0
    %p153 = por %p151, %p152
    %s154 = ssub.s32 %s18, %s30
    %s155 = ssub.s32 %s19, %s26
    %s156 = sor.u32 %s154, %s155
    %p157 = scmp.eq.s32.totalorder %s156, 0
    %s159 = sadd.s32 %s158, 1
    %s160 = scalar_select %p157, %s158, %s159
    %p163 = pneg %p157
    %p164 = scmp.eq.s32.totalorder %s11, 3
    %p165 = por %p163, %p164
    %p166 = scmp.ne.s32.totalorder %s158, %s161
    %p167 = scmp.eq.s32.totalorder %s11, 0
    %p168 = por %p166, %p167
    %p169 = scmp.ne.s32.totalorder %s158, %s161
    %p170 = scmp.eq.s32.totalorder %s16, 3
    %p171 = por %p169, %p170
    %p172 = scmp.ne.s32.totalorder %s161, %s162
    %p173 = scmp.eq.s32.totalorder %s16, 0
    %p174 = por %p172, %p173
    %p175 = scmp.ne.s32.totalorder %s161, %s162
    %p176 = scmp.eq.s32.totalorder %s17, 3
    %p177 = por %p175, %p176
    %p179 = scmp.ne.s32.totalorder %s162, %s178
    %p180 = scmp.eq.s32.totalorder %s17, 0
    %p181 = por %p179, %p180
    %p182 = scmp.le.s32.totalorder 1, %s11
    %p183 = scmp.lt.s32.totalorder %s11, 5
    %p184 = pnand %p182, %p183
    %p185 = pneg %p184
    // Predicated region
    $region9: #{upconv_block.1} parent=5 // pred_check
      _
    $region10: #{upconv_block.1} parent=5 // pred_check_branch
      %187 = sbr.rel (%p184) target = $region12
    $region11: #{upconv_block.1} parent=5 // pred_region
      %s188 = ssub.s32 %s11, 1
      // Predicated region
      $region13: #{upconv_block.1} parent=11 // pred_check
        %p189 = pneg %p104
      $region14: #{upconv_block.1} parent=11 // pred_check_branch
        %191 = sbr.rel (%p189) target = $region16
      $region15: #{upconv_block.1} parent=11 // pred_region
        _
      $region16: #{upconv_block.1} parent=11 // pred_fallthru
        _
      // Predicated region
      $region17: #{upconv_block.1} parent=11 // pred_check
        %p192 = pneg %p125
      $region18: #{upconv_block.1} parent=11 // pred_check_branch
        %194 = sbr.rel (%p192) target = $region20
      $region19: #{upconv_block.1} parent=11 // pred_region
        _
      $region20: #{upconv_block.1} parent=11 // pred_fallthru
        _
      // Predicated region
      $region21: #{upconv_block.1} parent=11 // pred_check
        %p195 = pneg %p146
      $region22: #{upconv_block.1} parent=11 // pred_check_branch
        %197 = sbr.rel (%p195) target = $region24
      $region23: #{upconv_block.1} parent=11 // pred_region
        _
      $region24: #{upconv_block.1} parent=11 // pred_fallthru
        _
    $region12: #{upconv_block.1} parent=5 // pred_fallthru
      _
    %p198 = scmp.lt.s32.totalorder %s11, 4
    // Predicated region
    $region25: #{upconv_block.1} parent=5 // pred_check
      %p199 = pneg %p198
    $region26: #{upconv_block.1} parent=5 // pred_check_branch
      %201 = sbr.rel (%p199) target = $region28
    $region27: #{upconv_block.1} parent=5 // pred_region
      // Predicated region
      $region29: #{upconv_block.1} parent=27 // pred_check
        %p202 = pneg %p45
      $region30: #{upconv_block.1} parent=27 // pred_check_branch
        %204 = sbr.rel (%p202) target = $region32
      $region31: #{upconv_block.1} parent=27 // pred_region
        %s205 = smul.u32 16, %s19
        %s206 = ssub.s32 34, %s205
        %p207 = scmp.lt.s32.totalorder %s206, 16
        %s208 = scalar_select %p207, %s206, 16
        %s209 = smul.u32 64, %s208
        %s210 = smul.u32 %s209, 5
        %p211 = scmp.lt.s32.totalorder %s18, 1
        %s212 = scalar_select %p211, %s18, 1
        %p213 = scmp.lt.s32.totalorder %s205, 33
        %s214 = scalar_select %p213, %s205, 33
        %s215 = smul.addr %s214, 5
        %s216 = smul.addr %s212, 170
        %s217 = sadd.s32 %s215, %s216
        %s218 = smul.addr %s217, 4
        %s219 = scalar_lea.vmem %s0, %s218
        %s220 = smul.u32 16, %s19
        %s221 = ssub.s32 34, %s220
        %p222 = scmp.lt.s32.totalorder %s221, 16
        %s223 = scalar_select %p222, %s221, 16
        %s224 = smul.u32 64, %s223
        %s225 = smul.u32 %s224, 5
      $region32: #{upconv_block.1} parent=27 // pred_fallthru
        _
      // Predicated region
      $region33: #{upconv_block.1} parent=27 // pred_check
        %p226 = pneg %p77
      $region34: #{upconv_block.1} parent=27 // pred_check_branch
        %228 = sbr.rel (%p226) target = $region36
      $region35: #{upconv_block.1} parent=27 // pred_region
        %s229 = sadd.s32 %s19, 1
        %s230 = smul.u32 %s229, 8
        %s231 = smul.u32 2, %s230
        %p232 = scmp.lt.s32.totalorder %s18, 1
        %s233 = scalar_select %p232, %s18, 1
        %p234 = scmp.lt.s32.totalorder %s231, 33
        %s235 = scalar_select %p234, %s231, 33
        %s236 = smul.addr %s235, 5
        %s237 = smul.addr %s233, 170
        %s238 = sadd.s32 %s236, %s237
        %s239 = smul.addr %s238, 4
        %s240 = scalar_lea.vmem %s1, %s239
        %s241 = sadd.s32 %s19, 1
        %s242 = smul.u32 %s241, 8
        %s243 = smul.u32 2, %s242
      $region36: #{upconv_block.1} parent=27 // pred_fallthru
        _
    $region28: #{upconv_block.1} parent=5 // pred_fallthru
      _
    %p244 = scmp.le.s32.totalorder 1, %s11
    %p245 = scmp.lt.s32.totalorder %s11, 5
    %p246 = pnand %p244, %p245
    %p247 = pneg %p246
    // Predicated region
    $region37: #{upconv_block.1} parent=5 // pred_check
      _
    $region38: #{upconv_block.1} parent=5 // pred_check_branch
      %249 = sbr.rel (%p246) target = $region40
    $region39: #{upconv_block.1} parent=5 // pred_region
      %s250 = ssub.s32 %s11, 1
      %s251 = smul.u32 16, %s21
      %s252 = ssub.s32 34, %s251
      %p253 = scmp.lt.s32.totalorder %s252, 16
      %s254 = scalar_select %p253, %s252, 16
      %s255 = smul.u32 64, %s254
      %s256 = smul.u32 %s255, 5
      %p257 = scmp.lt.s32.totalorder %s20, 1
      %s258 = scalar_select %p257, %s20, 1
      %p259 = scmp.lt.s32.totalorder %s251, 33
      %s260 = scalar_select %p259, %s251, 33
      %s261 = smul.addr %s260, 5
      %s262 = smul.addr %s258, 170
      %s263 = sadd.s32 %s261, %s262
      %s264 = smul.addr %s263, 4
      %s265 = scalar_lea.vmem %s0, %s264
      %p266 = pneg %p51
      %p267 = pneg %p48
      %s268 = sadd.s32 %s21, 1
      %s269 = smul.u32 %s268, 8
      %s270 = smul.u32 2, %s269
      %p271 = scmp.lt.s32.totalorder %s20, 1
      %s272 = scalar_select %p271, %s20, 1
      %p273 = scmp.lt.s32.totalorder %s270, 33
      %s274 = scalar_select %p273, %s270, 33
      %s275 = smul.addr %s274, 5
      %s276 = smul.addr %s272, 170
      %s277 = sadd.s32 %s275, %s276
      %s278 = smul.addr %s277, 4
      %s279 = scalar_lea.vmem %s1, %s278
      %p280 = pneg %p83
      %p281 = pneg %p80
      %p282 = pneg %p104
      %p283 = pneg %p101
      %p284 = pneg %p125
      %p285 = pneg %p122
      %p286 = pneg %p146
      %p287 = pneg %p143
      %p288 = pneg %p174
      %p289 = pneg %p171
      %s290 = smul.u32 16, %s21
      %p291 = scmp.lt.s32.totalorder %s20, 1
      %s292 = scalar_select %p291, %s20, 1
      %p293 = scmp.lt.s32.totalorder %s290, 31
      %s294 = scalar_select %p293, %s290, 31
      %s295 = smul.addr %s294, 4
      %s296 = smul.addr %s292, 128
      %s297 = sadd.s32 %s295, %s296
      %s298 = smul.addr %s297, 8
      %s299 = scalar_lea.vmem %s5, %s298
      %s300 = smul.u32 16, %s21
      %s301 = ssub.s32 34, %s300
      %p302 = scmp.lt.s32.totalorder %s301, 16
      %s303 = scalar_select %p302, %s301, 16
      %s304 = smul.u32 64, %s303
      %s305 = smul.u32 %s304, 5
      %p306 = scmp.lt.s32.totalorder %s20, 1
      %s307 = scalar_select %p306, %s20, 1
      %p308 = scmp.lt.s32.totalorder %s300, 33
      %s309 = scalar_select %p308, %s300, 33
      %s310 = smul.addr %s309, 5
      %s311 = smul.addr %s307, 170
      %s312 = sadd.s32 %s310, %s311
      %s313 = smul.addr %s312, 4
      %s314 = scalar_lea.vmem %s0, %s313
      %s315 = smul.u32 16, %s21
      %s316 = ssub.s32 34, %s315
      %p317 = scmp.lt.s32.totalorder %s316, 16
      %s318 = scalar_select %p317, %s316, 16
      %s319 = smul.u32 64, %s318
      %s320 = smul.u32 %s319, 5
      %s321 = sadd.s32 %s21, 1
      %s322 = smul.u32 %s321, 8
      %s323 = smul.u32 2, %s322
      %p324 = scmp.lt.s32.totalorder %s20, 1
      %s325 = scalar_select %p324, %s20, 1
      %p326 = scmp.lt.s32.totalorder %s323, 33
      %s327 = scalar_select %p326, %s323, 33
      %s328 = smul.addr %s327, 5
      %s329 = smul.addr %s325, 170
      %s330 = sadd.s32 %s328, %s329
      %s331 = smul.addr %s330, 4
      %s332 = scalar_lea.vmem %s1, %s331
      %s333 = sadd.s32 %s21, 1
      %s334 = smul.u32 %s333, 8
      %s335 = smul.u32 2, %s334
      %s336 = smul.u32 16, %s21
      %p337 = scmp.lt.s32.totalorder %s20, 1
      %s338 = scalar_select %p337, %s20, 1
      %p339 = scmp.lt.s32.totalorder %s336, 31
      %s340 = scalar_select %p339, %s336, 31
      %s341 = smul.addr %s340, 4
      %s342 = smul.addr %s338, 128
      %s343 = sadd.s32 %s341, %s342
      %s344 = smul.addr %s343, 8
      %s345 = scalar_lea.vmem %s5, %s344
      %s346 = smul.u32 16, %s21
      %v348 = vld [vmem:[%s314] sm:$0xf]
      %v349 = vld [vmem:[%s314 + $0x4] sm:$0xf]
      %v350 = vld [vmem:[%s314 + $0x8] sm:$0xf]
      %v351 = vld [vmem:[%s314 + $0xc] sm:$0xf]
      %v352 = vld [vmem:[%s314 + $0x10] sm:$0x1]
      %v353 = vld [vmem:[%s314 + $0x14] sm:$0xf]
      %v354 = vld [vmem:[%s314 + $0x18] sm:$0xf]
      %v355 = vld [vmem:[%s314 + $0x1c] sm:$0xf]
      %v356 = vld [vmem:[%s314 + $0x20] sm:$0xf]
      %v357 = vld [vmem:[%s314 + $0x24] sm:$0x1]
      %v358 = vld [vmem:[%s314 + $0x28] sm:$0xf]
      %v359 = vld [vmem:[%s314 + $0x2c] sm:$0xf]
      %v360 = vld [vmem:[%s314 + $0x30] sm:$0xf]
      %v361 = vld [vmem:[%s314 + $0x34] sm:$0xf]
      %v362 = vld [vmem:[%s314 + $0x38] sm:$0x1]
      %v363 = vld [vmem:[%s314 + $0x3c] sm:$0xf]
      %v364 = vld [vmem:[%s314 + $0x40] sm:$0xf]
      %v365 = vld [vmem:[%s314 + $0x44] sm:$0xf]
      %v366 = vld [vmem:[%s314 + $0x48] sm:$0xf]
      %v367 = vld [vmem:[%s314 + $0x4c] sm:$0x1]
      %v368 = vld [vmem:[%s314 + $0x50] sm:$0xf]
      %v369 = vld [vmem:[%s314 + $0x54] sm:$0xf]
      %v370 = vld [vmem:[%s314 + $0x58] sm:$0xf]
      %v371 = vld [vmem:[%s314 + $0x5c] sm:$0xf]
      %v372 = vld [vmem:[%s314 + $0x60] sm:$0x1]
      %v373 = vld [vmem:[%s314 + $0x64] sm:$0xf]
      %v374 = vld [vmem:[%s314 + $0x68] sm:$0xf]
      %v375 = vld [vmem:[%s314 + $0x6c] sm:$0xf]
      %v376 = vld [vmem:[%s314 + $0x70] sm:$0xf]
      %v377 = vld [vmem:[%s314 + $0x74] sm:$0x1]
      %v378 = vld [vmem:[%s314 + $0x78] sm:$0xf]
      %v379 = vld [vmem:[%s314 + $0x7c] sm:$0xf]
      %v380 = vld [vmem:[%s314 + $0x80] sm:$0xf]
      %v381 = vld [vmem:[%s314 + $0x84] sm:$0xf]
      %v382 = vld [vmem:[%s314 + $0x88] sm:$0x1]
      %v383 = vld [vmem:[%s314 + $0x8c] sm:$0xf]
      %v384 = vld [vmem:[%s314 + $0x90] sm:$0xf]
      %v385 = vld [vmem:[%s314 + $0x94] sm:$0xf]
      %v386 = vld [vmem:[%s314 + $0x98] sm:$0xf]
      %v387 = vld [vmem:[%s314 + $0x9c] sm:$0x1]
      %v388 = vld [vmem:[%s314 + $0xa0] sm:$0xf]
      %v389 = vld [vmem:[%s314 + $0xa4] sm:$0xf]
      %v390 = vld [vmem:[%s314 + $0xa8] sm:$0xf]
      %v391 = vld [vmem:[%s314 + $0xac] sm:$0xf]
      %v392 = vld [vmem:[%s314 + $0xb0] sm:$0x1]
      %v393 = vld [vmem:[%s314 + $0xb4] sm:$0xf]
      %v394 = vld [vmem:[%s314 + $0xb8] sm:$0xf]
      %v395 = vld [vmem:[%s314 + $0xbc] sm:$0xf]
      %v396 = vld [vmem:[%s314 + $0xc0] sm:$0xf]
      %v397 = vld [vmem:[%s314 + $0xc4] sm:$0x1]
      %v398 = vld [vmem:[%s314 + $0xc8] sm:$0xf]
      %v399 = vld [vmem:[%s314 + $0xcc] sm:$0xf]
      %v400 = vld [vmem:[%s314 + $0xd0] sm:$0xf]
      %v401 = vld [vmem:[%s314 + $0xd4] sm:$0xf]
      %v402 = vld [vmem:[%s314 + $0xd8] sm:$0x1]
      %v403 = vld [vmem:[%s314 + $0xdc] sm:$0xf]
      %v404 = vld [vmem:[%s314 + $0xe0] sm:$0xf]
      %v405 = vld [vmem:[%s314 + $0xe4] sm:$0xf]
      %v406 = vld [vmem:[%s314 + $0xe8] sm:$0xf]
      %v407 = vld [vmem:[%s314 + $0xec] sm:$0x1]
      %v408 = vld [vmem:[%s314 + $0xf0] sm:$0xf]
      %v409 = vld [vmem:[%s314 + $0xf4] sm:$0xf]
      %v410 = vld [vmem:[%s314 + $0xf8] sm:$0xf]
      %v411 = vld [vmem:[%s314 + $0xfc] sm:$0xf]
      %v412 = vld [vmem:[%s314 + $0x100] sm:$0x1]
      %v413 = vld [vmem:[%s314 + $0x104] sm:$0xf]
      %v414 = vld [vmem:[%s314 + $0x108] sm:$0xf]
      %v415 = vld [vmem:[%s314 + $0x10c] sm:$0xf]
      %v416 = vld [vmem:[%s314 + $0x110] sm:$0xf]
      %v417 = vld [vmem:[%s314 + $0x114] sm:$0x1]
      %v418 = vld [vmem:[%s314 + $0x118] sm:$0xf]
      %v419 = vld [vmem:[%s314 + $0x11c] sm:$0xf]
      %v420 = vld [vmem:[%s314 + $0x120] sm:$0xf]
      %v421 = vld [vmem:[%s314 + $0x124] sm:$0xf]
      %v422 = vld [vmem:[%s314 + $0x128] sm:$0x1]
      %v423 = vld [vmem:[%s314 + $0x12c] sm:$0xf]
      %v424 = vld [vmem:[%s314 + $0x130] sm:$0xf]
      %v425 = vld [vmem:[%s314 + $0x134] sm:$0xf]
      %v426 = vld [vmem:[%s314 + $0x138] sm:$0xf]
      %v427 = vld [vmem:[%s314 + $0x13c] sm:$0x1]
      %v428 = vld [vmem:[%s332] sm:$0xf]
      %v429 = vld [vmem:[%s332 + $0x4] sm:$0xf]
      %v430 = vld [vmem:[%s332 + $0x8] sm:$0xf]
      %v431 = vld [vmem:[%s332 + $0xc] sm:$0xf]
      %v432 = vld [vmem:[%s332 + $0x10] sm:$0x1]
      %v433 = vld [vmem:[%s332 + $0x14] sm:$0xf]
      %v434 = vld [vmem:[%s332 + $0x18] sm:$0xf]
      %v435 = vld [vmem:[%s332 + $0x1c] sm:$0xf]
      %v436 = vld [vmem:[%s332 + $0x20] sm:$0xf]
      %v437 = vld [vmem:[%s332 + $0x24] sm:$0x1]
      %vm438 = vsmask.f32 3328
      %vm439 = vsmask.f32 7440
      %vm440 = vmor %vm438, %vm439
      %v442 = vshrl.u32 %v348, 16
      %v444 = vrot.slane %v442, 4
      %v445 = vshll.u32 %v348, 16
      %v447 = vrot.slane %v445, 5
      %v448 = vor.u32 %v444, %v447
      %v449 = vrot.slane %v448, 4
      %v451 = vshll.u32 %v349, 16
      %v453 = vrot.slane %v451, 5
      %v454 = vsel %vm440, %v449, %v453
      %v455 = vshrl.u32 %v349, 16
      %v457 = vrot.slane %v455, 4
      %v458 = vor.u32 %v457, %v453
      %v459 = vrot.slane %v458, 4
      %v461 = vshll.u32 %v350, 16
      %v463 = vrot.slane %v461, 5
      %v464 = vsel %vm440, %v459, %v463
      %v465 = vshrl.u32 %v350, 16
      %v467 = vrot.slane %v465, 4
      %v468 = vor.u32 %v467, %v463
      %v469 = vrot.slane %v468, 4
      %v471 = vshll.u32 %v351, 16
      %v473 = vrot.slane %v471, 5
      %v474 = vsel %vm440, %v469, %v473
      %v475 = vshrl.u32 %v351, 16
      %v477 = vrot.slane %v475, 4
      %v478 = vor.u32 %v477, %v473
      %v479 = vrot.slane %v478, 4
      %v481 = vshll.u32 %v352, 16
      %v483 = vrot.slane %v481, 5
      %v484 = vsel %vm440, %v479, %v483
      %v486 = vshrl.u32 %v353, 16
      %v488 = vrot.slane %v486, 4
      %v489 = vshll.u32 %v353, 16
      %v491 = vrot.slane %v489, 5
      %v492 = vor.u32 %v488, %v491
      %v493 = vrot.slane %v492, 4
      %v495 = vshll.u32 %v354, 16
      %v497 = vrot.slane %v495, 5
      %v498 = vsel %vm440, %v493, %v497
      %v499 = vshrl.u32 %v354, 16
      %v501 = vrot.slane %v499, 4
      %v502 = vor.u32 %v501, %v497
      %v503 = vrot.slane %v502, 4
      %v505 = vshll.u32 %v355, 16
      %v507 = vrot.slane %v505, 5
      %v508 = vsel %vm440, %v503, %v507
      %v509 = vshrl.u32 %v355, 16
      %v511 = vrot.slane %v509, 4
      %v512 = vor.u32 %v511, %v507
      %v513 = vrot.slane %v512, 4
      %v515 = vshll.u32 %v356, 16
      %v517 = vrot.slane %v515, 5
      %v518 = vsel %vm440, %v513, %v517
      %v519 = vshrl.u32 %v356, 16
      %v521 = vrot.slane %v519, 4
      %v522 = vor.u32 %v521, %v517
      %v523 = vrot.slane %v522, 4
      %v525 = vshll.u32 %v357, 16
      %v527 = vrot.slane %v525, 5
      %v528 = vsel %vm440, %v523, %v527
      %v530 = vshrl.u32 %v358, 16
      %v532 = vrot.slane %v530, 4
      %v533 = vshll.u32 %v358, 16
      %v535 = vrot.slane %v533, 5
      %v536 = vor.u32 %v532, %v535
      %v537 = vrot.slane %v536, 4
      %v539 = vshll.u32 %v359, 16
      %v541 = vrot.slane %v539, 5
      %v542 = vsel %vm440, %v537, %v541
      %v543 = vshrl.u32 %v359, 16
      %v545 = vrot.slane %v543, 4
      %v546 = vor.u32 %v545, %v541
      %v547 = vrot.slane %v546, 4
      %v549 = vshll.u32 %v360, 16
      %v551 = vrot.slane %v549, 5
      %v552 = vsel %vm440, %v547, %v551
      %v553 = vshrl.u32 %v360, 16
      %v555 = vrot.slane %v553, 4
      %v556 = vor.u32 %v555, %v551
      %v557 = vrot.slane %v556, 4
      %v559 = vshll.u32 %v361, 16
      %v561 = vrot.slane %v559, 5
      %v562 = vsel %vm440, %v557, %v561
      %v563 = vshrl.u32 %v361, 16
      %v565 = vrot.slane %v563, 4
      %v566 = vor.u32 %v565, %v561
      %v567 = vrot.slane %v566, 4
      %v569 = vshll.u32 %v362, 16
      %v571 = vrot.slane %v569, 5
      %v572 = vsel %vm440, %v567, %v571
      %v574 = vshrl.u32 %v363, 16
      %v576 = vrot.slane %v574, 4
      %v577 = vshll.u32 %v363, 16
      %v579 = vrot.slane %v577, 5
      %v580 = vor.u32 %v576, %v579
      %v581 = vrot.slane %v580, 4
      %v583 = vshll.u32 %v364, 16
      %v585 = vrot.slane %v583, 5
      %v586 = vsel %vm440, %v581, %v585
      %v587 = vshrl.u32 %v364, 16
      %v589 = vrot.slane %v587, 4
      %v590 = vor.u32 %v589, %v585
      %v591 = vrot.slane %v590, 4
      %v593 = vshll.u32 %v365, 16
      %v595 = vrot.slane %v593, 5
      %v596 = vsel %vm440, %v591, %v595
      %v597 = vshrl.u32 %v365, 16
      %v599 = vrot.slane %v597, 4
      %v600 = vor.u32 %v599, %v595
      %v601 = vrot.slane %v600, 4
      %v603 = vshll.u32 %v366, 16
      %v605 = vrot.slane %v603, 5
      %v606 = vsel %vm440, %v601, %v605
      %v607 = vshrl.u32 %v366, 16
      %v609 = vrot.slane %v607, 4
      %v610 = vor.u32 %v609, %v605
      %v611 = vrot.slane %v610, 4
      %v613 = vshll.u32 %v367, 16
      %v615 = vrot.slane %v613, 5
      %v616 = vsel %vm440, %v611, %v615
      %v618 = vshrl.u32 %v368, 16
      %v620 = vrot.slane %v618, 4
      %v621 = vshll.u32 %v368, 16
      %v623 = vrot.slane %v621, 5
      %v624 = vor.u32 %v620, %v623
      %v625 = vrot.slane %v624, 4
      %v627 = vshll.u32 %v369, 16
      %v629 = vrot.slane %v627, 5
      %v630 = vsel %vm440, %v625, %v629
      %v631 = vshrl.u32 %v369, 16
      %v633 = vrot.slane %v631, 4
      %v634 = vor.u32 %v633, %v629
      %v635 = vrot.slane %v634, 4
      %v637 = vshll.u32 %v370, 16
      %v639 = vrot.slane %v637, 5
      %v640 = vsel %vm440, %v635, %v639
      %v641 = vshrl.u32 %v370, 16
      %v643 = vrot.slane %v641, 4
      %v644 = vor.u32 %v643, %v639
      %v645 = vrot.slane %v644, 4
      %v647 = vshll.u32 %v371, 16
      %v649 = vrot.slane %v647, 5
      %v650 = vsel %vm440, %v645, %v649
      %v651 = vshrl.u32 %v371, 16
      %v653 = vrot.slane %v651, 4
      %v654 = vor.u32 %v653, %v649
      %v655 = vrot.slane %v654, 4
      %v657 = vshll.u32 %v372, 16
      %v659 = vrot.slane %v657, 5
      %v660 = vsel %vm440, %v655, %v659
      %v662 = vshrl.u32 %v373, 16
      %v664 = vrot.slane %v662, 4
      %v665 = vshll.u32 %v373, 16
      %v667 = vrot.slane %v665, 5
      %v668 = vor.u32 %v664, %v667
      %v669 = vrot.slane %v668, 4
      %v671 = vshll.u32 %v374, 16
      %v673 = vrot.slane %v671, 5
      %v674 = vsel %vm440, %v669, %v673
      %v675 = vshrl.u32 %v374, 16
      %v677 = vrot.slane %v675, 4
      %v678 = vor.u32 %v677, %v673
      %v679 = vrot.slane %v678, 4
      %v681 = vshll.u32 %v375, 16
      %v683 = vrot.slane %v681, 5
      %v684 = vsel %vm440, %v679, %v683
      %v685 = vshrl.u32 %v375, 16
      %v687 = vrot.slane %v685, 4
      %v688 = vor.u32 %v687, %v683
      %v689 = vrot.slane %v688, 4
      %v691 = vshll.u32 %v376, 16
      %v693 = vrot.slane %v691, 5
      %v694 = vsel %vm440, %v689, %v693
      %v695 = vshrl.u32 %v376, 16
      %v697 = vrot.slane %v695, 4
      %v698 = vor.u32 %v697, %v693
      %v699 = vrot.slane %v698, 4
      %v701 = vshll.u32 %v377, 16
      %v703 = vrot.slane %v701, 5
      %v704 = vsel %vm440, %v699, %v703
      %v706 = vshrl.u32 %v378, 16
      %v708 = vrot.slane %v706, 4
      %v709 = vshll.u32 %v378, 16
      %v711 = vrot.slane %v709, 5
      %v712 = vor.u32 %v708, %v711
      %v713 = vrot.slane %v712, 4
      %v715 = vshll.u32 %v379, 16
      %v717 = vrot.slane %v715, 5
      %v718 = vsel %vm440, %v713, %v717
      %v719 = vshrl.u32 %v379, 16
      %v721 = vrot.slane %v719, 4
      %v722 = vor.u32 %v721, %v717
      %v723 = vrot.slane %v722, 4
      %v725 = vshll.u32 %v380, 16
      %v727 = vrot.slane %v725, 5
      %v728 = vsel %vm440, %v723, %v727
      %v729 = vshrl.u32 %v380, 16
      %v731 = vrot.slane %v729, 4
      %v732 = vor.u32 %v731, %v727
      %v733 = vrot.slane %v732, 4
      %v735 = vshll.u32 %v381, 16
      %v737 = vrot.slane %v735, 5
      %v738 = vsel %vm440, %v733, %v737
      %v739 = vshrl.u32 %v381, 16
      %v741 = vrot.slane %v739, 4
      %v742 = vor.u32 %v741, %v737
      %v743 = vrot.slane %v742, 4
      %v745 = vshll.u32 %v382, 16
      %v747 = vrot.slane %v745, 5
      %v748 = vsel %vm440, %v743, %v747
      %v750 = vshrl.u32 %v383, 16
      %v752 = vrot.slane %v750, 4
      %v753 = vshll.u32 %v383, 16
      %v755 = vrot.slane %v753, 5
      %v756 = vor.u32 %v752, %v755
      %v757 = vrot.slane %v756, 4
      %v759 = vshll.u32 %v384, 16
      %v761 = vrot.slane %v759, 5
      %v762 = vsel %vm440, %v757, %v761
      %v763 = vshrl.u32 %v384, 16
      %v765 = vrot.slane %v763, 4
      %v766 = vor.u32 %v765, %v761
      %v767 = vrot.slane %v766, 4
      %v769 = vshll.u32 %v385, 16
      %v771 = vrot.slane %v769, 5
      %v772 = vsel %vm440, %v767, %v771
      %v773 = vshrl.u32 %v385, 16
      %v775 = vrot.slane %v773, 4
      %v776 = vor.u32 %v775, %v771
      %v777 = vrot.slane %v776, 4
      %v779 = vshll.u32 %v386, 16
      %v781 = vrot.slane %v779, 5
      %v782 = vsel %vm440, %v777, %v781
      %v783 = vshrl.u32 %v386, 16
      %v785 = vrot.slane %v783, 4
      %v786 = vor.u32 %v785, %v781
      %v787 = vrot.slane %v786, 4
      %v789 = vshll.u32 %v387, 16
      %v791 = vrot.slane %v789, 5
      %v792 = vsel %vm440, %v787, %v791
      %v794 = vshrl.u32 %v388, 16
      %v796 = vrot.slane %v794, 4
      %v797 = vshll.u32 %v388, 16
      %v799 = vrot.slane %v797, 5
      %v800 = vor.u32 %v796, %v799
      %v801 = vrot.slane %v800, 4
      %v803 = vshll.u32 %v389, 16
      %v805 = vrot.slane %v803, 5
      %v806 = vsel %vm440, %v801, %v805
      %v807 = vshrl.u32 %v389, 16
      %v809 = vrot.slane %v807, 4
      %v810 = vor.u32 %v809, %v805
      %v811 = vrot.slane %v810, 4
      %v813 = vshll.u32 %v390, 16
      %v815 = vrot.slane %v813, 5
      %v816 = vsel %vm440, %v811, %v815
      %v817 = vshrl.u32 %v390, 16
      %v819 = vrot.slane %v817, 4
      %v820 = vor.u32 %v819, %v815
      %v821 = vrot.slane %v820, 4
      %v823 = vshll.u32 %v391, 16
      %v825 = vrot.slane %v823, 5
      %v826 = vsel %vm440, %v821, %v825
      %v827 = vshrl.u32 %v391, 16
      %v829 = vrot.slane %v827, 4
      %v830 = vor.u32 %v829, %v825
      %v831 = vrot.slane %v830, 4
      %v833 = vshll.u32 %v392, 16
      %v835 = vrot.slane %v833, 5
      %v836 = vsel %vm440, %v831, %v835
      %v838 = vshrl.u32 %v393, 16
      %v840 = vrot.slane %v838, 4
      %v841 = vshll.u32 %v393, 16
      %v843 = vrot.slane %v841, 5
      %v844 = vor.u32 %v840, %v843
      %v845 = vrot.slane %v844, 4
      %v847 = vshll.u32 %v394, 16
      %v849 = vrot.slane %v847, 5
      %v850 = vsel %vm440, %v845, %v849
      %v851 = vshrl.u32 %v394, 16
      %v853 = vrot.slane %v851, 4
      %v854 = vor.u32 %v853, %v849
      %v855 = vrot.slane %v854, 4
      %v857 = vshll.u32 %v395, 16
      %v859 = vrot.slane %v857, 5
      %v860 = vsel %vm440, %v855, %v859
      %v861 = vshrl.u32 %v395, 16
      %v863 = vrot.slane %v861, 4
      %v864 = vor.u32 %v863, %v859
      %v865 = vrot.slane %v864, 4
      %v867 = vshll.u32 %v396, 16
      %v869 = vrot.slane %v867, 5
      %v870 = vsel %vm440, %v865, %v869
      %v871 = vshrl.u32 %v396, 16
      %v873 = vrot.slane %v871, 4
      %v874 = vor.u32 %v873, %v869
      %v875 = vrot.slane %v874, 4
      %v877 = vshll.u32 %v397, 16
      %v879 = vrot.slane %v877, 5
      %v880 = vsel %vm440, %v875, %v879
      %v882 = vshrl.u32 %v398, 16
      %v884 = vrot.slane %v882, 4
      %v885 = vshll.u32 %v398, 16
      %v887 = vrot.slane %v885, 5
      %v888 = vor.u32 %v884, %v887
      %v889 = vrot.slane %v888, 4
      %v891 = vshll.u32 %v399, 16
      %v893 = vrot.slane %v891, 5
      %v894 = vsel %vm440, %v889, %v893
      %v895 = vshrl.u32 %v399, 16
      %v897 = vrot.slane %v895, 4
      %v898 = vor.u32 %v897, %v893
      %v899 = vrot.slane %v898, 4
      %v901 = vshll.u32 %v400, 16
      %v903 = vrot.slane %v901, 5
      %v904 = vsel %vm440, %v899, %v903
      %v905 = vshrl.u32 %v400, 16
      %v907 = vrot.slane %v905, 4
      %v908 = vor.u32 %v907, %v903
      %v909 = vrot.slane %v908, 4
      %v911 = vshll.u32 %v401, 16
      %v913 = vrot.slane %v911, 5
      %v914 = vsel %vm440, %v909, %v913
      %v915 = vshrl.u32 %v401, 16
      %v917 = vrot.slane %v915, 4
      %v918 = vor.u32 %v917, %v913
      %v919 = vrot.slane %v918, 4
      %v921 = vshll.u32 %v402, 16
      %v923 = vrot.slane %v921, 5
      %v924 = vsel %vm440, %v919, %v923
      %v926 = vshrl.u32 %v403, 16
      %v928 = vrot.slane %v926, 4
      %v929 = vshll.u32 %v403, 16
      %v931 = vrot.slane %v929, 5
      %v932 = vor.u32 %v928, %v931
      %v933 = vrot.slane %v932, 4
      %v935 = vshll.u32 %v404, 16
      %v937 = vrot.slane %v935, 5
      %v938 = vsel %vm440, %v933, %v937
      %v939 = vshrl.u32 %v404, 16
      %v941 = vrot.slane %v939, 4
      %v942 = vor.u32 %v941, %v937
      %v943 = vrot.slane %v942, 4
      %v945 = vshll.u32 %v405, 16
      %v947 = vrot.slane %v945, 5
      %v948 = vsel %vm440, %v943, %v947
      %v949 = vshrl.u32 %v405, 16
      %v951 = vrot.slane %v949, 4
      %v952 = vor.u32 %v951, %v947
      %v953 = vrot.slane %v952, 4
      %v955 = vshll.u32 %v406, 16
      %v957 = vrot.slane %v955, 5
      %v958 = vsel %vm440, %v953, %v957
      %v959 = vshrl.u32 %v406, 16
      %v961 = vrot.slane %v959, 4
      %v962 = vor.u32 %v961, %v957
      %v963 = vrot.slane %v962, 4
      %v965 = vshll.u32 %v407, 16
      %v967 = vrot.slane %v965, 5
      %v968 = vsel %vm440, %v963, %v967
      %v970 = vshrl.u32 %v408, 16
      %v972 = vrot.slane %v970, 4
      %v973 = vshll.u32 %v408, 16
      %v975 = vrot.slane %v973, 5
      %v976 = vor.u32 %v972, %v975
      %v977 = vrot.slane %v976, 4
      %v979 = vshll.u32 %v409, 16
      %v981 = vrot.slane %v979, 5
      %v982 = vsel %vm440, %v977, %v981
      %v983 = vshrl.u32 %v409, 16
      %v985 = vrot.slane %v983, 4
      %v986 = vor.u32 %v985, %v981
      %v987 = vrot.slane %v986, 4
      %v989 = vshll.u32 %v410, 16
      %v991 = vrot.slane %v989, 5
      %v992 = vsel %vm440, %v987, %v991
      %v993 = vshrl.u32 %v410, 16
      %v995 = vrot.slane %v993, 4
      %v996 = vor.u32 %v995, %v991
      %v997 = vrot.slane %v996, 4
      %v999 = vshll.u32 %v411, 16
      %v1001 = vrot.slane %v999, 5
      %v1002 = vsel %vm440, %v997, %v1001
      %v1003 = vshrl.u32 %v411, 16
      %v1005 = vrot.slane %v1003, 4
      %v1006 = vor.u32 %v1005, %v1001
      %v1007 = vrot.slane %v1006, 4
      %v1009 = vshll.u32 %v412, 16
      %v1011 = vrot.slane %v1009, 5
      %v1012 = vsel %vm440, %v1007, %v1011
      %v1014 = vshrl.u32 %v413, 16
      %v1016 = vrot.slane %v1014, 4
      %v1017 = vshll.u32 %v413, 16
      %v1019 = vrot.slane %v1017, 5
      %v1020 = vor.u32 %v1016, %v1019
      %v1021 = vrot.slane %v1020, 4
      %v1023 = vshll.u32 %v414, 16
      %v1025 = vrot.slane %v1023, 5
      %v1026 = vsel %vm440, %v1021, %v1025
      %v1027 = vshrl.u32 %v414, 16
      %v1029 = vrot.slane %v1027, 4
      %v1030 = vor.u32 %v1029, %v1025
      %v1031 = vrot.slane %v1030, 4
      %v1033 = vshll.u32 %v415, 16
      %v1035 = vrot.slane %v1033, 5
      %v1036 = vsel %vm440, %v1031, %v1035
      %v1037 = vshrl.u32 %v415, 16
      %v1039 = vrot.slane %v1037, 4
      %v1040 = vor.u32 %v1039, %v1035
      %v1041 = vrot.slane %v1040, 4
      %v1043 = vshll.u32 %v416, 16
      %v1045 = vrot.slane %v1043, 5
      %v1046 = vsel %vm440, %v1041, %v1045
      %v1047 = vshrl.u32 %v416, 16
      %v1049 = vrot.slane %v1047, 4
      %v1050 = vor.u32 %v1049, %v1045
      %v1051 = vrot.slane %v1050, 4
      %v1053 = vshll.u32 %v417, 16
      %v1055 = vrot.slane %v1053, 5
      %v1056 = vsel %vm440, %v1051, %v1055
      %v1058 = vshrl.u32 %v418, 16
      %v1060 = vrot.slane %v1058, 4
      %v1061 = vshll.u32 %v418, 16
      %v1063 = vrot.slane %v1061, 5
      %v1064 = vor.u32 %v1060, %v1063
      %v1065 = vrot.slane %v1064, 4
      %v1067 = vshll.u32 %v419, 16
      %v1069 = vrot.slane %v1067, 5
      %v1070 = vsel %vm440, %v1065, %v1069
      %v1071 = vshrl.u32 %v419, 16
      %v1073 = vrot.slane %v1071, 4
      %v1074 = vor.u32 %v1073, %v1069
      %v1075 = vrot.slane %v1074, 4
      %v1077 = vshll.u32 %v420, 16
      %v1079 = vrot.slane %v1077, 5
      %v1080 = vsel %vm440, %v1075, %v1079
      %v1081 = vshrl.u32 %v420, 16
      %v1083 = vrot.slane %v1081, 4
      %v1084 = vor.u32 %v1083, %v1079
      %v1085 = vrot.slane %v1084, 4
      %v1087 = vshll.u32 %v421, 16
      %v1089 = vrot.slane %v1087, 5
      %v1090 = vsel %vm440, %v1085, %v1089
      %v1091 = vshrl.u32 %v421, 16
      %v1093 = vrot.slane %v1091, 4
      %v1094 = vor.u32 %v1093, %v1089
      %v1095 = vrot.slane %v1094, 4
      %v1097 = vshll.u32 %v422, 16
      %v1099 = vrot.slane %v1097, 5
      %v1100 = vsel %vm440, %v1095, %v1099
      %v1102 = vshrl.u32 %v423, 16
      %v1104 = vrot.slane %v1102, 4
      %v1105 = vshll.u32 %v423, 16
      %v1107 = vrot.slane %v1105, 5
      %v1108 = vor.u32 %v1104, %v1107
      %v1109 = vrot.slane %v1108, 4
      %v1111 = vshll.u32 %v424, 16
      %v1113 = vrot.slane %v1111, 5
      %v1114 = vsel %vm440, %v1109, %v1113
      %v1115 = vshrl.u32 %v424, 16
      %v1117 = vrot.slane %v1115, 4
      %v1118 = vor.u32 %v1117, %v1113
      %v1119 = vrot.slane %v1118, 4
      %v1121 = vshll.u32 %v425, 16
      %v1123 = vrot.slane %v1121, 5
      %v1124 = vsel %vm440, %v1119, %v1123
      %v1125 = vshrl.u32 %v425, 16
      %v1127 = vrot.slane %v1125, 4
      %v1128 = vor.u32 %v1127, %v1123
      %v1129 = vrot.slane %v1128, 4
      %v1131 = vshll.u32 %v426, 16
      %v1133 = vrot.slane %v1131, 5
      %v1134 = vsel %vm440, %v1129, %v1133
      %v1135 = vshrl.u32 %v426, 16
      %v1137 = vrot.slane %v1135, 4
      %v1138 = vor.u32 %v1137, %v1133
      %v1139 = vrot.slane %v1138, 4
      %v1141 = vshll.u32 %v427, 16
      %v1143 = vrot.slane %v1141, 5
      %v1144 = vsel %vm440, %v1139, %v1143
      %vm1225 = vcmask 1042432
      %vm1226 = vcmask 1046532
      %vm1227 = vmor %vm1225, %vm1226
      %v1228 = vrot.slane %v348, 5
      %v1229 = vrot.slane %v1228, 4
      %v1230 = vrot.slane %v349, 5
      %v1231 = vsel %vm1227, %v1229, %v1230
      %v1232 = vrot.slane %v1230, 4
      %v1233 = vrot.slane %v350, 5
      %v1234 = vsel %vm1227, %v1232, %v1233
      %v1235 = vrot.slane %v1233, 4
      %v1236 = vrot.slane %v351, 5
      %v1237 = vsel %vm1227, %v1235, %v1236
      %v1238 = vrot.slane %v1236, 4
      %v1239 = vrot.slane %v352, 5
      %v1240 = vsel %vm1227, %v1238, %v1239
      %v1241 = vrot.slane %v353, 5
      %v1242 = vrot.slane %v1241, 4
      %v1243 = vrot.slane %v354, 5
      %v1244 = vsel %vm1227, %v1242, %v1243
      %v1245 = vrot.slane %v1243, 4
      %v1246 = vrot.slane %v355, 5
      %v1247 = vsel %vm1227, %v1245, %v1246
      %v1248 = vrot.slane %v1246, 4
      %v1249 = vrot.slane %v356, 5
      %v1250 = vsel %vm1227, %v1248, %v1249
      %v1251 = vrot.slane %v1249, 4
      %v1252 = vrot.slane %v357, 5
      %v1253 = vsel %vm1227, %v1251, %v1252
      %v1254 = vrot.slane %v358, 5
      %v1255 = vrot.slane %v1254, 4
      %v1256 = vrot.slane %v359, 5
      %v1257 = vsel %vm1227, %v1255, %v1256
      %v1258 = vrot.slane %v1256, 4
      %v1259 = vrot.slane %v360, 5
      %v1260 = vsel %vm1227, %v1258, %v1259
      %v1261 = vrot.slane %v1259, 4
      %v1262 = vrot.slane %v361, 5
      %v1263 = vsel %vm1227, %v1261, %v1262
      %v1264 = vrot.slane %v1262, 4
      %v1265 = vrot.slane %v362, 5
      %v1266 = vsel %vm1227, %v1264, %v1265
      %v1267 = vrot.slane %v363, 5
      %v1268 = vrot.slane %v1267, 4
      %v1269 = vrot.slane %v364, 5
      %v1270 = vsel %vm1227, %v1268, %v1269
      %v1271 = vrot.slane %v1269, 4
      %v1272 = vrot.slane %v365, 5
      %v1273 = vsel %vm1227, %v1271, %v1272
      %v1274 = vrot.slane %v1272, 4
      %v1275 = vrot.slane %v366, 5
      %v1276 = vsel %vm1227, %v1274, %v1275
      %v1277 = vrot.slane %v1275, 4
      %v1278 = vrot.slane %v367, 5
      %v1279 = vsel %vm1227, %v1277, %v1278
      %v1280 = vrot.slane %v368, 5
      %v1281 = vrot.slane %v1280, 4
      %v1282 = vrot.slane %v369, 5
      %v1283 = vsel %vm1227, %v1281, %v1282
      %v1284 = vrot.slane %v1282, 4
      %v1285 = vrot.slane %v370, 5
      %v1286 = vsel %vm1227, %v1284, %v1285
      %v1287 = vrot.slane %v1285, 4
      %v1288 = vrot.slane %v371, 5
      %v1289 = vsel %vm1227, %v1287, %v1288
      %v1290 = vrot.slane %v1288, 4
      %v1291 = vrot.slane %v372, 5
      %v1292 = vsel %vm1227, %v1290, %v1291
      %v1293 = vrot.slane %v373, 5
      %v1294 = vrot.slane %v1293, 4
      %v1295 = vrot.slane %v374, 5
      %v1296 = vsel %vm1227, %v1294, %v1295
      %v1297 = vrot.slane %v1295, 4
      %v1298 = vrot.slane %v375, 5
      %v1299 = vsel %vm1227, %v1297, %v1298
      %v1300 = vrot.slane %v1298, 4
      %v1301 = vrot.slane %v376, 5
      %v1302 = vsel %vm1227, %v1300, %v1301
      %v1303 = vrot.slane %v1301, 4
      %v1304 = vrot.slane %v377, 5
      %v1305 = vsel %vm1227, %v1303, %v1304
      %v1306 = vrot.slane %v378, 5
      %v1307 = vrot.slane %v1306, 4
      %v1308 = vrot.slane %v379, 5
      %v1309 = vsel %vm1227, %v1307, %v1308
      %v1310 = vrot.slane %v1308, 4
      %v1311 = vrot.slane %v380, 5
      %v1312 = vsel %vm1227, %v1310, %v1311
      %v1313 = vrot.slane %v1311, 4
      %v1314 = vrot.slane %v381, 5
      %v1315 = vsel %vm1227, %v1313, %v1314
      %v1316 = vrot.slane %v1314, 4
      %v1317 = vrot.slane %v382, 5
      %v1318 = vsel %vm1227, %v1316, %v1317
      %v1319 = vrot.slane %v383, 5
      %v1320 = vrot.slane %v1319, 4
      %v1321 = vrot.slane %v384, 5
      %v1322 = vsel %vm1227, %v1320, %v1321
      %v1323 = vrot.slane %v1321, 4
      %v1324 = vrot.slane %v385, 5
      %v1325 = vsel %vm1227, %v1323, %v1324
      %v1326 = vrot.slane %v1324, 4
      %v1327 = vrot.slane %v386, 5
      %v1328 = vsel %vm1227, %v1326, %v1327
      %v1329 = vrot.slane %v1327, 4
      %v1330 = vrot.slane %v387, 5
      %v1331 = vsel %vm1227, %v1329, %v1330
      %v1332 = vrot.slane %v388, 5
      %v1333 = vrot.slane %v1332, 4
      %v1334 = vrot.slane %v389, 5
      %v1335 = vsel %vm1227, %v1333, %v1334
      %v1336 = vrot.slane %v1334, 4
      %v1337 = vrot.slane %v390, 5
      %v1338 = vsel %vm1227, %v1336, %v1337
      %v1339 = vrot.slane %v1337, 4
      %v1340 = vrot.slane %v391, 5
      %v1341 = vsel %vm1227, %v1339, %v1340
      %v1342 = vrot.slane %v1340, 4
      %v1343 = vrot.slane %v392, 5
      %v1344 = vsel %vm1227, %v1342, %v1343
      %v1345 = vrot.slane %v393, 5
      %v1346 = vrot.slane %v1345, 4
      %v1347 = vrot.slane %v394, 5
      %v1348 = vsel %vm1227, %v1346, %v1347
      %v1349 = vrot.slane %v1347, 4
      %v1350 = vrot.slane %v395, 5
      %v1351 = vsel %vm1227, %v1349, %v1350
      %v1352 = vrot.slane %v1350, 4
      %v1353 = vrot.slane %v396, 5
      %v1354 = vsel %vm1227, %v1352, %v1353
      %v1355 = vrot.slane %v1353, 4
      %v1356 = vrot.slane %v397, 5
      %v1357 = vsel %vm1227, %v1355, %v1356
      %v1358 = vrot.slane %v398, 5
      %v1359 = vrot.slane %v1358, 4
      %v1360 = vrot.slane %v399, 5
      %v1361 = vsel %vm1227, %v1359, %v1360
      %v1362 = vrot.slane %v1360, 4
      %v1363 = vrot.slane %v400, 5
      %v1364 = vsel %vm1227, %v1362, %v1363
      %v1365 = vrot.slane %v1363, 4
      %v1366 = vrot.slane %v401, 5
      %v1367 = vsel %vm1227, %v1365, %v1366
      %v1368 = vrot.slane %v1366, 4
      %v1369 = vrot.slane %v402, 5
      %v1370 = vsel %vm1227, %v1368, %v1369
      %v1371 = vrot.slane %v403, 5
      %v1372 = vrot.slane %v1371, 4
      %v1373 = vrot.slane %v404, 5
      %v1374 = vsel %vm1227, %v1372, %v1373
      %v1375 = vrot.slane %v1373, 4
      %v1376 = vrot.slane %v405, 5
      %v1377 = vsel %vm1227, %v1375, %v1376
      %v1378 = vrot.slane %v1376, 4
      %v1379 = vrot.slane %v406, 5
      %v1380 = vsel %vm1227, %v1378, %v1379
      %v1381 = vrot.slane %v1379, 4
      %v1382 = vrot.slane %v407, 5
      %v1383 = vsel %vm1227, %v1381, %v1382
      %v1384 = vrot.slane %v408, 5
      %v1385 = vrot.slane %v1384, 4
      %v1386 = vrot.slane %v409, 5
      %v1387 = vsel %vm1227, %v1385, %v1386
      %v1388 = vrot.slane %v1386, 4
      %v1389 = vrot.slane %v410, 5
      %v1390 = vsel %vm1227, %v1388, %v1389
      %v1391 = vrot.slane %v1389, 4
      %v1392 = vrot.slane %v411, 5
      %v1393 = vsel %vm1227, %v1391, %v1392
      %v1394 = vrot.slane %v1392, 4
      %v1395 = vrot.slane %v412, 5
      %v1396 = vsel %vm1227, %v1394, %v1395
      %v1397 = vrot.slane %v413, 5
      %v1398 = vrot.slane %v1397, 4
      %v1399 = vrot.slane %v414, 5
      %v1400 = vsel %vm1227, %v1398, %v1399
      %v1401 = vrot.slane %v1399, 4
      %v1402 = vrot.slane %v415, 5
      %v1403 = vsel %vm1227, %v1401, %v1402
      %v1404 = vrot.slane %v1402, 4
      %v1405 = vrot.slane %v416, 5
      %v1406 = vsel %vm1227, %v1404, %v1405
      %v1407 = vrot.slane %v1405, 4
      %v1408 = vrot.slane %v417, 5
      %v1409 = vsel %vm1227, %v1407, %v1408
      %v1410 = vrot.slane %v418, 5
      %v1411 = vrot.slane %v1410, 4
      %v1412 = vrot.slane %v419, 5
      %v1413 = vsel %vm1227, %v1411, %v1412
      %v1414 = vrot.slane %v1412, 4
      %v1415 = vrot.slane %v420, 5
      %v1416 = vsel %vm1227, %v1414, %v1415
      %v1417 = vrot.slane %v1415, 4
      %v1418 = vrot.slane %v421, 5
      %v1419 = vsel %vm1227, %v1417, %v1418
      %v1420 = vrot.slane %v1418, 4
      %v1421 = vrot.slane %v422, 5
      %v1422 = vsel %vm1227, %v1420, %v1421
      %v1423 = vrot.slane %v423, 5
      %v1424 = vrot.slane %v1423, 4
      %v1425 = vrot.slane %v424, 5
      %v1426 = vsel %vm1227, %v1424, %v1425
      %v1427 = vrot.slane %v1425, 4
      %v1428 = vrot.slane %v425, 5
      %v1429 = vsel %vm1227, %v1427, %v1428
      %v1430 = vrot.slane %v1428, 4
      %v1431 = vrot.slane %v426, 5
      %v1432 = vsel %vm1227, %v1430, %v1431
      %v1433 = vrot.slane %v1431, 4
      %v1434 = vrot.slane %v427, 5
      %v1435 = vsel %vm1227, %v1433, %v1434
      %v1436 = vunpack.c.l.b16 %v353
      %v1437 = vunpack.c.l.b16 %v354
      %v1438 = vunpack.c.l.b16 %v355
      %v1439 = vunpack.c.l.b16 %v356
      %v1440 = vunpack.c.l.b16 %v358
      %v1441 = vunpack.c.l.b16 %v359
      %v1442 = vunpack.c.l.b16 %v360
      %v1443 = vunpack.c.l.b16 %v361
      %v1444 = vunpack.c.l.b16 %v363
      %v1445 = vunpack.c.l.b16 %v364
      %v1446 = vunpack.c.l.b16 %v365
      %v1447 = vunpack.c.l.b16 %v366
      %v1448 = vunpack.c.l.b16 %v368
      %v1449 = vunpack.c.l.b16 %v369
      %v1450 = vunpack.c.l.b16 %v370
      %v1451 = vunpack.c.l.b16 %v371
      %v1452 = vunpack.c.l.b16 %v373
      %v1453 = vunpack.c.l.b16 %v374
      %v1454 = vunpack.c.l.b16 %v375
      %v1455 = vunpack.c.l.b16 %v376
      %v1456 = vunpack.c.l.b16 %v378
      %v1457 = vunpack.c.l.b16 %v379
      %v1458 = vunpack.c.l.b16 %v380
      %v1459 = vunpack.c.l.b16 %v381
      %v1460 = vunpack.c.l.b16 %v383
      %v1461 = vunpack.c.l.b16 %v384
      %v1462 = vunpack.c.l.b16 %v385
      %v1463 = vunpack.c.l.b16 %v386
      %v1464 = vunpack.c.l.b16 %v388
      %v1465 = vunpack.c.l.b16 %v389
      %v1466 = vunpack.c.l.b16 %v390
      %v1467 = vunpack.c.l.b16 %v391
      %v1468 = vunpack.c.l.b16 %v393
      %v1469 = vunpack.c.l.b16 %v394
      %v1470 = vunpack.c.l.b16 %v395
      %v1471 = vunpack.c.l.b16 %v396
      %v1472 = vunpack.c.l.b16 %v398
      %v1473 = vunpack.c.l.b16 %v399
      %v1474 = vunpack.c.l.b16 %v400
      %v1475 = vunpack.c.l.b16 %v401
      %v1476 = vunpack.c.l.b16 %v403
      %v1477 = vunpack.c.l.b16 %v404
      %v1478 = vunpack.c.l.b16 %v405
      %v1479 = vunpack.c.l.b16 %v406
      %v1480 = vunpack.c.l.b16 %v408
      %v1481 = vunpack.c.l.b16 %v409
      %v1482 = vunpack.c.l.b16 %v410
      %v1483 = vunpack.c.l.b16 %v411
      %v1484 = vunpack.c.l.b16 %v413
      %v1485 = vunpack.c.l.b16 %v414
      %v1486 = vunpack.c.l.b16 %v415
      %v1487 = vunpack.c.l.b16 %v416
      %v1488 = vunpack.c.l.b16 %v418
      %v1489 = vunpack.c.l.b16 %v419
      %v1490 = vunpack.c.l.b16 %v420
      %v1491 = vunpack.c.l.b16 %v421
      %v1492 = vunpack.c.l.b16 %v423
      %v1493 = vunpack.c.l.b16 %v424
      %v1494 = vunpack.c.l.b16 %v425
      %v1495 = vunpack.c.l.b16 %v426
      %v1496 = vpack.c.b16 %v1437, %v1436
      %v1497 = vpack.c.b16 %v1439, %v1438
      %v1498 = vpack.c.b16 %v1441, %v1440
      %v1499 = vpack.c.b16 %v1443, %v1442
      %v1500 = vpack.c.b16 %v1445, %v1444
      %v1501 = vpack.c.b16 %v1447, %v1446
      %v1502 = vpack.c.b16 %v1449, %v1448
      %v1503 = vpack.c.b16 %v1451, %v1450
      %v1504 = vpack.c.b16 %v1453, %v1452
      %v1505 = vpack.c.b16 %v1455, %v1454
      %v1506 = vpack.c.b16 %v1457, %v1456
      %v1507 = vpack.c.b16 %v1459, %v1458
      %v1508 = vpack.c.b16 %v1461, %v1460
      %v1509 = vpack.c.b16 %v1463, %v1462
      %v1510 = vpack.c.b16 %v1465, %v1464
      %v1511 = vpack.c.b16 %v1467, %v1466
      %v1512 = vpack.c.b16 %v1469, %v1468
      %v1513 = vpack.c.b16 %v1471, %v1470
      %v1514 = vpack.c.b16 %v1473, %v1472
      %v1515 = vpack.c.b16 %v1475, %v1474
      %v1516 = vpack.c.b16 %v1477, %v1476
      %v1517 = vpack.c.b16 %v1479, %v1478
      %v1518 = vpack.c.b16 %v1481, %v1480
      %v1519 = vpack.c.b16 %v1483, %v1482
      %v1520 = vpack.c.b16 %v1485, %v1484
      %v1521 = vpack.c.b16 %v1487, %v1486
      %v1522 = vpack.c.b16 %v1489, %v1488
      %v1523 = vpack.c.b16 %v1491, %v1490
      %v1524 = vpack.c.b16 %v1493, %v1492
      %v1525 = vpack.c.b16 %v1495, %v1494
      %v1530 = vunpack.c.l.b16 %v428
      %v1531 = vunpack.c.l.b16 %v429
      %v1532 = vunpack.c.l.b16 %v430
      %v1533 = vunpack.c.l.b16 %v431
      %v1534 = vpack.c.b16 %v1531, %v1530
      %v1535 = vpack.c.b16 %v1533, %v1532
      %v1536 = vunpack.c.l.b16 %v498
      %v1537 = vunpack.c.l.b16 %v508
      %v1538 = vunpack.c.l.b16 %v518
      %v1539 = vunpack.c.l.b16 %v528
      %v1540 = vunpack.c.l.b16 %v542
      %v1541 = vunpack.c.l.b16 %v552
      %v1542 = vunpack.c.l.b16 %v562
      %v1543 = vunpack.c.l.b16 %v572
      %v1544 = vunpack.c.l.b16 %v586
      %v1545 = vunpack.c.l.b16 %v596
      %v1546 = vunpack.c.l.b16 %v606
      %v1547 = vunpack.c.l.b16 %v616
      %v1548 = vunpack.c.l.b16 %v630
      %v1549 = vunpack.c.l.b16 %v640
      %v1550 = vunpack.c.l.b16 %v650
      %v1551 = vunpack.c.l.b16 %v660
      %v1552 = vunpack.c.l.b16 %v674
      %v1553 = vunpack.c.l.b16 %v684
      %v1554 = vunpack.c.l.b16 %v694
      %v1555 = vunpack.c.l.b16 %v704
      %v1556 = vunpack.c.l.b16 %v718
      %v1557 = vunpack.c.l.b16 %v728
      %v1558 = vunpack.c.l.b16 %v738
      %v1559 = vunpack.c.l.b16 %v748
      %v1560 = vunpack.c.l.b16 %v762
      %v1561 = vunpack.c.l.b16 %v772
      %v1562 = vunpack.c.l.b16 %v782
      %v1563 = vunpack.c.l.b16 %v792
      %v1564 = vunpack.c.l.b16 %v806
      %v1565 = vunpack.c.l.b16 %v816
      %v1566 = vunpack.c.l.b16 %v826
      %v1567 = vunpack.c.l.b16 %v836
      %v1568 = vunpack.c.l.b16 %v850
      %v1569 = vunpack.c.l.b16 %v860
      %v1570 = vunpack.c.l.b16 %v870
      %v1571 = vunpack.c.l.b16 %v880
      %v1572 = vunpack.c.l.b16 %v894
      %v1573 = vunpack.c.l.b16 %v904
      %v1574 = vunpack.c.l.b16 %v914
      %v1575 = vunpack.c.l.b16 %v924
      %v1576 = vunpack.c.l.b16 %v938
      %v1577 = vunpack.c.l.b16 %v948
      %v1578 = vunpack.c.l.b16 %v958
      %v1579 = vunpack.c.l.b16 %v968
      %v1580 = vunpack.c.l.b16 %v982
      %v1581 = vunpack.c.l.b16 %v992
      %v1582 = vunpack.c.l.b16 %v1002
      %v1583 = vunpack.c.l.b16 %v1012
      %v1584 = vunpack.c.l.b16 %v1026
      %v1585 = vunpack.c.l.b16 %v1036
      %v1586 = vunpack.c.l.b16 %v1046
      %v1587 = vunpack.c.l.b16 %v1056
      %v1588 = vunpack.c.l.b16 %v1070
      %v1589 = vunpack.c.l.b16 %v1080
      %v1590 = vunpack.c.l.b16 %v1090
      %v1591 = vunpack.c.l.b16 %v1100
      %v1592 = vunpack.c.l.b16 %v1114
      %v1593 = vunpack.c.l.b16 %v1124
      %v1594 = vunpack.c.l.b16 %v1134
      %v1595 = vunpack.c.l.b16 %v1144
      %v1596 = vpack.c.b16 %v1537, %v1536
      %v1597 = vpack.c.b16 %v1539, %v1538
      %v1598 = vpack.c.b16 %v1541, %v1540
      %v1599 = vpack.c.b16 %v1543, %v1542
      %v1600 = vpack.c.b16 %v1545, %v1544
      %v1601 = vpack.c.b16 %v1547, %v1546
      %v1602 = vpack.c.b16 %v1549, %v1548
      %v1603 = vpack.c.b16 %v1551, %v1550
      %v1604 = vpack.c.b16 %v1553, %v1552
      %v1605 = vpack.c.b16 %v1555, %v1554
      %v1606 = vpack.c.b16 %v1557, %v1556
      %v1607 = vpack.c.b16 %v1559, %v1558
      %v1608 = vpack.c.b16 %v1561, %v1560
      %v1609 = vpack.c.b16 %v1563, %v1562
      %v1610 = vpack.c.b16 %v1565, %v1564
      %v1611 = vpack.c.b16 %v1567, %v1566
      %v1612 = vpack.c.b16 %v1569, %v1568
      %v1613 = vpack.c.b16 %v1571, %v1570
      %v1614 = vpack.c.b16 %v1573, %v1572
      %v1615 = vpack.c.b16 %v1575, %v1574
      %v1616 = vpack.c.b16 %v1577, %v1576
      %v1617 = vpack.c.b16 %v1579, %v1578
      %v1618 = vpack.c.b16 %v1581, %v1580
      %v1619 = vpack.c.b16 %v1583, %v1582
      %v1620 = vpack.c.b16 %v1585, %v1584
      %v1621 = vpack.c.b16 %v1587, %v1586
      %v1622 = vpack.c.b16 %v1589, %v1588
      %v1623 = vpack.c.b16 %v1591, %v1590
      %v1624 = vpack.c.b16 %v1593, %v1592
      %v1625 = vpack.c.b16 %v1595, %v1594
      %v1627 = vunpack.c.l.b16 %v432
      %v1628 = vpack.c.b16 %v1627, %v1627
      %vm1629 = vsmask.f32 7424
      %v1631 = vshrl.u32 %v1534, 16
      %v1633 = vshll.u32 %v1534, 16
      %v1635 = vrot.slane %v1633, 1
      %v1636 = vor.u32 %v1631, %v1635
      %v1638 = vshll.u32 %v1535, 16
      %v1640 = vrot.slane %v1638, 1
      %v1641 = vsel %vm1629, %v1636, %v1640
      %v1642 = vshrl.u32 %v1535, 16
      %v1644 = vor.u32 %v1642, %v1640
      %v1646 = vshll.u32 %v1628, 16
      %v1648 = vrot.slane %v1646, 1
      %v1649 = vsel %vm1629, %v1644, %v1648
      %v1650 = vunpack.c.l.b16 %v1244
      %v1651 = vunpack.c.l.b16 %v1247
      %v1652 = vunpack.c.l.b16 %v1250
      %v1653 = vunpack.c.l.b16 %v1253
      %v1654 = vunpack.c.l.b16 %v1257
      %v1655 = vunpack.c.l.b16 %v1260
      %v1656 = vunpack.c.l.b16 %v1263
      %v1657 = vunpack.c.l.b16 %v1266
      %v1658 = vunpack.c.l.b16 %v1270
      %v1659 = vunpack.c.l.b16 %v1273
      %v1660 = vunpack.c.l.b16 %v1276
      %v1661 = vunpack.c.l.b16 %v1279
      %v1662 = vunpack.c.l.b16 %v1283
      %v1663 = vunpack.c.l.b16 %v1286
      %v1664 = vunpack.c.l.b16 %v1289
      %v1665 = vunpack.c.l.b16 %v1292
      %v1666 = vunpack.c.l.b16 %v1296
      %v1667 = vunpack.c.l.b16 %v1299
      %v1668 = vunpack.c.l.b16 %v1302
      %v1669 = vunpack.c.l.b16 %v1305
      %v1670 = vunpack.c.l.b16 %v1309
      %v1671 = vunpack.c.l.b16 %v1312
      %v1672 = vunpack.c.l.b16 %v1315
      %v1673 = vunpack.c.l.b16 %v1318
      %v1674 = vunpack.c.l.b16 %v1322
      %v1675 = vunpack.c.l.b16 %v1325
      %v1676 = vunpack.c.l.b16 %v1328
      %v1677 = vunpack.c.l.b16 %v1331
      %v1678 = vunpack.c.l.b16 %v1335
      %v1679 = vunpack.c.l.b16 %v1338
      %v1680 = vunpack.c.l.b16 %v1341
      %v1681 = vunpack.c.l.b16 %v1344
      %v1682 = vunpack.c.l.b16 %v1348
      %v1683 = vunpack.c.l.b16 %v1351
      %v1684 = vunpack.c.l.b16 %v1354
      %v1685 = vunpack.c.l.b16 %v1357
      %v1686 = vunpack.c.l.b16 %v1361
      %v1687 = vunpack.c.l.b16 %v1364
      %v1688 = vunpack.c.l.b16 %v1367
      %v1689 = vunpack.c.l.b16 %v1370
      %v1690 = vunpack.c.l.b16 %v1374
      %v1691 = vunpack.c.l.b16 %v1377
      %v1692 = vunpack.c.l.b16 %v1380
      %v1693 = vunpack.c.l.b16 %v1383
      %v1694 = vunpack.c.l.b16 %v1387
      %v1695 = vunpack.c.l.b16 %v1390
      %v1696 = vunpack.c.l.b16 %v1393
      %v1697 = vunpack.c.l.b16 %v1396
      %v1698 = vunpack.c.l.b16 %v1400
      %v1699 = vunpack.c.l.b16 %v1403
      %v1700 = vunpack.c.l.b16 %v1406
      %v1701 = vunpack.c.l.b16 %v1409
      %v1702 = vunpack.c.l.b16 %v1413
      %v1703 = vunpack.c.l.b16 %v1416
      %v1704 = vunpack.c.l.b16 %v1419
      %v1705 = vunpack.c.l.b16 %v1422
      %v1706 = vunpack.c.l.b16 %v1426
      %v1707 = vunpack.c.l.b16 %v1429
      %v1708 = vunpack.c.l.b16 %v1432
      %v1709 = vunpack.c.l.b16 %v1435
      %v1710 = vpack.c.b16 %v1651, %v1650
      %v1711 = vpack.c.b16 %v1653, %v1652
      %v1712 = vpack.c.b16 %v1655, %v1654
      %v1713 = vpack.c.b16 %v1657, %v1656
      %v1714 = vpack.c.b16 %v1659, %v1658
      %v1715 = vpack.c.b16 %v1661, %v1660
      %v1716 = vpack.c.b16 %v1663, %v1662
      %v1717 = vpack.c.b16 %v1665, %v1664
      %v1718 = vpack.c.b16 %v1667, %v1666
      %v1719 = vpack.c.b16 %v1669, %v1668
      %v1720 = vpack.c.b16 %v1671, %v1670
      %v1721 = vpack.c.b16 %v1673, %v1672
      %v1722 = vpack.c.b16 %v1675, %v1674
      %v1723 = vpack.c.b16 %v1677, %v1676
      %v1724 = vpack.c.b16 %v1679, %v1678
      %v1725 = vpack.c.b16 %v1681, %v1680
      %v1726 = vpack.c.b16 %v1683, %v1682
      %v1727 = vpack.c.b16 %v1685, %v1684
      %v1728 = vpack.c.b16 %v1687, %v1686
      %v1729 = vpack.c.b16 %v1689, %v1688
      %v1730 = vpack.c.b16 %v1691, %v1690
      %v1731 = vpack.c.b16 %v1693, %v1692
      %v1732 = vpack.c.b16 %v1695, %v1694
      %v1733 = vpack.c.b16 %v1697, %v1696
      %v1734 = vpack.c.b16 %v1699, %v1698
      %v1735 = vpack.c.b16 %v1701, %v1700
      %v1736 = vpack.c.b16 %v1703, %v1702
      %v1737 = vpack.c.b16 %v1705, %v1704
      %v1738 = vpack.c.b16 %v1707, %v1706
      %v1739 = vpack.c.b16 %v1709, %v1708
      %vm1740 = vcmask 1046528
      %v1741 = vrot.slane %v1534, 1
      %v1742 = vrot.slane %v1535, 1
      %v1743 = vsel %vm1740, %v1741, %v1742
      %v1744 = vrot.slane %v1628, 1
      %v1745 = vsel %vm1740, %v1742, %v1744
      %v1750 = vunpack.c.l.b16 %v433
      %v1751 = vunpack.c.l.b16 %v434
      %v1752 = vunpack.c.l.b16 %v435
      %v1753 = vunpack.c.l.b16 %v436
      %v1754 = vpack.c.b16 %v1751, %v1750
      %v1755 = vpack.c.b16 %v1753, %v1752
      %v1757 = vshrl.u32 %v428, 16
      %v1759 = vrot.slane %v1757, 4
      %v1760 = vshll.u32 %v428, 16
      %v1762 = vrot.slane %v1760, 5
      %v1763 = vor.u32 %v1759, %v1762
      %v1764 = vrot.slane %v1763, 4
      %v1766 = vshll.u32 %v429, 16
      %v1768 = vrot.slane %v1766, 5
      %v1769 = vsel %vm440, %v1764, %v1768
      %v1770 = vshrl.u32 %v429, 16
      %v1772 = vrot.slane %v1770, 4
      %v1773 = vor.u32 %v1772, %v1768
      %v1774 = vrot.slane %v1773, 4
      %v1776 = vshll.u32 %v430, 16
      %v1778 = vrot.slane %v1776, 5
      %v1779 = vsel %vm440, %v1774, %v1778
      %v1780 = vshrl.u32 %v430, 16
      %v1782 = vrot.slane %v1780, 4
      %v1783 = vor.u32 %v1782, %v1778
      %v1784 = vrot.slane %v1783, 4
      %v1786 = vshll.u32 %v431, 16
      %v1788 = vrot.slane %v1786, 5
      %v1789 = vsel %vm440, %v1784, %v1788
      %v1790 = vshrl.u32 %v431, 16
      %v1792 = vrot.slane %v1790, 4
      %v1793 = vor.u32 %v1792, %v1788
      %v1794 = vrot.slane %v1793, 4
      %v1796 = vshll.u32 %v432, 16
      %v1798 = vrot.slane %v1796, 5
      %v1799 = vsel %vm440, %v1794, %v1798
      %v1801 = vshrl.u32 %v433, 16
      %v1803 = vrot.slane %v1801, 4
      %v1804 = vshll.u32 %v433, 16
      %v1806 = vrot.slane %v1804, 5
      %v1807 = vor.u32 %v1803, %v1806
      %v1808 = vrot.slane %v1807, 4
      %v1810 = vshll.u32 %v434, 16
      %v1812 = vrot.slane %v1810, 5
      %v1813 = vsel %vm440, %v1808, %v1812
      %v1814 = vshrl.u32 %v434, 16
      %v1816 = vrot.slane %v1814, 4
      %v1817 = vor.u32 %v1816, %v1812
      %v1818 = vrot.slane %v1817, 4
      %v1820 = vshll.u32 %v435, 16
      %v1822 = vrot.slane %v1820, 5
      %v1823 = vsel %vm440, %v1818, %v1822
      %v1824 = vshrl.u32 %v435, 16
      %v1826 = vrot.slane %v1824, 4
      %v1827 = vor.u32 %v1826, %v1822
      %v1828 = vrot.slane %v1827, 4
      %v1830 = vshll.u32 %v436, 16
      %v1832 = vrot.slane %v1830, 5
      %v1833 = vsel %vm440, %v1828, %v1832
      %v1834 = vshrl.u32 %v436, 16
      %v1836 = vrot.slane %v1834, 4
      %v1837 = vor.u32 %v1836, %v1832
      %v1838 = vrot.slane %v1837, 4
      %v1840 = vshll.u32 %v437, 16
      %v1842 = vrot.slane %v1840, 5
      %v1843 = vsel %vm440, %v1838, %v1842
      %v1844 = vunpack.c.l.b16 %v1769
      %v1845 = vunpack.c.l.b16 %v1779
      %v1846 = vunpack.c.l.b16 %v1789
      %v1847 = vunpack.c.l.b16 %v1799
      %v1848 = vunpack.c.l.b16 %v1813
      %v1849 = vunpack.c.l.b16 %v1823
      %v1850 = vunpack.c.l.b16 %v1833
      %v1851 = vunpack.c.l.b16 %v1843
      %v1852 = vpack.c.b16 %v1845, %v1844
      %v1853 = vpack.c.b16 %v1847, %v1846
      %v1854 = vpack.c.b16 %v1849, %v1848
      %v1855 = vpack.c.b16 %v1851, %v1850
      %v1857 = vrot.slane %v428, 5
      %v1858 = vrot.slane %v1857, 4
      %v1859 = vrot.slane %v429, 5
      %v1860 = vsel %vm1227, %v1858, %v1859
      %v1861 = vrot.slane %v1859, 4
      %v1862 = vrot.slane %v430, 5
      %v1863 = vsel %vm1227, %v1861, %v1862
      %v1864 = vrot.slane %v1862, 4
      %v1865 = vrot.slane %v431, 5
      %v1866 = vsel %vm1227, %v1864, %v1865
      %v1867 = vrot.slane %v1865, 4
      %v1868 = vrot.slane %v432, 5
      %v1869 = vsel %vm1227, %v1867, %v1868
      %v1870 = vrot.slane %v433, 5
      %v1871 = vrot.slane %v1870, 4
      %v1872 = vrot.slane %v434, 5
      %v1873 = vsel %vm1227, %v1871, %v1872
      %v1874 = vrot.slane %v1872, 4
      %v1875 = vrot.slane %v435, 5
      %v1876 = vsel %vm1227, %v1874, %v1875
      %v1877 = vrot.slane %v1875, 4
      %v1878 = vrot.slane %v436, 5
      %v1879 = vsel %vm1227, %v1877, %v1878
      %v1880 = vrot.slane %v1878, 4
      %v1881 = vrot.slane %v437, 5
      %v1882 = vsel %vm1227, %v1880, %v1881
      %v1883 = vunpack.c.l.b16 %v1860
      %v1884 = vunpack.c.l.b16 %v1863
      %v1885 = vunpack.c.l.b16 %v1866
      %v1886 = vunpack.c.l.b16 %v1869
      %v1887 = vunpack.c.l.b16 %v1873
      %v1888 = vunpack.c.l.b16 %v1876
      %v1889 = vunpack.c.l.b16 %v1879
      %v1890 = vunpack.c.l.b16 %v1882
      %v1891 = vpack.c.b16 %v1884, %v1883
      %v1892 = vpack.c.b16 %v1886, %v1885
      %v1893 = vpack.c.b16 %v1888, %v1887
      %v1894 = vpack.c.b16 %v1890, %v1889
      %v1895 = vunpack.c.l.b16 %v348
      %v1896 = vunpack.c.l.b16 %v349
      %v1897 = vunpack.c.l.b16 %v350
      %v1898 = vunpack.c.l.b16 %v351
      %v1899 = vpack.c.b16 %v1896, %v1895
      %v1900 = vpack.c.b16 %v1898, %v1897
      %v1901 = vunpack.c.l.b16 %v454
      %v1902 = vunpack.c.l.b16 %v464
      %v1903 = vunpack.c.l.b16 %v474
      %v1904 = vunpack.c.l.b16 %v484
      %v1905 = vpack.c.b16 %v1902, %v1901
      %v1906 = vpack.c.b16 %v1904, %v1903
      %1907 = vrot.lane.b32.xlu0 %v1905, 4
      %v1908 = vpop.permute.xlu0 %1907
      %1909 = vrot.lane.b32.xlu0 %v1906, 4
      %v1910 = vpop.permute.xlu0 %1909
      %1911 = vrot.lane.b32.xlu0 %v1596, 4
      %v1912 = vpop.permute.xlu0 %1911
      %1913 = vrot.lane.b32.xlu0 %v1597, 4
      %v1914 = vpop.permute.xlu0 %1913
      %1915 = vrot.lane.b32.xlu0 %v1598, 4
      %v1916 = vpop.permute.xlu0 %1915
      %1917 = vrot.lane.b32.xlu0 %v1599, 4
      %v1918 = vpop.permute.xlu0 %1917
      %1919 = vrot.lane.b32.xlu0 %v1600, 4
      %v1920 = vpop.permute.xlu0 %1919
      %1921 = vrot.lane.b32.xlu0 %v1601, 4
      %v1922 = vpop.permute.xlu0 %1921
      %1923 = vrot.lane.b32.xlu0 %v1602, 4
      %v1924 = vpop.permute.xlu0 %1923
      %1925 = vrot.lane.b32.xlu0 %v1603, 4
      %v1926 = vpop.permute.xlu0 %1925
      %1927 = vrot.lane.b32.xlu0 %v1604, 4
      %v1928 = vpop.permute.xlu0 %1927
      %1929 = vrot.lane.b32.xlu0 %v1605, 4
      %v1930 = vpop.permute.xlu0 %1929
      %1931 = vrot.lane.b32.xlu0 %v1606, 4
      %v1932 = vpop.permute.xlu0 %1931
      %1933 = vrot.lane.b32.xlu0 %v1607, 4
      %v1934 = vpop.permute.xlu0 %1933
      %1935 = vrot.lane.b32.xlu0 %v1608, 4
      %v1936 = vpop.permute.xlu0 %1935
      %1937 = vrot.lane.b32.xlu0 %v1609, 4
      %v1938 = vpop.permute.xlu0 %1937
      %1939 = vrot.lane.b32.xlu0 %v1610, 4
      %v1940 = vpop.permute.xlu0 %1939
      %1941 = vrot.lane.b32.xlu0 %v1611, 4
      %v1942 = vpop.permute.xlu0 %1941
      %1943 = vrot.lane.b32.xlu0 %v1612, 4
      %v1944 = vpop.permute.xlu0 %1943
      %1945 = vrot.lane.b32.xlu0 %v1613, 4
      %v1946 = vpop.permute.xlu0 %1945
      %1947 = vrot.lane.b32.xlu0 %v1614, 4
      %v1948 = vpop.permute.xlu0 %1947
      %1949 = vrot.lane.b32.xlu0 %v1615, 4
      %v1950 = vpop.permute.xlu0 %1949
      %1951 = vrot.lane.b32.xlu0 %v1616, 4
      %v1952 = vpop.permute.xlu0 %1951
      %1953 = vrot.lane.b32.xlu0 %v1617, 4
      %v1954 = vpop.permute.xlu0 %1953
      %1955 = vrot.lane.b32.xlu0 %v1618, 4
      %v1956 = vpop.permute.xlu0 %1955
      %1957 = vrot.lane.b32.xlu0 %v1619, 4
      %v1958 = vpop.permute.xlu0 %1957
      %1959 = vrot.lane.b32.xlu0 %v1620, 4
      %v1960 = vpop.permute.xlu0 %1959
      %1961 = vrot.lane.b32.xlu0 %v1621, 4
      %v1962 = vpop.permute.xlu0 %1961
      %1963 = vrot.lane.b32.xlu0 %v1622, 4
      %v1964 = vpop.permute.xlu0 %1963
      %1965 = vrot.lane.b32.xlu0 %v1623, 4
      %v1966 = vpop.permute.xlu0 %1965
      %1967 = vrot.lane.b32.xlu0 %v1624, 4
      %v1968 = vpop.permute.xlu0 %1967
      %1969 = vrot.lane.b32.xlu0 %v1625, 4
      %v1970 = vpop.permute.xlu0 %1969
      %v1971 = vunpack.c.l.b16 %v1231
      %v1972 = vunpack.c.l.b16 %v1234
      %v1973 = vunpack.c.l.b16 %v1237
      %v1974 = vunpack.c.l.b16 %v1240
      %v1975 = vpack.c.b16 %v1972, %v1971
      %v1976 = vpack.c.b16 %v1974, %v1973
      %1977 = vrot.lane.b32.xlu0 %v1975, 8
      %v1978 = vpop.permute.xlu0 %1977
      %1979 = vrot.lane.b32.xlu0 %v1976, 8
      %v1980 = vpop.permute.xlu0 %1979
      %1981 = vrot.lane.b32.xlu0 %v1710, 8
      %v1982 = vpop.permute.xlu0 %1981
      %1983 = vrot.lane.b32.xlu0 %v1711, 8
      %v1984 = vpop.permute.xlu0 %1983
      %1985 = vrot.lane.b32.xlu0 %v1712, 8
      %v1986 = vpop.permute.xlu0 %1985
      %1987 = vrot.lane.b32.xlu0 %v1713, 8
      %v1988 = vpop.permute.xlu0 %1987
      %1989 = vrot.lane.b32.xlu0 %v1714, 8
      %v1990 = vpop.permute.xlu0 %1989
      %1991 = vrot.lane.b32.xlu0 %v1715, 8
      %v1992 = vpop.permute.xlu0 %1991
      %1993 = vrot.lane.b32.xlu0 %v1716, 8
      %v1994 = vpop.permute.xlu0 %1993
      %1995 = vrot.lane.b32.xlu0 %v1717, 8
      %v1996 = vpop.permute.xlu0 %1995
      %1997 = vrot.lane.b32.xlu0 %v1718, 8
      %v1998 = vpop.permute.xlu0 %1997
      %1999 = vrot.lane.b32.xlu0 %v1719, 8
      %v2000 = vpop.permute.xlu0 %1999
      %2001 = vrot.lane.b32.xlu0 %v1720, 8
      %v2002 = vpop.permute.xlu0 %2001
      %2003 = vrot.lane.b32.xlu0 %v1721, 8
      %v2004 = vpop.permute.xlu0 %2003
      %2005 = vrot.lane.b32.xlu0 %v1722, 8
      %v2006 = vpop.permute.xlu0 %2005
      %2007 = vrot.lane.b32.xlu0 %v1723, 8
      %v2008 = vpop.permute.xlu0 %2007
      %2009 = vrot.lane.b32.xlu0 %v1724, 8
      %v2010 = vpop.permute.xlu0 %2009
      %2011 = vrot.lane.b32.xlu0 %v1725, 8
      %v2012 = vpop.permute.xlu0 %2011
      %2013 = vrot.lane.b32.xlu0 %v1726, 8
      %v2014 = vpop.permute.xlu0 %2013
      %2015 = vrot.lane.b32.xlu0 %v1727, 8
      %v2016 = vpop.permute.xlu0 %2015
      %2017 = vrot.lane.b32.xlu0 %v1728, 8
      %v2018 = vpop.permute.xlu0 %2017
      %2019 = vrot.lane.b32.xlu0 %v1729, 8
      %v2020 = vpop.permute.xlu0 %2019
      %2021 = vrot.lane.b32.xlu0 %v1730, 8
      %v2022 = vpop.permute.xlu0 %2021
      %2023 = vrot.lane.b32.xlu0 %v1731, 8
      %v2024 = vpop.permute.xlu0 %2023
      %2025 = vrot.lane.b32.xlu0 %v1732, 8
      %v2026 = vpop.permute.xlu0 %2025
      %2027 = vrot.lane.b32.xlu0 %v1733, 8
      %v2028 = vpop.permute.xlu0 %2027
      %2029 = vrot.lane.b32.xlu0 %v1734, 8
      %v2030 = vpop.permute.xlu0 %2029
      %2031 = vrot.lane.b32.xlu0 %v1735, 8
      %v2032 = vpop.permute.xlu0 %2031
      %2033 = vrot.lane.b32.xlu0 %v1736, 8
      %v2034 = vpop.permute.xlu0 %2033
      %2035 = vrot.lane.b32.xlu0 %v1737, 8
      %v2036 = vpop.permute.xlu0 %2035
      %2037 = vrot.lane.b32.xlu0 %v1738, 8
      %v2038 = vpop.permute.xlu0 %2037
      %2039 = vrot.lane.b32.xlu0 %v1739, 8
      %v2040 = vpop.permute.xlu0 %2039
      %2041 = vrot.lane.b32.xlu0 %v1496, 12
      %v2042 = vpop.permute.xlu0 %2041
      %2043 = vrot.lane.b32.xlu0 %v1497, 12
      %v2044 = vpop.permute.xlu0 %2043
      %2045 = vrot.lane.b32.xlu0 %v1498, 12
      %v2046 = vpop.permute.xlu0 %2045
      %2047 = vrot.lane.b32.xlu0 %v1499, 12
      %v2048 = vpop.permute.xlu0 %2047
      %2049 = vrot.lane.b32.xlu0 %v1500, 12
      %v2050 = vpop.permute.xlu0 %2049
      %2051 = vrot.lane.b32.xlu0 %v1501, 12
      %v2052 = vpop.permute.xlu0 %2051
      %2053 = vrot.lane.b32.xlu0 %v1502, 12
      %v2054 = vpop.permute.xlu0 %2053
      %2055 = vrot.lane.b32.xlu0 %v1503, 12
      %v2056 = vpop.permute.xlu0 %2055
      %2057 = vrot.lane.b32.xlu0 %v1504, 12
      %v2058 = vpop.permute.xlu0 %2057
      %2059 = vrot.lane.b32.xlu0 %v1505, 12
      %v2060 = vpop.permute.xlu0 %2059
      %2061 = vrot.lane.b32.xlu0 %v1506, 12
      %v2062 = vpop.permute.xlu0 %2061
      %2063 = vrot.lane.b32.xlu0 %v1507, 12
      %v2064 = vpop.permute.xlu0 %2063
      %2065 = vrot.lane.b32.xlu0 %v1508, 12
      %v2066 = vpop.permute.xlu0 %2065
      %2067 = vrot.lane.b32.xlu0 %v1509, 12
      %v2068 = vpop.permute.xlu0 %2067
      %2069 = vrot.lane.b32.xlu0 %v1510, 12
      %v2070 = vpop.permute.xlu0 %2069
      %2071 = vrot.lane.b32.xlu0 %v1511, 12
      %v2072 = vpop.permute.xlu0 %2071
      %2073 = vrot.lane.b32.xlu0 %v1512, 12
      %v2074 = vpop.permute.xlu0 %2073
      %2075 = vrot.lane.b32.xlu0 %v1513, 12
      %v2076 = vpop.permute.xlu0 %2075
      %2077 = vrot.lane.b32.xlu0 %v1514, 12
      %v2078 = vpop.permute.xlu0 %2077
      %2079 = vrot.lane.b32.xlu0 %v1515, 12
      %v2080 = vpop.permute.xlu0 %2079
      %2081 = vrot.lane.b32.xlu0 %v1516, 12
      %v2082 = vpop.permute.xlu0 %2081
      %2083 = vrot.lane.b32.xlu0 %v1517, 12
      %v2084 = vpop.permute.xlu0 %2083
      %2085 = vrot.lane.b32.xlu0 %v1518, 12
      %v2086 = vpop.permute.xlu0 %2085
      %2087 = vrot.lane.b32.xlu0 %v1519, 12
      %v2088 = vpop.permute.xlu0 %2087
      %2089 = vrot.lane.b32.xlu0 %v1520, 12
      %v2090 = vpop.permute.xlu0 %2089
      %2091 = vrot.lane.b32.xlu0 %v1521, 12
      %v2092 = vpop.permute.xlu0 %2091
      %2093 = vrot.lane.b32.xlu0 %v1522, 12
      %v2094 = vpop.permute.xlu0 %2093
      %2095 = vrot.lane.b32.xlu0 %v1523, 12
      %v2096 = vpop.permute.xlu0 %2095
      %2097 = vrot.lane.b32.xlu0 %v1524, 12
      %v2098 = vpop.permute.xlu0 %2097
      %2099 = vrot.lane.b32.xlu0 %v1525, 12
      %v2100 = vpop.permute.xlu0 %2099
      %2101 = vrot.lane.b32.xlu0 %v1534, 12
      %v2102 = vpop.permute.xlu0 %2101
      %2103 = vrot.lane.b32.xlu0 %v1535, 12
      %v2104 = vpop.permute.xlu0 %2103
      %2105 = vrot.lane.b32.xlu0 %v1596, 16
      %v2106 = vpop.permute.xlu0 %2105
      %2107 = vrot.lane.b32.xlu0 %v1597, 16
      %v2108 = vpop.permute.xlu0 %2107
      %2109 = vrot.lane.b32.xlu0 %v1598, 16
      %v2110 = vpop.permute.xlu0 %2109
      %2111 = vrot.lane.b32.xlu0 %v1599, 16
      %v2112 = vpop.permute.xlu0 %2111
      %2113 = vrot.lane.b32.xlu0 %v1600, 16
      %v2114 = vpop.permute.xlu0 %2113
      %2115 = vrot.lane.b32.xlu0 %v1601, 16
      %v2116 = vpop.permute.xlu0 %2115
      %2117 = vrot.lane.b32.xlu0 %v1602, 16
      %v2118 = vpop.permute.xlu0 %2117
      %2119 = vrot.lane.b32.xlu0 %v1603, 16
      %v2120 = vpop.permute.xlu0 %2119
      %2121 = vrot.lane.b32.xlu0 %v1604, 16
      %v2122 = vpop.permute.xlu0 %2121
      %2123 = vrot.lane.b32.xlu0 %v1605, 16
      %v2124 = vpop.permute.xlu0 %2123
      %2125 = vrot.lane.b32.xlu0 %v1606, 16
      %v2126 = vpop.permute.xlu0 %2125
      %2127 = vrot.lane.b32.xlu0 %v1607, 16
      %v2128 = vpop.permute.xlu0 %2127
      %2129 = vrot.lane.b32.xlu0 %v1608, 16
      %v2130 = vpop.permute.xlu0 %2129
      %2131 = vrot.lane.b32.xlu0 %v1609, 16
      %v2132 = vpop.permute.xlu0 %2131
      %2133 = vrot.lane.b32.xlu0 %v1610, 16
      %v2134 = vpop.permute.xlu0 %2133
      %2135 = vrot.lane.b32.xlu0 %v1611, 16
      %v2136 = vpop.permute.xlu0 %2135
      %2137 = vrot.lane.b32.xlu0 %v1612, 16
      %v2138 = vpop.permute.xlu0 %2137
      %2139 = vrot.lane.b32.xlu0 %v1613, 16
      %v2140 = vpop.permute.xlu0 %2139
      %2141 = vrot.lane.b32.xlu0 %v1614, 16
      %v2142 = vpop.permute.xlu0 %2141
      %2143 = vrot.lane.b32.xlu0 %v1615, 16
      %v2144 = vpop.permute.xlu0 %2143
      %2145 = vrot.lane.b32.xlu0 %v1616, 16
      %v2146 = vpop.permute.xlu0 %2145
      %2147 = vrot.lane.b32.xlu0 %v1617, 16
      %v2148 = vpop.permute.xlu0 %2147
      %2149 = vrot.lane.b32.xlu0 %v1618, 16
      %v2150 = vpop.permute.xlu0 %2149
      %2151 = vrot.lane.b32.xlu0 %v1619, 16
      %v2152 = vpop.permute.xlu0 %2151
      %2153 = vrot.lane.b32.xlu0 %v1620, 16
      %v2154 = vpop.permute.xlu0 %2153
      %2155 = vrot.lane.b32.xlu0 %v1621, 16
      %v2156 = vpop.permute.xlu0 %2155
      %2157 = vrot.lane.b32.xlu0 %v1622, 16
      %v2158 = vpop.permute.xlu0 %2157
      %2159 = vrot.lane.b32.xlu0 %v1623, 16
      %v2160 = vpop.permute.xlu0 %2159
      %2161 = vrot.lane.b32.xlu0 %v1624, 16
      %v2162 = vpop.permute.xlu0 %2161
      %2163 = vrot.lane.b32.xlu0 %v1625, 16
      %v2164 = vpop.permute.xlu0 %2163
      %2165 = vrot.lane.b32.xlu0 %v1641, 16
      %v2166 = vpop.permute.xlu0 %2165
      %2167 = vrot.lane.b32.xlu0 %v1649, 16
      %v2168 = vpop.permute.xlu0 %2167
      %2169 = vrot.lane.b32.xlu0 %v1710, 20
      %v2170 = vpop.permute.xlu0 %2169
      %2171 = vrot.lane.b32.xlu0 %v1711, 20
      %v2172 = vpop.permute.xlu0 %2171
      %2173 = vrot.lane.b32.xlu0 %v1712, 20
      %v2174 = vpop.permute.xlu0 %2173
      %2175 = vrot.lane.b32.xlu0 %v1713, 20
      %v2176 = vpop.permute.xlu0 %2175
      %2177 = vrot.lane.b32.xlu0 %v1714, 20
      %v2178 = vpop.permute.xlu0 %2177
      %2179 = vrot.lane.b32.xlu0 %v1715, 20
      %v2180 = vpop.permute.xlu0 %2179
      %2181 = vrot.lane.b32.xlu0 %v1716, 20
      %v2182 = vpop.permute.xlu0 %2181
      %2183 = vrot.lane.b32.xlu0 %v1717, 20
      %v2184 = vpop.permute.xlu0 %2183
      %2185 = vrot.lane.b32.xlu0 %v1718, 20
      %v2186 = vpop.permute.xlu0 %2185
      %2187 = vrot.lane.b32.xlu0 %v1719, 20
      %v2188 = vpop.permute.xlu0 %2187
      %2189 = vrot.lane.b32.xlu0 %v1720, 20
      %v2190 = vpop.permute.xlu0 %2189
      %2191 = vrot.lane.b32.xlu0 %v1721, 20
      %v2192 = vpop.permute.xlu0 %2191
      %2193 = vrot.lane.b32.xlu0 %v1722, 20
      %v2194 = vpop.permute.xlu0 %2193
      %2195 = vrot.lane.b32.xlu0 %v1723, 20
      %v2196 = vpop.permute.xlu0 %2195
      %2197 = vrot.lane.b32.xlu0 %v1724, 20
      %v2198 = vpop.permute.xlu0 %2197
      %2199 = vrot.lane.b32.xlu0 %v1725, 20
      %v2200 = vpop.permute.xlu0 %2199
      %2201 = vrot.lane.b32.xlu0 %v1726, 20
      %v2202 = vpop.permute.xlu0 %2201
      %2203 = vrot.lane.b32.xlu0 %v1727, 20
      %v2204 = vpop.permute.xlu0 %2203
      %2205 = vrot.lane.b32.xlu0 %v1728, 20
      %v2206 = vpop.permute.xlu0 %2205
      %2207 = vrot.lane.b32.xlu0 %v1729, 20
      %v2208 = vpop.permute.xlu0 %2207
      %2209 = vrot.lane.b32.xlu0 %v1730, 20
      %v2210 = vpop.permute.xlu0 %2209
      %2211 = vrot.lane.b32.xlu0 %v1731, 20
      %v2212 = vpop.permute.xlu0 %2211
      %2213 = vrot.lane.b32.xlu0 %v1732, 20
      %v2214 = vpop.permute.xlu0 %2213
      %2215 = vrot.lane.b32.xlu0 %v1733, 20
      %v2216 = vpop.permute.xlu0 %2215
      %2217 = vrot.lane.b32.xlu0 %v1734, 20
      %v2218 = vpop.permute.xlu0 %2217
      %2219 = vrot.lane.b32.xlu0 %v1735, 20
      %v2220 = vpop.permute.xlu0 %2219
      %2221 = vrot.lane.b32.xlu0 %v1736, 20
      %v2222 = vpop.permute.xlu0 %2221
      %2223 = vrot.lane.b32.xlu0 %v1737, 20
      %v2224 = vpop.permute.xlu0 %2223
      %2225 = vrot.lane.b32.xlu0 %v1738, 20
      %v2226 = vpop.permute.xlu0 %2225
      %2227 = vrot.lane.b32.xlu0 %v1739, 20
      %v2228 = vpop.permute.xlu0 %2227
      %2229 = vrot.lane.b32.xlu0 %v1743, 20
      %v2230 = vpop.permute.xlu0 %2229
      %2231 = vrot.lane.b32.xlu0 %v1745, 20
      %v2232 = vpop.permute.xlu0 %2231
      %2233 = vrot.lane.b32.xlu0 %v1498, 24
      %v2234 = vpop.permute.xlu0 %2233
      %2235 = vrot.lane.b32.xlu0 %v1499, 24
      %v2236 = vpop.permute.xlu0 %2235
      %2237 = vrot.lane.b32.xlu0 %v1500, 24
      %v2238 = vpop.permute.xlu0 %2237
      %2239 = vrot.lane.b32.xlu0 %v1501, 24
      %v2240 = vpop.permute.xlu0 %2239
      %2241 = vrot.lane.b32.xlu0 %v1502, 24
      %v2242 = vpop.permute.xlu0 %2241
      %2243 = vrot.lane.b32.xlu0 %v1503, 24
      %v2244 = vpop.permute.xlu0 %2243
      %2245 = vrot.lane.b32.xlu0 %v1504, 24
      %v2246 = vpop.permute.xlu0 %2245
      %2247 = vrot.lane.b32.xlu0 %v1505, 24
      %v2248 = vpop.permute.xlu0 %2247
      %2249 = vrot.lane.b32.xlu0 %v1506, 24
      %v2250 = vpop.permute.xlu0 %2249
      %2251 = vrot.lane.b32.xlu0 %v1507, 24
      %v2252 = vpop.permute.xlu0 %2251
      %2253 = vrot.lane.b32.xlu0 %v1508, 24
      %v2254 = vpop.permute.xlu0 %2253
      %2255 = vrot.lane.b32.xlu0 %v1509, 24
      %v2256 = vpop.permute.xlu0 %2255
      %2257 = vrot.lane.b32.xlu0 %v1510, 24
      %v2258 = vpop.permute.xlu0 %2257
      %2259 = vrot.lane.b32.xlu0 %v1511, 24
      %v2260 = vpop.permute.xlu0 %2259
      %2261 = vrot.lane.b32.xlu0 %v1512, 24
      %v2262 = vpop.permute.xlu0 %2261
      %2263 = vrot.lane.b32.xlu0 %v1513, 24
      %v2264 = vpop.permute.xlu0 %2263
      %2265 = vrot.lane.b32.xlu0 %v1514, 24
      %v2266 = vpop.permute.xlu0 %2265
      %2267 = vrot.lane.b32.xlu0 %v1515, 24
      %v2268 = vpop.permute.xlu0 %2267
      %2269 = vrot.lane.b32.xlu0 %v1516, 24
      %v2270 = vpop.permute.xlu0 %2269
      %2271 = vrot.lane.b32.xlu0 %v1517, 24
      %v2272 = vpop.permute.xlu0 %2271
      %2273 = vrot.lane.b32.xlu0 %v1518, 24
      %v2274 = vpop.permute.xlu0 %2273
      %2275 = vrot.lane.b32.xlu0 %v1519, 24
      %v2276 = vpop.permute.xlu0 %2275
      %2277 = vrot.lane.b32.xlu0 %v1520, 24
      %v2278 = vpop.permute.xlu0 %2277
      %2279 = vrot.lane.b32.xlu0 %v1521, 24
      %v2280 = vpop.permute.xlu0 %2279
      %2281 = vrot.lane.b32.xlu0 %v1522, 24
      %v2282 = vpop.permute.xlu0 %2281
      %2283 = vrot.lane.b32.xlu0 %v1523, 24
      %v2284 = vpop.permute.xlu0 %2283
      %2285 = vrot.lane.b32.xlu0 %v1524, 24
      %v2286 = vpop.permute.xlu0 %2285
      %2287 = vrot.lane.b32.xlu0 %v1525, 24
      %v2288 = vpop.permute.xlu0 %2287
      %2289 = vrot.lane.b32.xlu0 %v1534, 24
      %v2290 = vpop.permute.xlu0 %2289
      %2291 = vrot.lane.b32.xlu0 %v1535, 24
      %v2292 = vpop.permute.xlu0 %2291
      %2293 = vrot.lane.b32.xlu0 %v1754, 24
      %v2294 = vpop.permute.xlu0 %2293
      %2295 = vrot.lane.b32.xlu0 %v1755, 24
      %v2296 = vpop.permute.xlu0 %2295
      %2297 = vrot.lane.b32.xlu0 %v1598, 28
      %v2298 = vpop.permute.xlu0 %2297
      %2299 = vrot.lane.b32.xlu0 %v1599, 28
      %v2300 = vpop.permute.xlu0 %2299
      %2301 = vrot.lane.b32.xlu0 %v1600, 28
      %v2302 = vpop.permute.xlu0 %2301
      %2303 = vrot.lane.b32.xlu0 %v1601, 28
      %v2304 = vpop.permute.xlu0 %2303
      %2305 = vrot.lane.b32.xlu0 %v1602, 28
      %v2306 = vpop.permute.xlu0 %2305
      %2307 = vrot.lane.b32.xlu0 %v1603, 28
      %v2308 = vpop.permute.xlu0 %2307
      %2309 = vrot.lane.b32.xlu0 %v1604, 28
      %v2310 = vpop.permute.xlu0 %2309
      %2311 = vrot.lane.b32.xlu0 %v1605, 28
      %v2312 = vpop.permute.xlu0 %2311
      %2313 = vrot.lane.b32.xlu0 %v1606, 28
      %v2314 = vpop.permute.xlu0 %2313
      %2315 = vrot.lane.b32.xlu0 %v1607, 28
      %v2316 = vpop.permute.xlu0 %2315
      %2317 = vrot.lane.b32.xlu0 %v1608, 28
      %v2318 = vpop.permute.xlu0 %2317
      %2319 = vrot.lane.b32.xlu0 %v1609, 28
      %v2320 = vpop.permute.xlu0 %2319
      %2321 = vrot.lane.b32.xlu0 %v1610, 28
      %v2322 = vpop.permute.xlu0 %2321
      %2323 = vrot.lane.b32.xlu0 %v1611, 28
      %v2324 = vpop.permute.xlu0 %2323
      %2325 = vrot.lane.b32.xlu0 %v1612, 28
      %v2326 = vpop.permute.xlu0 %2325
      %2327 = vrot.lane.b32.xlu0 %v1613, 28
      %v2328 = vpop.permute.xlu0 %2327
      %2329 = vrot.lane.b32.xlu0 %v1614, 28
      %v2330 = vpop.permute.xlu0 %2329
      %2331 = vrot.lane.b32.xlu0 %v1615, 28
      %v2332 = vpop.permute.xlu0 %2331
      %2333 = vrot.lane.b32.xlu0 %v1616, 28
      %v2334 = vpop.permute.xlu0 %2333
      %2335 = vrot.lane.b32.xlu0 %v1617, 28
      %v2336 = vpop.permute.xlu0 %2335
      %2337 = vrot.lane.b32.xlu0 %v1618, 28
      %v2338 = vpop.permute.xlu0 %2337
      %2339 = vrot.lane.b32.xlu0 %v1619, 28
      %v2340 = vpop.permute.xlu0 %2339
      %2341 = vrot.lane.b32.xlu0 %v1620, 28
      %v2342 = vpop.permute.xlu0 %2341
      %2343 = vrot.lane.b32.xlu0 %v1621, 28
      %v2344 = vpop.permute.xlu0 %2343
      %2345 = vrot.lane.b32.xlu0 %v1622, 28
      %v2346 = vpop.permute.xlu0 %2345
      %2347 = vrot.lane.b32.xlu0 %v1623, 28
      %v2348 = vpop.permute.xlu0 %2347
      %2349 = vrot.lane.b32.xlu0 %v1624, 28
      %v2350 = vpop.permute.xlu0 %2349
      %2351 = vrot.lane.b32.xlu0 %v1625, 28
      %v2352 = vpop.permute.xlu0 %2351
      %2353 = vrot.lane.b32.xlu0 %v1852, 28
      %v2354 = vpop.permute.xlu0 %2353
      %2355 = vrot.lane.b32.xlu0 %v1853, 28
      %v2356 = vpop.permute.xlu0 %2355
      %2357 = vrot.lane.b32.xlu0 %v1854, 28
      %v2358 = vpop.permute.xlu0 %2357
      %2359 = vrot.lane.b32.xlu0 %v1855, 28
      %v2360 = vpop.permute.xlu0 %2359
      %2361 = vrot.lane.b32.xlu0 %v1712, 32
      %v2362 = vpop.permute.xlu0 %2361
      %2363 = vrot.lane.b32.xlu0 %v1713, 32
      %v2364 = vpop.permute.xlu0 %2363
      %2365 = vrot.lane.b32.xlu0 %v1714, 32
      %v2366 = vpop.permute.xlu0 %2365
      %2367 = vrot.lane.b32.xlu0 %v1715, 32
      %v2368 = vpop.permute.xlu0 %2367
      %2369 = vrot.lane.b32.xlu0 %v1716, 32
      %v2370 = vpop.permute.xlu0 %2369
      %2371 = vrot.lane.b32.xlu0 %v1717, 32
      %v2372 = vpop.permute.xlu0 %2371
      %2373 = vrot.lane.b32.xlu0 %v1718, 32
      %v2374 = vpop.permute.xlu0 %2373
      %2375 = vrot.lane.b32.xlu0 %v1719, 32
      %v2376 = vpop.permute.xlu0 %2375
      %2377 = vrot.lane.b32.xlu0 %v1720, 32
      %v2378 = vpop.permute.xlu0 %2377
      %2379 = vrot.lane.b32.xlu0 %v1721, 32
      %v2380 = vpop.permute.xlu0 %2379
      %2381 = vrot.lane.b32.xlu0 %v1722, 32
      %v2382 = vpop.permute.xlu0 %2381
      %2383 = vrot.lane.b32.xlu0 %v1723, 32
      %v2384 = vpop.permute.xlu0 %2383
      %2385 = vrot.lane.b32.xlu0 %v1724, 32
      %v2386 = vpop.permute.xlu0 %2385
      %2387 = vrot.lane.b32.xlu0 %v1725, 32
      %v2388 = vpop.permute.xlu0 %2387
      %2389 = vrot.lane.b32.xlu0 %v1726, 32
      %v2390 = vpop.permute.xlu0 %2389
      %2391 = vrot.lane.b32.xlu0 %v1727, 32
      %v2392 = vpop.permute.xlu0 %2391
      %2393 = vrot.lane.b32.xlu0 %v1728, 32
      %v2394 = vpop.permute.xlu0 %2393
      %2395 = vrot.lane.b32.xlu0 %v1729, 32
      %v2396 = vpop.permute.xlu0 %2395
      %2397 = vrot.lane.b32.xlu0 %v1730, 32
      %v2398 = vpop.permute.xlu0 %2397
      %2399 = vrot.lane.b32.xlu0 %v1731, 32
      %v2400 = vpop.permute.xlu0 %2399
      %2401 = vrot.lane.b32.xlu0 %v1732, 32
      %v2402 = vpop.permute.xlu0 %2401
      %2403 = vrot.lane.b32.xlu0 %v1733, 32
      %v2404 = vpop.permute.xlu0 %2403
      %2405 = vrot.lane.b32.xlu0 %v1734, 32
      %v2406 = vpop.permute.xlu0 %2405
      %2407 = vrot.lane.b32.xlu0 %v1735, 32
      %v2408 = vpop.permute.xlu0 %2407
      %2409 = vrot.lane.b32.xlu0 %v1736, 32
      %v2410 = vpop.permute.xlu0 %2409
      %2411 = vrot.lane.b32.xlu0 %v1737, 32
      %v2412 = vpop.permute.xlu0 %2411
      %2413 = vrot.lane.b32.xlu0 %v1738, 32
      %v2414 = vpop.permute.xlu0 %2413
      %2415 = vrot.lane.b32.xlu0 %v1739, 32
      %v2416 = vpop.permute.xlu0 %2415
      %2417 = vrot.lane.b32.xlu0 %v1891, 32
      %v2418 = vpop.permute.xlu0 %2417
      %2419 = vrot.lane.b32.xlu0 %v1892, 32
      %v2420 = vpop.permute.xlu0 %2419
      %2421 = vrot.lane.b32.xlu0 %v1893, 32
      %v2422 = vpop.permute.xlu0 %2421
      %2423 = vrot.lane.b32.xlu0 %v1894, 32
      %v2424 = vpop.permute.xlu0 %2423
      %vm2425 = vcmask 31744
      %v2428 = vsel %vm2425, %v1899, %v1908
      %v2431 = vsel %vm2425, %v1900, %v1910
      %v2434 = vsel %vm2425, %v1496, %v1912
      %v2437 = vsel %vm2425, %v1497, %v1914
      %v2440 = vsel %vm2425, %v1498, %v1916
      %v2443 = vsel %vm2425, %v1499, %v1918
      %v2446 = vsel %vm2425, %v1500, %v1920
      %v2449 = vsel %vm2425, %v1501, %v1922
      %v2452 = vsel %vm2425, %v1502, %v1924
      %v2455 = vsel %vm2425, %v1503, %v1926
      %v2458 = vsel %vm2425, %v1504, %v1928
      %v2461 = vsel %vm2425, %v1505, %v1930
      %v2464 = vsel %vm2425, %v1506, %v1932
      %v2467 = vsel %vm2425, %v1507, %v1934
      %v2470 = vsel %vm2425, %v1508, %v1936
      %v2473 = vsel %vm2425, %v1509, %v1938
      %v2476 = vsel %vm2425, %v1510, %v1940
      %v2479 = vsel %vm2425, %v1511, %v1942
      %v2482 = vsel %vm2425, %v1512, %v1944
      %v2485 = vsel %vm2425, %v1513, %v1946
      %v2488 = vsel %vm2425, %v1514, %v1948
      %v2491 = vsel %vm2425, %v1515, %v1950
      %v2494 = vsel %vm2425, %v1516, %v1952
      %v2497 = vsel %vm2425, %v1517, %v1954
      %v2500 = vsel %vm2425, %v1518, %v1956
      %v2503 = vsel %vm2425, %v1519, %v1958
      %v2506 = vsel %vm2425, %v1520, %v1960
      %v2509 = vsel %vm2425, %v1521, %v1962
      %v2512 = vsel %vm2425, %v1522, %v1964
      %v2515 = vsel %vm2425, %v1523, %v1966
      %v2518 = vsel %vm2425, %v1524, %v1968
      %v2521 = vsel %vm2425, %v1525, %v1970
      %vm2522 = vcmask 64512
      %v2524 = vsel %vm2522, %v2428, %v1978
      %v2526 = vsel %vm2522, %v2431, %v1980
      %v2528 = vsel %vm2522, %v2434, %v1982
      %v2530 = vsel %vm2522, %v2437, %v1984
      %v2532 = vsel %vm2522, %v2440, %v1986
      %v2534 = vsel %vm2522, %v2443, %v1988
      %v2536 = vsel %vm2522, %v2446, %v1990
      %v2538 = vsel %vm2522, %v2449, %v1992
      %v2540 = vsel %vm2522, %v2452, %v1994
      %v2542 = vsel %vm2522, %v2455, %v1996
      %v2544 = vsel %vm2522, %v2458, %v1998
      %v2546 = vsel %vm2522, %v2461, %v2000
      %v2548 = vsel %vm2522, %v2464, %v2002
      %v2550 = vsel %vm2522, %v2467, %v2004
      %v2552 = vsel %vm2522, %v2470, %v2006
      %v2554 = vsel %vm2522, %v2473, %v2008
      %v2556 = vsel %vm2522, %v2476, %v2010
      %v2558 = vsel %vm2522, %v2479, %v2012
      %v2560 = vsel %vm2522, %v2482, %v2014
      %v2562 = vsel %vm2522, %v2485, %v2016
      %v2564 = vsel %vm2522, %v2488, %v2018
      %v2566 = vsel %vm2522, %v2491, %v2020
      %v2568 = vsel %vm2522, %v2494, %v2022
      %v2570 = vsel %vm2522, %v2497, %v2024
      %v2572 = vsel %vm2522, %v2500, %v2026
      %v2574 = vsel %vm2522, %v2503, %v2028
      %v2576 = vsel %vm2522, %v2506, %v2030
      %v2578 = vsel %vm2522, %v2509, %v2032
      %v2580 = vsel %vm2522, %v2512, %v2034
      %v2582 = vsel %vm2522, %v2515, %v2036
      %v2584 = vsel %vm2522, %v2518, %v2038
      %v2586 = vsel %vm2522, %v2521, %v2040
      %vm2587 = vcmask 97280
      %v2589 = vsel %vm2587, %v2524, %v2042
      %v2591 = vsel %vm2587, %v2526, %v2044
      %v2593 = vsel %vm2587, %v2528, %v2046
      %v2595 = vsel %vm2587, %v2530, %v2048
      %v2597 = vsel %vm2587, %v2532, %v2050
      %v2599 = vsel %vm2587, %v2534, %v2052
      %v2601 = vsel %vm2587, %v2536, %v2054
      %v2603 = vsel %vm2587, %v2538, %v2056
      %v2605 = vsel %vm2587, %v2540, %v2058
      %v2607 = vsel %vm2587, %v2542, %v2060
      %v2609 = vsel %vm2587, %v2544, %v2062
      %v2611 = vsel %vm2587, %v2546, %v2064
      %v2613 = vsel %vm2587, %v2548, %v2066
      %v2615 = vsel %vm2587, %v2550, %v2068
      %v2617 = vsel %vm2587, %v2552, %v2070
      %v2619 = vsel %vm2587, %v2554, %v2072
      %v2621 = vsel %vm2587, %v2556, %v2074
      %v2623 = vsel %vm2587, %v2558, %v2076
      %v2625 = vsel %vm2587, %v2560, %v2078
      %v2627 = vsel %vm2587, %v2562, %v2080
      %v2629 = vsel %vm2587, %v2564, %v2082
      %v2631 = vsel %vm2587, %v2566, %v2084
      %v2633 = vsel %vm2587, %v2568, %v2086
      %v2635 = vsel %vm2587, %v2570, %v2088
      %v2637 = vsel %vm2587, %v2572, %v2090
      %v2639 = vsel %vm2587, %v2574, %v2092
      %v2641 = vsel %vm2587, %v2576, %v2094
      %v2643 = vsel %vm2587, %v2578, %v2096
      %v2645 = vsel %vm2587, %v2580, %v2098
      %v2647 = vsel %vm2587, %v2582, %v2100
      %v2649 = vsel %vm2587, %v2584, %v2102
      %v2651 = vsel %vm2587, %v2586, %v2104
      %vm2652 = vcmask 130048
      %v2654 = vsel %vm2652, %v2589, %v2106
      %v2656 = vsel %vm2652, %v2591, %v2108
      %v2658 = vsel %vm2652, %v2593, %v2110
      %v2660 = vsel %vm2652, %v2595, %v2112
      %v2662 = vsel %vm2652, %v2597, %v2114
      %v2664 = vsel %vm2652, %v2599, %v2116
      %v2666 = vsel %vm2652, %v2601, %v2118
      %v2668 = vsel %vm2652, %v2603, %v2120
      %v2670 = vsel %vm2652, %v2605, %v2122
      %v2672 = vsel %vm2652, %v2607, %v2124
      %v2674 = vsel %vm2652, %v2609, %v2126
      %v2676 = vsel %vm2652, %v2611, %v2128
      %v2678 = vsel %vm2652, %v2613, %v2130
      %v2680 = vsel %vm2652, %v2615, %v2132
      %v2682 = vsel %vm2652, %v2617, %v2134
      %v2684 = vsel %vm2652, %v2619, %v2136
      %v2686 = vsel %vm2652, %v2621, %v2138
      %v2688 = vsel %vm2652, %v2623, %v2140
      %v2690 = vsel %vm2652, %v2625, %v2142
      %v2692 = vsel %vm2652, %v2627, %v2144
      %v2694 = vsel %vm2652, %v2629, %v2146
      %v2696 = vsel %vm2652, %v2631, %v2148
      %v2698 = vsel %vm2652, %v2633, %v2150
      %v2700 = vsel %vm2652, %v2635, %v2152
      %v2702 = vsel %vm2652, %v2637, %v2154
      %v2704 = vsel %vm2652, %v2639, %v2156
      %v2706 = vsel %vm2652, %v2641, %v2158
      %v2708 = vsel %vm2652, %v2643, %v2160
      %v2710 = vsel %vm2652, %v2645, %v2162
      %v2712 = vsel %vm2652, %v2647, %v2164
      %v2714 = vsel %vm2652, %v2649, %v2166
      %v2716 = vsel %vm2652, %v2651, %v2168
      %vm2717 = vcmask 162816
      %v2719 = vsel %vm2717, %v2654, %v2170
      %v2721 = vsel %vm2717, %v2656, %v2172
      %v2723 = vsel %vm2717, %v2658, %v2174
      %v2725 = vsel %vm2717, %v2660, %v2176
      %v2727 = vsel %vm2717, %v2662, %v2178
      %v2729 = vsel %vm2717, %v2664, %v2180
      %v2731 = vsel %vm2717, %v2666, %v2182
      %v2733 = vsel %vm2717, %v2668, %v2184
      %v2735 = vsel %vm2717, %v2670, %v2186
      %v2737 = vsel %vm2717, %v2672, %v2188
      %v2739 = vsel %vm2717, %v2674, %v2190
      %v2741 = vsel %vm2717, %v2676, %v2192
      %v2743 = vsel %vm2717, %v2678, %v2194
      %v2745 = vsel %vm2717, %v2680, %v2196
      %v2747 = vsel %vm2717, %v2682, %v2198
      %v2749 = vsel %vm2717, %v2684, %v2200
      %v2751 = vsel %vm2717, %v2686, %v2202
      %v2753 = vsel %vm2717, %v2688, %v2204
      %v2755 = vsel %vm2717, %v2690, %v2206
      %v2757 = vsel %vm2717, %v2692, %v2208
      %v2759 = vsel %vm2717, %v2694, %v2210
      %v2761 = vsel %vm2717, %v2696, %v2212
      %v2763 = vsel %vm2717, %v2698, %v2214
      %v2765 = vsel %vm2717, %v2700, %v2216
      %v2767 = vsel %vm2717, %v2702, %v2218
      %v2769 = vsel %vm2717, %v2704, %v2220
      %v2771 = vsel %vm2717, %v2706, %v2222
      %v2773 = vsel %vm2717, %v2708, %v2224
      %v2775 = vsel %vm2717, %v2710, %v2226
      %v2777 = vsel %vm2717, %v2712, %v2228
      %v2779 = vsel %vm2717, %v2714, %v2230
      %v2781 = vsel %vm2717, %v2716, %v2232
      %vm2782 = vcmask 195584
      %v2784 = vsel %vm2782, %v2719, %v2234
      %v2786 = vsel %vm2782, %v2721, %v2236
      %v2788 = vsel %vm2782, %v2723, %v2238
      %v2790 = vsel %vm2782, %v2725, %v2240
      %v2792 = vsel %vm2782, %v2727, %v2242
      %v2794 = vsel %vm2782, %v2729, %v2244
      %v2796 = vsel %vm2782, %v2731, %v2246
      %v2798 = vsel %vm2782, %v2733, %v2248
      %v2800 = vsel %vm2782, %v2735, %v2250
      %v2802 = vsel %vm2782, %v2737, %v2252
      %v2804 = vsel %vm2782, %v2739, %v2254
      %v2806 = vsel %vm2782, %v2741, %v2256
      %v2808 = vsel %vm2782, %v2743, %v2258
      %v2810 = vsel %vm2782, %v2745, %v2260
      %v2812 = vsel %vm2782, %v2747, %v2262
      %v2814 = vsel %vm2782, %v2749, %v2264
      %v2816 = vsel %vm2782, %v2751, %v2266
      %v2818 = vsel %vm2782, %v2753, %v2268
      %v2820 = vsel %vm2782, %v2755, %v2270
      %v2822 = vsel %vm2782, %v2757, %v2272
      %v2824 = vsel %vm2782, %v2759, %v2274
      %v2826 = vsel %vm2782, %v2761, %v2276
      %v2828 = vsel %vm2782, %v2763, %v2278
      %v2830 = vsel %vm2782, %v2765, %v2280
      %v2832 = vsel %vm2782, %v2767, %v2282
      %v2834 = vsel %vm2782, %v2769, %v2284
      %v2836 = vsel %vm2782, %v2771, %v2286
      %v2838 = vsel %vm2782, %v2773, %v2288
      %v2840 = vsel %vm2782, %v2775, %v2290
      %v2842 = vsel %vm2782, %v2777, %v2292
      %v2844 = vsel %vm2782, %v2779, %v2294
      %v2846 = vsel %vm2782, %v2781, %v2296
      %vm2847 = vcmask 228352
      %v2849 = vsel %vm2847, %v2784, %v2298
      %v2851 = vsel %vm2847, %v2786, %v2300
      %v2853 = vsel %vm2847, %v2788, %v2302
      %v2855 = vsel %vm2847, %v2790, %v2304
      %v2857 = vsel %vm2847, %v2792, %v2306
      %v2859 = vsel %vm2847, %v2794, %v2308
      %v2861 = vsel %vm2847, %v2796, %v2310
      %v2863 = vsel %vm2847, %v2798, %v2312
      %v2865 = vsel %vm2847, %v2800, %v2314
      %v2867 = vsel %vm2847, %v2802, %v2316
      %v2869 = vsel %vm2847, %v2804, %v2318
      %v2871 = vsel %vm2847, %v2806, %v2320
      %v2873 = vsel %vm2847, %v2808, %v2322
      %v2875 = vsel %vm2847, %v2810, %v2324
      %v2877 = vsel %vm2847, %v2812, %v2326
      %v2879 = vsel %vm2847, %v2814, %v2328
      %v2881 = vsel %vm2847, %v2816, %v2330
      %v2883 = vsel %vm2847, %v2818, %v2332
      %v2885 = vsel %vm2847, %v2820, %v2334
      %v2887 = vsel %vm2847, %v2822, %v2336
      %v2889 = vsel %vm2847, %v2824, %v2338
      %v2891 = vsel %vm2847, %v2826, %v2340
      %v2893 = vsel %vm2847, %v2828, %v2342
      %v2895 = vsel %vm2847, %v2830, %v2344
      %v2897 = vsel %vm2847, %v2832, %v2346
      %v2899 = vsel %vm2847, %v2834, %v2348
      %v2901 = vsel %vm2847, %v2836, %v2350
      %v2903 = vsel %vm2847, %v2838, %v2352
      %v2905 = vsel %vm2847, %v2840, %v2354
      %v2907 = vsel %vm2847, %v2842, %v2356
      %v2909 = vsel %vm2847, %v2844, %v2358
      %v2911 = vsel %vm2847, %v2846, %v2360
      %vm2912 = vcmask 261120
      %v2914 = vsel %vm2912, %v2849, %v2362
      %v2916 = vsel %vm2912, %v2851, %v2364
      %v2918 = vsel %vm2912, %v2853, %v2366
      %v2920 = vsel %vm2912, %v2855, %v2368
      %v2922 = vsel %vm2912, %v2857, %v2370
      %v2924 = vsel %vm2912, %v2859, %v2372
      %v2926 = vsel %vm2912, %v2861, %v2374
      %v2928 = vsel %vm2912, %v2863, %v2376
      %v2930 = vsel %vm2912, %v2865, %v2378
      %v2932 = vsel %vm2912, %v2867, %v2380
      %v2934 = vsel %vm2912, %v2869, %v2382
      %v2936 = vsel %vm2912, %v2871, %v2384
      %v2938 = vsel %vm2912, %v2873, %v2386
      %v2940 = vsel %vm2912, %v2875, %v2388
      %v2942 = vsel %vm2912, %v2877, %v2390
      %v2944 = vsel %vm2912, %v2879, %v2392
      %v2946 = vsel %vm2912, %v2881, %v2394
      %v2948 = vsel %vm2912, %v2883, %v2396
      %v2950 = vsel %vm2912, %v2885, %v2398
      %v2952 = vsel %vm2912, %v2887, %v2400
      %v2954 = vsel %vm2912, %v2889, %v2402
      %v2956 = vsel %vm2912, %v2891, %v2404
      %v2958 = vsel %vm2912, %v2893, %v2406
      %v2960 = vsel %vm2912, %v2895, %v2408
      %v2962 = vsel %vm2912, %v2897, %v2410
      %v2964 = vsel %vm2912, %v2899, %v2412
      %v2966 = vsel %vm2912, %v2901, %v2414
      %v2968 = vsel %vm2912, %v2903, %v2416
      %v2970 = vsel %vm2912, %v2905, %v2418
      %v2972 = vsel %vm2912, %v2907, %v2420
      %v2974 = vsel %vm2912, %v2909, %v2422
      %v2976 = vsel %vm2912, %v2911, %v2424
      %v2977 = vld [vmem:[%s2] sm:$0xf]
      %v2978 = vld [vmem:[%s2 + $0x4] sm:$0xf]
      %v2979 = vld [vmem:[%s2 + $0x8] sm:$0xf]
      %v2980 = vld [vmem:[%s2 + $0xc] sm:$0xf]
      %v2981 = vld [vmem:[%s2 + $0x10] sm:$0x3]
      %v2987 = vunpack.c.l.b16 %v2977
      %v2988 = vunpack.c.l.b16 %v2978
      %v2989 = vunpack.c.l.b16 %v2979
      %v2990 = vunpack.c.l.b16 %v2980
      %v2991 = vunpack.c.l.b16 %v2981
      %v2992 = vpack.c.b16 %v2988, %v2987
      %v2993 = vpack.c.b16 %v2990, %v2989
      %v2994 = vpack.c.b16 %v2991, %v2991
      %vm2997 = vcmask 293888
      %v2998 = vsel %vm2997, %v2914, 0
      %v3000 = vsel %vm2997, %v2916, 0
      %v3002 = vsel %vm2997, %v2918, 0
      %v3004 = vsel %vm2997, %v2920, 0
      %v3006 = vsel %vm2997, %v2922, 0
      %v3008 = vsel %vm2997, %v2924, 0
      %v3010 = vsel %vm2997, %v2926, 0
      %v3012 = vsel %vm2997, %v2928, 0
      %v3014 = vsel %vm2997, %v2930, 0
      %v3016 = vsel %vm2997, %v2932, 0
      %v3018 = vsel %vm2997, %v2934, 0
      %v3020 = vsel %vm2997, %v2936, 0
      %v3022 = vsel %vm2997, %v2938, 0
      %v3024 = vsel %vm2997, %v2940, 0
      %v3026 = vsel %vm2997, %v2942, 0
      %v3028 = vsel %vm2997, %v2944, 0
      %v3030 = vsel %vm2997, %v2946, 0
      %v3032 = vsel %vm2997, %v2948, 0
      %v3034 = vsel %vm2997, %v2950, 0
      %v3036 = vsel %vm2997, %v2952, 0
      %v3038 = vsel %vm2997, %v2954, 0
      %v3040 = vsel %vm2997, %v2956, 0
      %v3042 = vsel %vm2997, %v2958, 0
      %v3044 = vsel %vm2997, %v2960, 0
      %v3046 = vsel %vm2997, %v2962, 0
      %v3048 = vsel %vm2997, %v2964, 0
      %v3050 = vsel %vm2997, %v2966, 0
      %v3052 = vsel %vm2997, %v2968, 0
      %v3054 = vsel %vm2997, %v2970, 0
      %v3056 = vsel %vm2997, %v2972, 0
      %v3058 = vsel %vm2997, %v2974, 0
      %v3060 = vsel %vm2997, %v2976, 0
      %vm3062 = vcmask 1041408
      %v3064 = vsel %vm3062, %v2994, 0
      %3066 = vmatprep.subr.bf16.mxu0 0
      %3067 = vmatpush1.bf16.msra.mxu0 %v2992
      %3068 = vmatprep.subr.bf16.mxu0 0
      %3069 = vmatpush1.bf16.msra.mxu0 %v2993
      %3070 = vmatprep.subr.bf16.mxu0 0
      %3071 = vmatpush1.bf16.msra.mxu0 %v3064
      %3072 = vmatprep.subr.bf16.mxu0 0
      %3073 = vmatpush1.bf16.msra.mxu0 0
      %3074 = vmatprep.subr.bf16.mxu0 0
      %3075 = vmatpush1.bf16.msra.mxu0 0
      %3076 = vmatprep.subr.bf16.mxu0 0
      %3077 = vmatpush1.bf16.msra.mxu0 0
      %3078 = vmatprep.subr.bf16.mxu0 0
      %3079 = vmatpush1.bf16.msra.mxu0 0
      %3080 = vmatprep.subr.bf16.mxu0 0
      %3081 = vmatpush1.bf16.msra.mxu0 0
      %3082 = vmatprep.subr.bf16.mxu0 0
      %3083 = vmatpush1.bf16.msra.mxu0 0
      %3084 = vmatprep.subr.bf16.mxu0 0
      %3085 = vmatpush1.bf16.msra.mxu0 0
      %3086 = vmatprep.subr.bf16.mxu0 0
      %3087 = vmatpush1.bf16.msra.mxu0 0
      %3088 = vmatprep.subr.bf16.mxu0 0
      %3089 = vmatpush1.bf16.msra.mxu0 0
      %3090 = vmatprep.subr.bf16.mxu0 0
      %3091 = vmatpush1.bf16.msra.mxu0 0
      %3092 = vmatprep.subr.bf16.mxu0 0
      %3093 = vmatpush1.bf16.msra.mxu0 0
      %3094 = vmatprep.subr.bf16.mxu0 0
      %3095 = vmatpush1.bf16.msra.mxu0 0
      %3096 = vmatprep.subr.bf16.mxu0 0
      %3097 = vmatpush1.bf16.msra.mxu0 0
      %3098 = vmatprep.mubr.bf16.mxu0 0
      %3099 = vmatmul.mubr.bf16.gmra.mrb[0].mxu0 %v2998
      %v3100 = vpop.f32.mrb[0].mxu0
      %v3101 = vadd.f32 0.0, %v3100
      %v3102 = vpop.f32.mrb[0].mxu0
      %v3103 = vpop.f32.mrb[0].mxu0
      %v3104 = vadd.f32 0.0, %v3103
      %v3105 = vpop.f32.mrb[0].mxu0
      %3106 = vmatprep.mubr.bf16.mxu0 0
      %3107 = vmatmul.mubr.bf16.gmra.mrb[0].mxu0 %v3000
      %v3108 = vpop.f32.mrb[0].mxu0
      %v3109 = vadd.f32 0.0, %v3108
      %v3110 = vpop.f32.mrb[0].mxu0
      %v3111 = vpop.f32.mrb[0].mxu0
      %v3112 = vadd.f32 0.0, %v3111
      %v3113 = vpop.f32.mrb[0].mxu0
      %3114 = vmatprep.mubr.bf16.mxu0 0
      %3115 = vmatmul.mubr.bf16.gmra.mrb[0].mxu0 %v3002
      %v3116 = vpop.f32.mrb[0].mxu0
      %v3117 = vadd.f32 0.0, %v3116
      %v3118 = vpop.f32.mrb[0].mxu0
      %v3119 = vpop.f32.mrb[0].mxu0
      %v3120 = vadd.f32 0.0, %v3119
      %v3121 = vpop.f32.mrb[0].mxu0
      %3122 = vmatprep.mubr.bf16.mxu0 0
      %3123 = vmatmul.mubr.bf16.gmra.mrb[0].mxu0 %v3004
      %v3124 = vpop.f32.mrb[0].mxu0
      %v3125 = vadd.f32 0.0, %v3124
      %v3126 = vpop.f32.mrb[0].mxu0
      %v3127 = vpop.f32.mrb[0].mxu0
      %v3128 = vadd.f32 0.0, %v3127
      %v3129 = vpop.f32.mrb[0].mxu0
      %3130 = vmatprep.mubr.bf16.mxu0 0
      %3131 = vmatmul.mubr.bf16.gmra.mrb[0].mxu0 %v3006
      %v3132 = vpop.f32.mrb[0].mxu0
      %v3133 = vadd.f32 0.0, %v3132
      %v3134 = vpop.f32.mrb[0].mxu0
      %v3135 = vpop.f32.mrb[0].mxu0
      %v3136 = vadd.f32 0.0, %v3135
      %v3137 = vpop.f32.mrb[0].mxu0
      %3138 = vmatprep.mubr.bf16.mxu0 0
      %3139 = vmatmul.mubr.bf16.gmra.mrb[0].mxu0 %v3008
      %v3140 = vpop.f32.mrb[0].mxu0
      %v3141 = vadd.f32 0.0, %v3140
      %v3142 = vpop.f32.mrb[0].mxu0
      %v3143 = vpop.f32.mrb[0].mxu0
      %v3144 = vadd.f32 0.0, %v3143
      %v3145 = vpop.f32.mrb[0].mxu0
      %3146 = vmatprep.mubr.bf16.mxu0 0
      %3147 = vmatmul.mubr.bf16.gmra.mrb[0].mxu0 %v3010
      %v3148 = vpop.f32.mrb[0].mxu0
      %v3149 = vadd.f32 0.0, %v3148
      %v3150 = vpop.f32.mrb[0].mxu0
      %v3151 = vpop.f32.mrb[0].mxu0
      %v3152 = vadd.f32 0.0, %v3151
      %v3153 = vpop.f32.mrb[0].mxu0
      %3154 = vmatprep.mubr.bf16.mxu0 0
      %3155 = vmatmul.mubr.bf16.gmra.mrb[0].mxu0 %v3012
      %v3156 = vpop.f32.mrb[0].mxu0
      %v3157 = vadd.f32 0.0, %v3156
      %v3158 = vpop.f32.mrb[0].mxu0
      %v3159 = vpop.f32.mrb[0].mxu0
      %v3160 = vadd.f32 0.0, %v3159
      %v3161 = vpop.f32.mrb[0].mxu0
      %3162 = vmatprep.mubr.bf16.mxu0 0
      %3163 = vmatmul.mubr.bf16.gmra.mrb[0].mxu0 %v3014
      %v3164 = vpop.f32.mrb[0].mxu0
      %v3165 = vadd.f32 0.0, %v3164
      %v3166 = vpop.f32.mrb[0].mxu0
      %v3167 = vpop.f32.mrb[0].mxu0
      %v3168 = vadd.f32 0.0, %v3167
      %v3169 = vpop.f32.mrb[0].mxu0
      %3170 = vmatprep.mubr.bf16.mxu0 0
      %3171 = vmatmul.mubr.bf16.gmra.mrb[0].mxu0 %v3016
      %v3172 = vpop.f32.mrb[0].mxu0
      %v3173 = vadd.f32 0.0, %v3172
      %v3174 = vpop.f32.mrb[0].mxu0
      %v3175 = vpop.f32.mrb[0].mxu0
      %v3176 = vadd.f32 0.0, %v3175
      %v3177 = vpop.f32.mrb[0].mxu0
      %3178 = vmatprep.mubr.bf16.mxu0 0
      %3179 = vmatmul.mubr.bf16.gmra.mrb[0].mxu0 %v3018
      %v3180 = vpop.f32.mrb[0].mxu0
      %v3181 = vadd.f32 0.0, %v3180
      %v3182 = vpop.f32.mrb[0].mxu0
      %v3183 = vpop.f32.mrb[0].mxu0
      %v3184 = vadd.f32 0.0, %v3183
      %v3185 = vpop.f32.mrb[0].mxu0
      %3186 = vmatprep.mubr.bf16.mxu0 0
      %3187 = vmatmul.mubr.bf16.gmra.mrb[0].mxu0 %v3020
      %v3188 = vpop.f32.mrb[0].mxu0
      %v3189 = vadd.f32 0.0, %v3188
      %v3190 = vpop.f32.mrb[0].mxu0
      %v3191 = vpop.f32.mrb[0].mxu0
      %v3192 = vadd.f32 0.0, %v3191
      %v3193 = vpop.f32.mrb[0].mxu0
      %3194 = vmatprep.mubr.bf16.mxu0 0
      %3195 = vmatmul.mubr.bf16.gmra.mrb[0].mxu0 %v3022
      %v3196 = vpop.f32.mrb[0].mxu0
      %v3197 = vadd.f32 0.0, %v3196
      %v3198 = vpop.f32.mrb[0].mxu0
      %v3199 = vpop.f32.mrb[0].mxu0
      %v3200 = vadd.f32 0.0, %v3199
      %v3201 = vpop.f32.mrb[0].mxu0
      %3202 = vmatprep.mubr.bf16.mxu0 0
      %3203 = vmatmul.mubr.bf16.gmra.mrb[0].mxu0 %v3024
      %v3204 = vpop.f32.mrb[0].mxu0
      %v3205 = vadd.f32 0.0, %v3204
      %v3206 = vpop.f32.mrb[0].mxu0
      %v3207 = vpop.f32.mrb[0].mxu0
      %v3208 = vadd.f32 0.0, %v3207
      %v3209 = vpop.f32.mrb[0].mxu0
      %3210 = vmatprep.mubr.bf16.mxu0 0
      %3211 = vmatmul.mubr.bf16.gmra.mrb[0].mxu0 %v3026
      %v3212 = vpop.f32.mrb[0].mxu0
      %v3213 = vadd.f32 0.0, %v3212
      %v3214 = vpop.f32.mrb[0].mxu0
      %v3215 = vpop.f32.mrb[0].mxu0
      %v3216 = vadd.f32 0.0, %v3215
      %v3217 = vpop.f32.mrb[0].mxu0
      %3218 = vmatprep.mubr.bf16.mxu0 0
      %3219 = vmatmul.mubr.bf16.gmra.mrb[0].mxu0 %v3028
      %v3220 = vpop.f32.mrb[0].mxu0
      %v3221 = vadd.f32 0.0, %v3220
      %v3222 = vpop.f32.mrb[0].mxu0
      %v3223 = vpop.f32.mrb[0].mxu0
      %v3224 = vadd.f32 0.0, %v3223
      %v3225 = vpop.f32.mrb[0].mxu0
      %3226 = vmatprep.mubr.bf16.mxu0 0
      %3227 = vmatmul.mubr.bf16.gmra.mrb[0].mxu0 %v3030
      %v3228 = vpop.f32.mrb[0].mxu0
      %v3229 = vadd.f32 0.0, %v3228
      %v3230 = vpop.f32.mrb[0].mxu0
      %v3231 = vpop.f32.mrb[0].mxu0
      %v3232 = vadd.f32 0.0, %v3231
      %v3233 = vpop.f32.mrb[0].mxu0
      %3234 = vmatprep.mubr.bf16.mxu0 0
      %3235 = vmatmul.mubr.bf16.gmra.mrb[0].mxu0 %v3032
      %v3236 = vpop.f32.mrb[0].mxu0
      %v3237 = vadd.f32 0.0, %v3236
      %v3238 = vpop.f32.mrb[0].mxu0
      %v3239 = vpop.f32.mrb[0].mxu0
      %v3240 = vadd.f32 0.0, %v3239
      %v3241 = vpop.f32.mrb[0].mxu0
      %3242 = vmatprep.mubr.bf16.mxu0 0
      %3243 = vmatmul.mubr.bf16.gmra.mrb[0].mxu0 %v3034
      %v3244 = vpop.f32.mrb[0].mxu0
      %v3245 = vadd.f32 0.0, %v3244
      %v3246 = vpop.f32.mrb[0].mxu0
      %v3247 = vpop.f32.mrb[0].mxu0
      %v3248 = vadd.f32 0.0, %v3247
      %v3249 = vpop.f32.mrb[0].mxu0
      %3250 = vmatprep.mubr.bf16.mxu0 0
      %3251 = vmatmul.mubr.bf16.gmra.mrb[0].mxu0 %v3036
      %v3252 = vpop.f32.mrb[0].mxu0
      %v3253 = vadd.f32 0.0, %v3252
      %v3254 = vpop.f32.mrb[0].mxu0
      %v3255 = vpop.f32.mrb[0].mxu0
      %v3256 = vadd.f32 0.0, %v3255
      %v3257 = vpop.f32.mrb[0].mxu0
      %3258 = vmatprep.mubr.bf16.mxu0 0
      %3259 = vmatmul.mubr.bf16.gmra.mrb[0].mxu0 %v3038
      %v3260 = vpop.f32.mrb[0].mxu0
      %v3261 = vadd.f32 0.0, %v3260
      %v3262 = vpop.f32.mrb[0].mxu0
      %v3263 = vpop.f32.mrb[0].mxu0
      %v3264 = vadd.f32 0.0, %v3263
      %v3265 = vpop.f32.mrb[0].mxu0
      %3266 = vmatprep.mubr.bf16.mxu0 0
      %3267 = vmatmul.mubr.bf16.gmra.mrb[0].mxu0 %v3040
      %v3268 = vpop.f32.mrb[0].mxu0
      %v3269 = vadd.f32 0.0, %v3268
      %v3270 = vpop.f32.mrb[0].mxu0
      %v3271 = vpop.f32.mrb[0].mxu0
      %v3272 = vadd.f32 0.0, %v3271
      %v3273 = vpop.f32.mrb[0].mxu0
      %3274 = vmatprep.mubr.bf16.mxu0 0
      %3275 = vmatmul.mubr.bf16.gmra.mrb[0].mxu0 %v3042
      %v3276 = vpop.f32.mrb[0].mxu0
      %v3277 = vadd.f32 0.0, %v3276
      %v3278 = vpop.f32.mrb[0].mxu0
      %v3279 = vpop.f32.mrb[0].mxu0
      %v3280 = vadd.f32 0.0, %v3279
      %v3281 = vpop.f32.mrb[0].mxu0
      %3282 = vmatprep.mubr.bf16.mxu0 0
      %3283 = vmatmul.mubr.bf16.gmra.mrb[0].mxu0 %v3044
      %v3284 = vpop.f32.mrb[0].mxu0
      %v3285 = vadd.f32 0.0, %v3284
      %v3286 = vpop.f32.mrb[0].mxu0
      %v3287 = vpop.f32.mrb[0].mxu0
      %v3288 = vadd.f32 0.0, %v3287
      %v3289 = vpop.f32.mrb[0].mxu0
      %3290 = vmatprep.mubr.bf16.mxu0 0
      %3291 = vmatmul.mubr.bf16.gmra.mrb[0].mxu0 %v3046
      %v3292 = vpop.f32.mrb[0].mxu0
      %v3293 = vadd.f32 0.0, %v3292
      %v3294 = vpop.f32.mrb[0].mxu0
      %v3295 = vpop.f32.mrb[0].mxu0
      %v3296 = vadd.f32 0.0, %v3295
      %v3297 = vpop.f32.mrb[0].mxu0
      %3298 = vmatprep.mubr.bf16.mxu0 0
      %3299 = vmatmul.mubr.bf16.gmra.mrb[0].mxu0 %v3048
      %v3300 = vpop.f32.mrb[0].mxu0
      %v3301 = vadd.f32 0.0, %v3300
      %v3302 = vpop.f32.mrb[0].mxu0
      %v3303 = vpop.f32.mrb[0].mxu0
      %v3304 = vadd.f32 0.0, %v3303
      %v3305 = vpop.f32.mrb[0].mxu0
      %3306 = vmatprep.mubr.bf16.mxu0 0
      %3307 = vmatmul.mubr.bf16.gmra.mrb[0].mxu0 %v3050
      %v3308 = vpop.f32.mrb[0].mxu0
      %v3309 = vadd.f32 0.0, %v3308
      %v3310 = vpop.f32.mrb[0].mxu0
      %v3311 = vpop.f32.mrb[0].mxu0
      %v3312 = vadd.f32 0.0, %v3311
      %v3313 = vpop.f32.mrb[0].mxu0
      %3314 = vmatprep.mubr.bf16.mxu0 0
      %3315 = vmatmul.mubr.bf16.gmra.mrb[0].mxu0 %v3052
      %v3316 = vpop.f32.mrb[0].mxu0
      %v3317 = vadd.f32 0.0, %v3316
      %v3318 = vpop.f32.mrb[0].mxu0
      %v3319 = vpop.f32.mrb[0].mxu0
      %v3320 = vadd.f32 0.0, %v3319
      %v3321 = vpop.f32.mrb[0].mxu0
      %3322 = vmatprep.mubr.bf16.mxu0 0
      %3323 = vmatmul.mubr.bf16.gmra.mrb[0].mxu0 %v3054
      %v3324 = vpop.f32.mrb[0].mxu0
      %v3325 = vadd.f32 0.0, %v3324
      %v3326 = vpop.f32.mrb[0].mxu0
      %v3327 = vpop.f32.mrb[0].mxu0
      %v3328 = vadd.f32 0.0, %v3327
      %v3329 = vpop.f32.mrb[0].mxu0
      %3330 = vmatprep.mubr.bf16.mxu0 0
      %3331 = vmatmul.mubr.bf16.gmra.mrb[0].mxu0 %v3056
      %v3332 = vpop.f32.mrb[0].mxu0
      %v3333 = vadd.f32 0.0, %v3332
      %v3334 = vpop.f32.mrb[0].mxu0
      %v3335 = vpop.f32.mrb[0].mxu0
      %v3336 = vadd.f32 0.0, %v3335
      %v3337 = vpop.f32.mrb[0].mxu0
      %3338 = vmatprep.mubr.bf16.mxu0 0
      %3339 = vmatmul.mubr.bf16.gmra.mrb[0].mxu0 %v3058
      %v3340 = vpop.f32.mrb[0].mxu0
      %v3341 = vadd.f32 0.0, %v3340
      %v3342 = vpop.f32.mrb[0].mxu0
      %v3343 = vpop.f32.mrb[0].mxu0
      %v3344 = vadd.f32 0.0, %v3343
      %v3345 = vpop.f32.mrb[0].mxu0
      %3346 = vmatprep.mubr.bf16.mxu0 0
      %3347 = vmatmul.mubr.bf16.gmra.mrb[0].mxu0 %v3060
      %v3348 = vpop.f32.mrb[0].mxu0
      %v3349 = vadd.f32 0.0, %v3348
      %v3350 = vpop.f32.mrb[0].mxu0
      %v3351 = vpop.f32.mrb[0].mxu0
      %v3352 = vadd.f32 0.0, %v3351
      %v3353 = vpop.f32.mrb[0].mxu0
      %3354 = vdwg.mxu0
      %v3355 = vld [vmem:[%s3] sm:$0x1]
      %v3357 = vlaneseq
      %v3358 = vshrl.u32 %v3357, 7
      %v3359 = vsub.s32 0, %v3358
      %v3360 = vrot.slane %v3355, %v3359
      %v3362 = vmul.f32 %v3101, %v3360
      %v3363 = vmul.f32 %v3104, %v3360
      %v3364 = vmul.f32 %v3109, %v3360
      %v3365 = vmul.f32 %v3112, %v3360
      %v3366 = vmul.f32 %v3117, %v3360
      %v3367 = vmul.f32 %v3120, %v3360
      %v3368 = vmul.f32 %v3125, %v3360
      %v3369 = vmul.f32 %v3128, %v3360
      %v3370 = vmul.f32 %v3133, %v3360
      %v3371 = vmul.f32 %v3136, %v3360
      %v3372 = vmul.f32 %v3141, %v3360
      %v3373 = vmul.f32 %v3144, %v3360
      %v3374 = vmul.f32 %v3149, %v3360
      %v3375 = vmul.f32 %v3152, %v3360
      %v3376 = vmul.f32 %v3157, %v3360
      %v3377 = vmul.f32 %v3160, %v3360
      %v3378 = vmul.f32 %v3165, %v3360
      %v3379 = vmul.f32 %v3168, %v3360
      %v3380 = vmul.f32 %v3173, %v3360
      %v3381 = vmul.f32 %v3176, %v3360
      %v3382 = vmul.f32 %v3181, %v3360
      %v3383 = vmul.f32 %v3184, %v3360
      %v3384 = vmul.f32 %v3189, %v3360
      %v3385 = vmul.f32 %v3192, %v3360
      %v3386 = vmul.f32 %v3197, %v3360
      %v3387 = vmul.f32 %v3200, %v3360
      %v3388 = vmul.f32 %v3205, %v3360
      %v3389 = vmul.f32 %v3208, %v3360
      %v3390 = vmul.f32 %v3213, %v3360
      %v3391 = vmul.f32 %v3216, %v3360
      %v3392 = vmul.f32 %v3221, %v3360
      %v3393 = vmul.f32 %v3224, %v3360
      %v3394 = vmul.f32 %v3229, %v3360
      %v3395 = vmul.f32 %v3232, %v3360
      %v3396 = vmul.f32 %v3237, %v3360
      %v3397 = vmul.f32 %v3240, %v3360
      %v3398 = vmul.f32 %v3245, %v3360
      %v3399 = vmul.f32 %v3248, %v3360
      %v3400 = vmul.f32 %v3253, %v3360
      %v3401 = vmul.f32 %v3256, %v3360
      %v3402 = vmul.f32 %v3261, %v3360
      %v3403 = vmul.f32 %v3264, %v3360
      %v3404 = vmul.f32 %v3269, %v3360
      %v3405 = vmul.f32 %v3272, %v3360
      %v3406 = vmul.f32 %v3277, %v3360
      %v3407 = vmul.f32 %v3280, %v3360
      %v3408 = vmul.f32 %v3285, %v3360
      %v3409 = vmul.f32 %v3288, %v3360
      %v3410 = vmul.f32 %v3293, %v3360
      %v3411 = vmul.f32 %v3296, %v3360
      %v3412 = vmul.f32 %v3301, %v3360
      %v3413 = vmul.f32 %v3304, %v3360
      %v3414 = vmul.f32 %v3309, %v3360
      %v3415 = vmul.f32 %v3312, %v3360
      %v3416 = vmul.f32 %v3317, %v3360
      %v3417 = vmul.f32 %v3320, %v3360
      %v3418 = vmul.f32 %v3325, %v3360
      %v3419 = vmul.f32 %v3328, %v3360
      %v3420 = vmul.f32 %v3333, %v3360
      %v3421 = vmul.f32 %v3336, %v3360
      %v3422 = vmul.f32 %v3341, %v3360
      %v3423 = vmul.f32 %v3344, %v3360
      %v3424 = vmul.f32 %v3349, %v3360
      %v3425 = vmul.f32 %v3352, %v3360
      %v3426 = vld [vmem:[%s4] sm:$0x1]
      %v3428 = vlaneseq
      %v3429 = vshrl.u32 %v3428, 7
      %v3430 = vsub.s32 0, %v3429
      %v3431 = vrot.slane %v3426, %v3430
      %v3433 = vadd.f32 %v3362, %v3431
      %v3434 = vadd.f32 %v3363, %v3431
      %v3435 = vadd.f32 %v3364, %v3431
      %v3436 = vadd.f32 %v3365, %v3431
      %v3437 = vadd.f32 %v3366, %v3431
      %v3438 = vadd.f32 %v3367, %v3431
      %v3439 = vadd.f32 %v3368, %v3431
      %v3440 = vadd.f32 %v3369, %v3431
      %v3441 = vadd.f32 %v3370, %v3431
      %v3442 = vadd.f32 %v3371, %v3431
      %v3443 = vadd.f32 %v3372, %v3431
      %v3444 = vadd.f32 %v3373, %v3431
      %v3445 = vadd.f32 %v3374, %v3431
      %v3446 = vadd.f32 %v3375, %v3431
      %v3447 = vadd.f32 %v3376, %v3431
      %v3448 = vadd.f32 %v3377, %v3431
      %v3449 = vadd.f32 %v3378, %v3431
      %v3450 = vadd.f32 %v3379, %v3431
      %v3451 = vadd.f32 %v3380, %v3431
      %v3452 = vadd.f32 %v3381, %v3431
      %v3453 = vadd.f32 %v3382, %v3431
      %v3454 = vadd.f32 %v3383, %v3431
      %v3455 = vadd.f32 %v3384, %v3431
      %v3456 = vadd.f32 %v3385, %v3431
      %v3457 = vadd.f32 %v3386, %v3431
      %v3458 = vadd.f32 %v3387, %v3431
      %v3459 = vadd.f32 %v3388, %v3431
      %v3460 = vadd.f32 %v3389, %v3431
      %v3461 = vadd.f32 %v3390, %v3431
      %v3462 = vadd.f32 %v3391, %v3431
      %v3463 = vadd.f32 %v3392, %v3431
      %v3464 = vadd.f32 %v3393, %v3431
      %v3465 = vadd.f32 %v3394, %v3431
      %v3466 = vadd.f32 %v3395, %v3431
      %v3467 = vadd.f32 %v3396, %v3431
      %v3468 = vadd.f32 %v3397, %v3431
      %v3469 = vadd.f32 %v3398, %v3431
      %v3470 = vadd.f32 %v3399, %v3431
      %v3471 = vadd.f32 %v3400, %v3431
      %v3472 = vadd.f32 %v3401, %v3431
      %v3473 = vadd.f32 %v3402, %v3431
      %v3474 = vadd.f32 %v3403, %v3431
      %v3475 = vadd.f32 %v3404, %v3431
      %v3476 = vadd.f32 %v3405, %v3431
      %v3477 = vadd.f32 %v3406, %v3431
      %v3478 = vadd.f32 %v3407, %v3431
      %v3479 = vadd.f32 %v3408, %v3431
      %v3480 = vadd.f32 %v3409, %v3431
      %v3481 = vadd.f32 %v3410, %v3431
      %v3482 = vadd.f32 %v3411, %v3431
      %v3483 = vadd.f32 %v3412, %v3431
      %v3484 = vadd.f32 %v3413, %v3431
      %v3485 = vadd.f32 %v3414, %v3431
      %v3486 = vadd.f32 %v3415, %v3431
      %v3487 = vadd.f32 %v3416, %v3431
      %v3488 = vadd.f32 %v3417, %v3431
      %v3489 = vadd.f32 %v3418, %v3431
      %v3490 = vadd.f32 %v3419, %v3431
      %v3491 = vadd.f32 %v3420, %v3431
      %v3492 = vadd.f32 %v3421, %v3431
      %v3493 = vadd.f32 %v3422, %v3431
      %v3494 = vadd.f32 %v3423, %v3431
      %v3495 = vadd.f32 %v3424, %v3431
      %v3496 = vadd.f32 %v3425, %v3431
      %v3497 = vmax.f32 %v3433, 0.0
      %v3498 = vmax.f32 %v3434, 0.0
      %v3499 = vmax.f32 %v3435, 0.0
      %v3500 = vmax.f32 %v3436, 0.0
      %v3501 = vmax.f32 %v3437, 0.0
      %v3502 = vmax.f32 %v3438, 0.0
      %v3503 = vmax.f32 %v3439, 0.0
      %v3504 = vmax.f32 %v3440, 0.0
      %v3505 = vmax.f32 %v3441, 0.0
      %v3506 = vmax.f32 %v3442, 0.0
      %v3507 = vmax.f32 %v3443, 0.0
      %v3508 = vmax.f32 %v3444, 0.0
      %v3509 = vmax.f32 %v3445, 0.0
      %v3510 = vmax.f32 %v3446, 0.0
      %v3511 = vmax.f32 %v3447, 0.0
      %v3512 = vmax.f32 %v3448, 0.0
      %v3513 = vmax.f32 %v3449, 0.0
      %v3514 = vmax.f32 %v3450, 0.0
      %v3515 = vmax.f32 %v3451, 0.0
      %v3516 = vmax.f32 %v3452, 0.0
      %v3517 = vmax.f32 %v3453, 0.0
      %v3518 = vmax.f32 %v3454, 0.0
      %v3519 = vmax.f32 %v3455, 0.0
      %v3520 = vmax.f32 %v3456, 0.0
      %v3521 = vmax.f32 %v3457, 0.0
      %v3522 = vmax.f32 %v3458, 0.0
      %v3523 = vmax.f32 %v3459, 0.0
      %v3524 = vmax.f32 %v3460, 0.0
      %v3525 = vmax.f32 %v3461, 0.0
      %v3526 = vmax.f32 %v3462, 0.0
      %v3527 = vmax.f32 %v3463, 0.0
      %v3528 = vmax.f32 %v3464, 0.0
      %v3529 = vmax.f32 %v3465, 0.0
      %v3530 = vmax.f32 %v3466, 0.0
      %v3531 = vmax.f32 %v3467, 0.0
      %v3532 = vmax.f32 %v3468, 0.0
      %v3533 = vmax.f32 %v3469, 0.0
      %v3534 = vmax.f32 %v3470, 0.0
      %v3535 = vmax.f32 %v3471, 0.0
      %v3536 = vmax.f32 %v3472, 0.0
      %v3537 = vmax.f32 %v3473, 0.0
      %v3538 = vmax.f32 %v3474, 0.0
      %v3539 = vmax.f32 %v3475, 0.0
      %v3540 = vmax.f32 %v3476, 0.0
      %v3541 = vmax.f32 %v3477, 0.0
      %v3542 = vmax.f32 %v3478, 0.0
      %v3543 = vmax.f32 %v3479, 0.0
      %v3544 = vmax.f32 %v3480, 0.0
      %v3545 = vmax.f32 %v3481, 0.0
      %v3546 = vmax.f32 %v3482, 0.0
      %v3547 = vmax.f32 %v3483, 0.0
      %v3548 = vmax.f32 %v3484, 0.0
      %v3549 = vmax.f32 %v3485, 0.0
      %v3550 = vmax.f32 %v3486, 0.0
      %v3551 = vmax.f32 %v3487, 0.0
      %v3552 = vmax.f32 %v3488, 0.0
      %v3553 = vmax.f32 %v3489, 0.0
      %v3554 = vmax.f32 %v3490, 0.0
      %v3555 = vmax.f32 %v3491, 0.0
      %v3556 = vmax.f32 %v3492, 0.0
      %v3557 = vmax.f32 %v3493, 0.0
      %v3558 = vmax.f32 %v3494, 0.0
      %v3559 = vmax.f32 %v3495, 0.0
      %v3560 = vmax.f32 %v3496, 0.0
      %3561 = vst.msk [vmem:[%s345] sm:$0xff] %vm2522, %v3497
      %3562 = vst.msk [vmem:[%s345 + $0x8] sm:$0xff] %vm2522, %v3498
      %3563 = vst.msk [vmem:[%s345 + $0x10] sm:$0xff] %vm2522, %v3499
      %3564 = vst.msk [vmem:[%s345 + $0x18] sm:$0xff] %vm2522, %v3500
      %3565 = vst.msk [vmem:[%s345 + $0x20] sm:$0xff] %vm2522, %v3501
      %3566 = vst.msk [vmem:[%s345 + $0x28] sm:$0xff] %vm2522, %v3502
      %3567 = vst.msk [vmem:[%s345 + $0x30] sm:$0xff] %vm2522, %v3503
      %3568 = vst.msk [vmem:[%s345 + $0x38] sm:$0xff] %vm2522, %v3504
      %3569 = vst.msk [vmem:[%s345 + $0x40] sm:$0xff] %vm2522, %v3505
      %3570 = vst.msk [vmem:[%s345 + $0x48] sm:$0xff] %vm2522, %v3506
      %3571 = vst.msk [vmem:[%s345 + $0x50] sm:$0xff] %vm2522, %v3507
      %3572 = vst.msk [vmem:[%s345 + $0x58] sm:$0xff] %vm2522, %v3508
      %3573 = vst.msk [vmem:[%s345 + $0x60] sm:$0xff] %vm2522, %v3509
      %3574 = vst.msk [vmem:[%s345 + $0x68] sm:$0xff] %vm2522, %v3510
      %3575 = vst.msk [vmem:[%s345 + $0x70] sm:$0xff] %vm2522, %v3511
      %3576 = vst.msk [vmem:[%s345 + $0x78] sm:$0xff] %vm2522, %v3512
      %3577 = vst.msk [vmem:[%s345 + $0x80] sm:$0xff] %vm2522, %v3513
      %3578 = vst.msk [vmem:[%s345 + $0x88] sm:$0xff] %vm2522, %v3514
      %3579 = vst.msk [vmem:[%s345 + $0x90] sm:$0xff] %vm2522, %v3515
      %3580 = vst.msk [vmem:[%s345 + $0x98] sm:$0xff] %vm2522, %v3516
      %3581 = vst.msk [vmem:[%s345 + $0xa0] sm:$0xff] %vm2522, %v3517
      %3582 = vst.msk [vmem:[%s345 + $0xa8] sm:$0xff] %vm2522, %v3518
      %3583 = vst.msk [vmem:[%s345 + $0xb0] sm:$0xff] %vm2522, %v3519
      %3584 = vst.msk [vmem:[%s345 + $0xb8] sm:$0xff] %vm2522, %v3520
      %3585 = vst.msk [vmem:[%s345 + $0xc0] sm:$0xff] %vm2522, %v3521
      %3586 = vst.msk [vmem:[%s345 + $0xc8] sm:$0xff] %vm2522, %v3522
      %3587 = vst.msk [vmem:[%s345 + $0xd0] sm:$0xff] %vm2522, %v3523
      %3588 = vst.msk [vmem:[%s345 + $0xd8] sm:$0xff] %vm2522, %v3524
      %3589 = vst.msk [vmem:[%s345 + $0xe0] sm:$0xff] %vm2522, %v3525
      %3590 = vst.msk [vmem:[%s345 + $0xe8] sm:$0xff] %vm2522, %v3526
      %3591 = vst.msk [vmem:[%s345 + $0xf0] sm:$0xff] %vm2522, %v3527
      %3592 = vst.msk [vmem:[%s345 + $0xf8] sm:$0xff] %vm2522, %v3528
      %3593 = vst.msk [vmem:[%s345 + $0x100] sm:$0xff] %vm2522, %v3529
      %3594 = vst.msk [vmem:[%s345 + $0x108] sm:$0xff] %vm2522, %v3530
      %3595 = vst.msk [vmem:[%s345 + $0x110] sm:$0xff] %vm2522, %v3531
      %3596 = vst.msk [vmem:[%s345 + $0x118] sm:$0xff] %vm2522, %v3532
      %3597 = vst.msk [vmem:[%s345 + $0x120] sm:$0xff] %vm2522, %v3533
      %3598 = vst.msk [vmem:[%s345 + $0x128] sm:$0xff] %vm2522, %v3534
      %3599 = vst.msk [vmem:[%s345 + $0x130] sm:$0xff] %vm2522, %v3535
      %3600 = vst.msk [vmem:[%s345 + $0x138] sm:$0xff] %vm2522, %v3536
      %3601 = vst.msk [vmem:[%s345 + $0x140] sm:$0xff] %vm2522, %v3537
      %3602 = vst.msk [vmem:[%s345 + $0x148] sm:$0xff] %vm2522, %v3538
      %3603 = vst.msk [vmem:[%s345 + $0x150] sm:$0xff] %vm2522, %v3539
      %3604 = vst.msk [vmem:[%s345 + $0x158] sm:$0xff] %vm2522, %v3540
      %3605 = vst.msk [vmem:[%s345 + $0x160] sm:$0xff] %vm2522, %v3541
      %3606 = vst.msk [vmem:[%s345 + $0x168] sm:$0xff] %vm2522, %v3542
      %3607 = vst.msk [vmem:[%s345 + $0x170] sm:$0xff] %vm2522, %v3543
      %3608 = vst.msk [vmem:[%s345 + $0x178] sm:$0xff] %vm2522, %v3544
      %3609 = vst.msk [vmem:[%s345 + $0x180] sm:$0xff] %vm2522, %v3545
      %3610 = vst.msk [vmem:[%s345 + $0x188] sm:$0xff] %vm2522, %v3546
      %3611 = vst.msk [vmem:[%s345 + $0x190] sm:$0xff] %vm2522, %v3547
      %3612 = vst.msk [vmem:[%s345 + $0x198] sm:$0xff] %vm2522, %v3548
      %3613 = vst.msk [vmem:[%s345 + $0x1a0] sm:$0xff] %vm2522, %v3549
      %3614 = vst.msk [vmem:[%s345 + $0x1a8] sm:$0xff] %vm2522, %v3550
      %3615 = vst.msk [vmem:[%s345 + $0x1b0] sm:$0xff] %vm2522, %v3551
      %3616 = vst.msk [vmem:[%s345 + $0x1b8] sm:$0xff] %vm2522, %v3552
      %3617 = vst.msk [vmem:[%s345 + $0x1c0] sm:$0xff] %vm2522, %v3553
      %3618 = vst.msk [vmem:[%s345 + $0x1c8] sm:$0xff] %vm2522, %v3554
      %3619 = vst.msk [vmem:[%s345 + $0x1d0] sm:$0xff] %vm2522, %v3555
      %3620 = vst.msk [vmem:[%s345 + $0x1d8] sm:$0xff] %vm2522, %v3556
      %3621 = vst.msk [vmem:[%s345 + $0x1e0] sm:$0xff] %vm2522, %v3557
      %3622 = vst.msk [vmem:[%s345 + $0x1e8] sm:$0xff] %vm2522, %v3558
      %3623 = vst.msk [vmem:[%s345 + $0x1f0] sm:$0xff] %vm2522, %v3559
      %3624 = vst.msk [vmem:[%s345 + $0x1f8] sm:$0xff] %vm2522, %v3560
      %s3625 = smul.u32 16, %s21
      %p3626 = scmp.lt.s32.totalorder %s20, 1
      %s3627 = scalar_select %p3626, %s20, 1
      %p3628 = scmp.lt.s32.totalorder %s3625, 31
      %s3629 = scalar_select %p3628, %s3625, 31
      %s3630 = smul.addr %s3629, 4
      %s3631 = smul.addr %s3627, 128
      %s3632 = sadd.s32 %s3630, %s3631
      %s3633 = smul.addr %s3632, 8
      %s3634 = scalar_lea.vmem %s5, %s3633
      // Predicated region
      $region41: #{upconv_block.1} parent=39 // pred_check
        %p3635 = pneg %p171
      $region42: #{upconv_block.1} parent=39 // pred_check_branch
        %3637 = sbr.rel (%p3635) target = $region44
      $region43: #{upconv_block.1} parent=39 // pred_region
        %s3638 = smul.u32 16, %s21
      $region44: #{upconv_block.1} parent=39 // pred_fallthru
        _
    $region40: #{upconv_block.1} parent=5 // pred_fallthru
      _
    %p3639 = scmp.le.s32.totalorder 2, %s11
    // Predicated region
    $region45: #{upconv_block.1} parent=5 // pred_check
      %p3640 = pneg %p3639
    $region46: #{upconv_block.1} parent=5 // pred_check_branch
      %3642 = sbr.rel (%p3640) target = $region48
    $region47: #{upconv_block.1} parent=5 // pred_region
      %s3643 = ssub.s32 %s11, 2
      // Predicated region
      $region49: #{upconv_block.1} parent=47 // pred_check
        %p3644 = pneg %p177
      $region50: #{upconv_block.1} parent=47 // pred_check_branch
        %3646 = sbr.rel (%p3644) target = $region52
      $region51: #{upconv_block.1} parent=47 // pred_region
        %s3647 = smul.u32 16, %s23
        %p3648 = scmp.lt.s32.totalorder %s22, 1
        %s3649 = scalar_select %p3648, %s22, 1
        %p3650 = scmp.lt.s32.totalorder %s3647, 31
        %s3651 = scalar_select %p3650, %s3647, 31
        %s3652 = smul.addr %s3651, 4
        %s3653 = smul.addr %s3649, 128
        %s3654 = sadd.s32 %s3652, %s3653
        %s3655 = smul.addr %s3654, 8
        %s3656 = scalar_lea.vmem %s5, %s3655
      $region52: #{upconv_block.1} parent=47 // pred_fallthru
        _
    $region48: #{upconv_block.1} parent=5 // pred_fallthru
      _
  $region6: #{upconv_block.1} parent=0 // loop_footer
    %s15 = sadd.s32 1, %s11
  $region7: #{upconv_block.1} parent=0 // loop_footer_branch
    %10 = sbr.rel target = $region3
  $region8: #{upconv_block.1} parent=0 // loop_exit
    _

</llo_original>
